<compile_context>
chip_gen: v7x
topology: tpu7x:2x2x1
jax: 0.10.0
libtpu: 0.0.40
codegen_flags: <defaults>
</compile_context>

<pallas_src>
import functools

import jax
import jax.numpy as jnp
import numpy as np
from jax.experimental import pallas as pl
from jax.experimental.pallas import tpu as pltpu  # noqa: F401  (TPU backend)


# --------------------------- fused Pallas kernel ---------------------------- #

def _lenet_fused_kernel(x_ref, t1_ref, b1c_ref, t2_ref, b2c_ref,
                        w1_ref, b1_ref, w2_ref, b2_ref, w3_ref, b3_ref,
                        out_ref, *, batch):
    f32 = jnp.float32

    def mm(a, b):
        return jnp.dot(a, b, preferred_element_type=f32)

    def row_sel(n_out, n_in, parity):
        # (n_out, n_in) 0/1 matrix: (S @ x)[i, :] = x[2*i + parity, :]
        r = jax.lax.broadcasted_iota(jnp.int32, (n_out, n_in), 0)
        c = jax.lax.broadcasted_iota(jnp.int32, (n_out, n_in), 1)
        return (c == 2 * r + parity).astype(f32)

    def lane_sel(n_in, n_out, parity):
        # (n_in, n_out) 0/1 matrix: (x @ S)[:, j] = x[:, 2*j + parity]
        r = jax.lax.broadcasted_iota(jnp.int32, (n_in, n_out), 0)
        c = jax.lax.broadcasted_iota(jnp.int32, (n_in, n_out), 1)
        return (r == 2 * c + parity).astype(f32)

    # stride-2 down-sample selection matrices for the two max-pools
    d1e, d1o = row_sel(12, 24, 0), row_sel(12, 24, 1)     # pool1 rows   24 -> 12
    r1e, r1o = lane_sel(144, 72, 0), lane_sel(144, 72, 1)  # pool1 lanes 144 -> 72
    d2e, d2o = row_sel(4, 8, 0), row_sel(4, 8, 1)          # pool2 rows    8 -> 4
    r2e, r2o = lane_sel(128, 64, 0), lane_sel(128, 64, 1)  # pool2 lanes 128 -> 64

    feats = []
    for b in range(batch):                                 # batch is static (=2)
        xb = x_ref[b]                                      # (28, 28)  h x w

        # ---- conv1 (1->6, 5x5, valid) + bias + ReLU; lanes = oc*24 + ow ----
        o1 = mm(xb[0:24, :], t1_ref[0])
        for ki in range(1, 5):
            o1 = o1 + mm(xb[ki:ki + 24, :], t1_ref[ki])
        o1 = jnp.maximum(o1 + b1c_ref[...], 0.0)           # (24, 144)

        # ---- maxpool 2x2 / stride 2 (even/odd selection matmuls + max) ----
        hw = jnp.maximum(mm(o1, r1e), mm(o1, r1o))         # (24, 72)
        p1 = jnp.maximum(mm(d1e, hw), mm(d1o, hw))         # (12, 72) lanes=ic*12+w

        # ---- conv2 (6->16, 5x5, valid) + bias + ReLU; lanes = oc*8 + ow ----
        o2 = mm(p1[0:8, :], t2_ref[0])
        for ki in range(1, 5):
            o2 = o2 + mm(p1[ki:ki + 8, :], t2_ref[ki])
        o2 = jnp.maximum(o2 + b2c_ref[...], 0.0)           # (8, 128)

        # ---- maxpool 2x2 / stride 2 ----
        gw = jnp.maximum(mm(o2, r2e), mm(o2, r2o))         # (8, 64)
        p2 = jnp.maximum(mm(d2e, gw), mm(d2o, gw))         # (4, 64) lanes=oc*4+pw

        # ---- flatten; feature order (h, c, w) is absorbed into fc1 weights ----
        feats.append(jnp.concatenate([p2[0:1], p2[1:2], p2[2:3], p2[3:4]],
                                     axis=1))              # (1, 256)

    x_fc = jnp.concatenate(feats, axis=0)                  # (B, 256)
    h = jnp.maximum(mm(x_fc, w1_ref[...]) + b1_ref[...], 0.0)   # (B, 128)
    h = jnp.maximum(mm(h, w2_ref[...]) + b2_ref[...], 0.0)      # (B, 128)
    out_ref[...] = mm(h, w3_ref[...]) + b3_ref[...]        # (B, 128); cols >= 10 are 0
    # TODO(synk): for batch >> 2, add a "parallel" batch grid axis so v7x's
    # second TensorCore gets work; at B=2 a single invocation is faster.


def net_forward(x_nchw, prepped):
    """NCHW float32 [B,1,28,28] -> logits [B,10]; single fused pallas_call."""
    b = x_nchw.shape[0]
    x3d = x_nchw.reshape(b, 28, 28).astype(jnp.float32)
    kern = functools.partial(_lenet_fused_kernel, batch=b)
    out = pl.pallas_call(
        kern,
        out_shape=jax.ShapeDtypeStruct((b, 128), jnp.float32),
    )(x3d,
      prepped["t1"], prepped["b1c"], prepped["t2"], prepped["b2c"],
      prepped["w1p"], prepped["b1p"], prepped["w2p"], prepped["b2p"],
      prepped["w3p"], prepped["b3p"])
    return out[:, :10]


# ------------------- init-time parameter packing (once) --------------------- #

def _conv_toeplitz(w_oihw, w_in):
    """PyTorch conv weight (OC,IC,5,5) -> T[ki, ic*w_in + w, oc*OW + ow] with
    T[ki, ic*w_in + ow + kj, oc*OW + ow] = w[oc, ic, ki, kj]  (OW = w_in - 4)."""
    oc_n, ic_n, kh, kw = w_oihw.shape
    ow_n = w_in - kw + 1
    t = np.zeros((kh, ic_n * w_in, oc_n * ow_n), np.float32)
    for ki in range(kh):
        for kj in range(kw):
            for ic in range(ic_n):
                for oc in range(oc_n):
                    for ow in range(ow_n):
                        t[ki, ic * w_in + ow + kj, oc * ow_n + ow] = w_oihw[oc, ic, ki, kj]
    return t


def prepare_params(params):
    """Fold transposes, zero padding (K/N -> 8/128 multiples), conv-bias lane
    expansion and the NCHW flatten permutation into kernel-ready matrices."""
    c1w = np.asarray(params["conv1_w"]); c1b = np.asarray(params["conv1_b"])
    c2w = np.asarray(params["conv2_w"]); c2b = np.asarray(params["conv2_b"])
    f1w = np.asarray(params["fc1_w"]); f1b = np.asarray(params["fc1_b"])
    f2w = np.asarray(params["fc2_w"]); f2b = np.asarray(params["fc2_b"])
    f3w = np.asarray(params["fc3_w"]); f3b = np.asarray(params["fc3_b"])

    t1 = _conv_toeplitz(c1w, 28)                     # (5, 28, 144)
    t2 = _conv_toeplitz(c2w, 12)                     # (5, 72, 128)
    b1c = np.repeat(c1b, 24)[None, :].astype(np.float32)   # (1, 144)
    b2c = np.repeat(c2b, 8)[None, :].astype(np.float32)    # (1, 128)

    # fc1: kernel feature order is (h, c, w); PyTorch flatten is (c, h, w).
    w1p = np.zeros((256, 128), np.float32)
    w1p[:, :120] = f1w.reshape(120, 16, 4, 4).transpose(2, 1, 3, 0).reshape(256, 120)
    b1p = np.zeros((1, 128), np.float32); b1p[0, :120] = f1b
    w2p = np.zeros((128, 128), np.float32); w2p[:120, :84] = f2w.T
    b2p = np.zeros((1, 128), np.float32); b2p[0, :84] = f2b
    w3p = np.zeros((128, 128), np.float32); w3p[:84, :10] = f3w.T
    b3p = np.zeros((1, 128), np.float32); b3p[0, :10] = f3b

    packed = dict(t1=t1, b1c=b1c, t2=t2, b2c=b2c,
                  w1p=w1p, b1p=b1p, w2p=w2p, b2p=b2p, w3p=w3p, b3p=b3p)
    return {k: jnp.asarray(v) for k, v in packed.items()}


def init_params(key):
    """Deterministic parameter init (PyTorch-style uniform +-1/sqrt(fan_in))."""
    ks = jax.random.split(key, 10)

    def unif(k, shape, fan_in):
        bound = 1.0 / np.sqrt(fan_in)
        return jax.random.uniform(k, shape, jnp.float32, -bound, bound)

    return {
        "conv1_w": unif(ks[0], (6, 1, 5, 5), 1 * 5 * 5),
        "conv1_b": unif(ks[1], (6,), 1 * 5 * 5),
        "conv2_w": unif(ks[2], (16, 6, 5, 5), 6 * 5 * 5),
        "conv2_b": unif(ks[3], (16,), 6 * 5 * 5),
        "fc1_w": unif(ks[4], (120, 256), 256),
        "fc1_b": unif(ks[5], (120,), 256),
        "fc2_w": unif(ks[6], (84, 120), 120),
        "fc2_b": unif(ks[7], (84,), 120),
        "fc3_w": unif(ks[8], (10, 84), 84),
        "fc3_b": unif(ks[9], (10,), 84),
    }


# --------------------------- pure-JAX reference ------------------------------ #

def net_forward_ref(x_nchw, params):
    """Pure-JAX reference reproducing the PyTorch forward (for validation)."""
    dn = ("NCHW", "OIHW", "NCHW")
    y = jax.lax.conv_general_dilated(x_nchw, params["conv1_w"], (1, 1), "VALID",
                                     dimension_numbers=dn)
    y = jnp.maximum(y + params["conv1_b"][None, :, None, None], 0.0)
    y = jax.lax.reduce_window(y, -jnp.inf, jax.lax.max, (1, 1, 2, 2), (1, 1, 2, 2), "VALID")
    y = jax.lax.conv_general_dilated(y, params["conv2_w"], (1, 1), "VALID",
                                     dimension_numbers=dn)
    y = jnp.maximum(y + params["conv2_b"][None, :, None, None], 0.0)
    y = jax.lax.reduce_window(y, -jnp.inf, jax.lax.max, (1, 1, 2, 2), (1, 1, 2, 2), "VALID")
    flat = y.reshape(y.shape[0], -1)
    h = jnp.maximum(flat @ params["fc1_w"].T + params["fc1_b"], 0.0)
    h = jnp.maximum(h @ params["fc2_w"].T + params["fc2_b"], 0.0)
    return h @ params["fc3_w"].T + params["fc3_b"]


if __name__ == "__main__":
    key = jax.random.PRNGKey(0)
    kx, kp = jax.random.split(key)
    x = jax.random.normal(kx, (2, 1, 28, 28), jnp.float32)   # NCHW Fashion-MNIST size
    params = init_params(kp)
    prepped = prepare_params(params)                         # packed once at init

    out = jax.block_until_ready(jax.jit(net_forward)(x, prepped))
    assert out.shape == (2, 10) and out.dtype == jnp.float32

    ref = jax.block_until_ready(jax.jit(net_forward_ref)(x, params))
    np.testing.assert_allclose(np.asarray(out), np.asarray(ref), rtol=1e-3, atol=1e-3)

    print("KERNEL_OK")
</pallas_src>

<mosaic_0001>
module attributes {stable_mosaic.version = 11 : i64} {
  func.func @_lenet_fused_kernel(%arg0: memref<2x28x28xf32, #tpu.memory_space<vmem>>, %arg1: memref<5x28x144xf32, #tpu.memory_space<vmem>>, %arg2: memref<1x144xf32, #tpu.memory_space<vmem>>, %arg3: memref<5x72x128xf32, #tpu.memory_space<vmem>>, %arg4: memref<1x128xf32, #tpu.memory_space<vmem>>, %arg5: memref<256x128xf32, #tpu.memory_space<vmem>>, %arg6: memref<1x128xf32, #tpu.memory_space<vmem>>, %arg7: memref<128x128xf32, #tpu.memory_space<vmem>>, %arg8: memref<1x128xf32, #tpu.memory_space<vmem>>, %arg9: memref<128x128xf32, #tpu.memory_space<vmem>>, %arg10: memref<1x128xf32, #tpu.memory_space<vmem>>, %arg11: memref<2x128xf32, #tpu.memory_space<vmem>>) attributes {dimension_semantics = [], scalar_prefetch = 0 : i64, scratch_operands = 0 : i64, tpu.core_type = #tpu.core_type<tc>} {
    %0 = tpu.iota {dimensions = array<i32: 0>} : vector<12x24xi32>
    %1 = tpu.iota {dimensions = array<i32: 1>} : vector<12x24xi32>
    %c2_i32 = arith.constant 2 : i32
    %2 = vector.broadcast %c2_i32 : i32 to vector<12x24xi32>
    %3 = arith.muli %2, %0 : vector<12x24xi32>
    %c0_i32 = arith.constant 0 : i32
    %4 = vector.broadcast %c0_i32 : i32 to vector<12x24xi32>
    %5 = arith.addi %3, %4 : vector<12x24xi32>
    %6 = arith.cmpi eq, %1, %5 : vector<12x24xi32>
    %7 = arith.extui %6 : vector<12x24xi1> to vector<12x24xi32>
    %8 = arith.sitofp %7 : vector<12x24xi32> to vector<12x24xf32>
    %9 = tpu.iota {dimensions = array<i32: 0>} : vector<12x24xi32>
    %10 = tpu.iota {dimensions = array<i32: 1>} : vector<12x24xi32>
    %c2_i32_0 = arith.constant 2 : i32
    %11 = vector.broadcast %c2_i32_0 : i32 to vector<12x24xi32>
    %12 = arith.muli %11, %9 : vector<12x24xi32>
    %c1_i32 = arith.constant 1 : i32
    %13 = vector.broadcast %c1_i32 : i32 to vector<12x24xi32>
    %14 = arith.addi %12, %13 : vector<12x24xi32>
    %15 = arith.cmpi eq, %10, %14 : vector<12x24xi32>
    %16 = arith.extui %15 : vector<12x24xi1> to vector<12x24xi32>
    %17 = arith.sitofp %16 : vector<12x24xi32> to vector<12x24xf32>
    %18 = tpu.iota {dimensions = array<i32: 0>} : vector<144x72xi32>
    %19 = tpu.iota {dimensions = array<i32: 1>} : vector<144x72xi32>
    %c2_i32_1 = arith.constant 2 : i32
    %20 = vector.broadcast %c2_i32_1 : i32 to vector<144x72xi32>
    %21 = arith.muli %20, %19 : vector<144x72xi32>
    %c0_i32_2 = arith.constant 0 : i32
    %22 = vector.broadcast %c0_i32_2 : i32 to vector<144x72xi32>
    %23 = arith.addi %21, %22 : vector<144x72xi32>
    %24 = arith.cmpi eq, %18, %23 : vector<144x72xi32>
    %25 = arith.extui %24 : vector<144x72xi1> to vector<144x72xi32>
    %26 = arith.sitofp %25 : vector<144x72xi32> to vector<144x72xf32>
    %27 = tpu.iota {dimensions = array<i32: 0>} : vector<144x72xi32>
    %28 = tpu.iota {dimensions = array<i32: 1>} : vector<144x72xi32>
    %c2_i32_3 = arith.constant 2 : i32
    %29 = vector.broadcast %c2_i32_3 : i32 to vector<144x72xi32>
    %30 = arith.muli %29, %28 : vector<144x72xi32>
    %c1_i32_4 = arith.constant 1 : i32
    %31 = vector.broadcast %c1_i32_4 : i32 to vector<144x72xi32>
    %32 = arith.addi %30, %31 : vector<144x72xi32>
    %33 = arith.cmpi eq, %27, %32 : vector<144x72xi32>
    %34 = arith.extui %33 : vector<144x72xi1> to vector<144x72xi32>
    %35 = arith.sitofp %34 : vector<144x72xi32> to vector<144x72xf32>
    %36 = tpu.iota {dimensions = array<i32: 0>} : vector<4x8xi32>
    %37 = tpu.iota {dimensions = array<i32: 1>} : vector<4x8xi32>
    %c2_i32_5 = arith.constant 2 : i32
    %38 = vector.broadcast %c2_i32_5 : i32 to vector<4x8xi32>
    %39 = arith.muli %38, %36 : vector<4x8xi32>
    %c0_i32_6 = arith.constant 0 : i32
    %40 = vector.broadcast %c0_i32_6 : i32 to vector<4x8xi32>
    %41 = arith.addi %39, %40 : vector<4x8xi32>
    %42 = arith.cmpi eq, %37, %41 : vector<4x8xi32>
    %43 = arith.extui %42 : vector<4x8xi1> to vector<4x8xi32>
    %44 = arith.sitofp %43 : vector<4x8xi32> to vector<4x8xf32>
    %45 = tpu.iota {dimensions = array<i32: 0>} : vector<4x8xi32>
    %46 = tpu.iota {dimensions = array<i32: 1>} : vector<4x8xi32>
    %c2_i32_7 = arith.constant 2 : i32
    %47 = vector.broadcast %c2_i32_7 : i32 to vector<4x8xi32>
    %48 = arith.muli %47, %45 : vector<4x8xi32>
    %c1_i32_8 = arith.constant 1 : i32
    %49 = vector.broadcast %c1_i32_8 : i32 to vector<4x8xi32>
    %50 = arith.addi %48, %49 : vector<4x8xi32>
    %51 = arith.cmpi eq, %46, %50 : vector<4x8xi32>
    %52 = arith.extui %51 : vector<4x8xi1> to vector<4x8xi32>
    %53 = arith.sitofp %52 : vector<4x8xi32> to vector<4x8xf32>
    %54 = tpu.iota {dimensions = array<i32: 0>} : vector<128x64xi32>
    %55 = tpu.iota {dimensions = array<i32: 1>} : vector<128x64xi32>
    %c2_i32_9 = arith.constant 2 : i32
    %56 = vector.broadcast %c2_i32_9 : i32 to vector<128x64xi32>
    %57 = arith.muli %56, %55 : vector<128x64xi32>
    %c0_i32_10 = arith.constant 0 : i32
    %58 = vector.broadcast %c0_i32_10 : i32 to vector<128x64xi32>
    %59 = arith.addi %57, %58 : vector<128x64xi32>
    %60 = arith.cmpi eq, %54, %59 : vector<128x64xi32>
    %61 = arith.extui %60 : vector<128x64xi1> to vector<128x64xi32>
    %62 = arith.sitofp %61 : vector<128x64xi32> to vector<128x64xf32>
    %63 = tpu.iota {dimensions = array<i32: 0>} : vector<128x64xi32>
    %64 = tpu.iota {dimensions = array<i32: 1>} : vector<128x64xi32>
    %c2_i32_11 = arith.constant 2 : i32
    %65 = vector.broadcast %c2_i32_11 : i32 to vector<128x64xi32>
    %66 = arith.muli %65, %64 : vector<128x64xi32>
    %c1_i32_12 = arith.constant 1 : i32
    %67 = vector.broadcast %c1_i32_12 : i32 to vector<128x64xi32>
    %68 = arith.addi %66, %67 : vector<128x64xi32>
    %69 = arith.cmpi eq, %63, %68 : vector<128x64xi32>
    %70 = arith.extui %69 : vector<128x64xi1> to vector<128x64xi32>
    %71 = arith.sitofp %70 : vector<128x64xi32> to vector<128x64xf32>
    %c0 = arith.constant 0 : index
    %c0_13 = arith.constant 0 : index
    %c0_14 = arith.constant 0 : index
    %72 = vector.load %arg0[%c0, %c0_13, %c0_14] : memref<2x28x28xf32, #tpu.memory_space<vmem>>, vector<1x28x28xf32>
    %73 = vector.shape_cast %72 : vector<1x28x28xf32> to vector<28x28xf32>
    %74 = vector.extract_strided_slice %73 {offsets = [0, 0], sizes = [24, 28], strides = [1, 1]} : vector<28x28xf32> to vector<24x28xf32>
    %c0_15 = arith.constant 0 : index
    %c0_16 = arith.constant 0 : index
    %c0_17 = arith.constant 0 : index
    %75 = vector.load %arg1[%c0_15, %c0_16, %c0_17] : memref<5x28x144xf32, #tpu.memory_space<vmem>>, vector<1x28x144xf32>
    %76 = vector.shape_cast %75 : vector<1x28x144xf32> to vector<28x144xf32>
    %cst = arith.constant dense<0.000000e+00> : vector<24x144xf32>
    %77 = tpu.matmul %74, %76, %cst {dimension_numbers = #tpu.dot_dimension_numbers<[1], [0], [0], [1], [0, 0, 1, 1], [], []>} : vector<24x28xf32>, vector<28x144xf32>, vector<24x144xf32> -> vector<24x144xf32>
    %78 = vector.extract_strided_slice %73 {offsets = [1, 0], sizes = [24, 28], strides = [1, 1]} : vector<28x28xf32> to vector<24x28xf32>
    %c1 = arith.constant 1 : index
    %c0_18 = arith.constant 0 : index
    %c0_19 = arith.constant 0 : index
    %79 = vector.load %arg1[%c1, %c0_18, %c0_19] : memref<5x28x144xf32, #tpu.memory_space<vmem>>, vector<1x28x144xf32>
    %80 = vector.shape_cast %79 : vector<1x28x144xf32> to vector<28x144xf32>
    %cst_20 = arith.constant dense<0.000000e+00> : vector<24x144xf32>
    %81 = tpu.matmul %78, %80, %cst_20 {dimension_numbers = #tpu.dot_dimension_numbers<[1], [0], [0], [1], [0, 0, 1, 1], [], []>} : vector<24x28xf32>, vector<28x144xf32>, vector<24x144xf32> -> vector<24x144xf32>
    %82 = arith.addf %77, %81 : vector<24x144xf32>
    %83 = vector.extract_strided_slice %73 {offsets = [2, 0], sizes = [24, 28], strides = [1, 1]} : vector<28x28xf32> to vector<24x28xf32>
    %c2 = arith.constant 2 : index
    %c0_21 = arith.constant 0 : index
    %c0_22 = arith.constant 0 : index
    %84 = vector.load %arg1[%c2, %c0_21, %c0_22] : memref<5x28x144xf32, #tpu.memory_space<vmem>>, vector<1x28x144xf32>
    %85 = vector.shape_cast %84 : vector<1x28x144xf32> to vector<28x144xf32>
    %cst_23 = arith.constant dense<0.000000e+00> : vector<24x144xf32>
    %86 = tpu.matmul %83, %85, %cst_23 {dimension_numbers = #tpu.dot_dimension_numbers<[1], [0], [0], [1], [0, 0, 1, 1], [], []>} : vector<24x28xf32>, vector<28x144xf32>, vector<24x144xf32> -> vector<24x144xf32>
    %87 = arith.addf %82, %86 : vector<24x144xf32>
    %88 = vector.extract_strided_slice %73 {offsets = [3, 0], sizes = [24, 28], strides = [1, 1]} : vector<28x28xf32> to vector<24x28xf32>
    %c3 = arith.constant 3 : index
    %c0_24 = arith.constant 0 : index
    %c0_25 = arith.constant 0 : index
    %89 = vector.load %arg1[%c3, %c0_24, %c0_25] : memref<5x28x144xf32, #tpu.memory_space<vmem>>, vector<1x28x144xf32>
    %90 = vector.shape_cast %89 : vector<1x28x144xf32> to vector<28x144xf32>
    %cst_26 = arith.constant dense<0.000000e+00> : vector<24x144xf32>
    %91 = tpu.matmul %88, %90, %cst_26 {dimension_numbers = #tpu.dot_dimension_numbers<[1], [0], [0], [1], [0, 0, 1, 1], [], []>} : vector<24x28xf32>, vector<28x144xf32>, vector<24x144xf32> -> vector<24x144xf32>
    %92 = arith.addf %87, %91 : vector<24x144xf32>
    %93 = vector.extract_strided_slice %73 {offsets = [4, 0], sizes = [24, 28], strides = [1, 1]} : vector<28x28xf32> to vector<24x28xf32>
    %c4 = arith.constant 4 : index
    %c0_27 = arith.constant 0 : index
    %c0_28 = arith.constant 0 : index
    %94 = vector.load %arg1[%c4, %c0_27, %c0_28] : memref<5x28x144xf32, #tpu.memory_space<vmem>>, vector<1x28x144xf32>
    %95 = vector.shape_cast %94 : vector<1x28x144xf32> to vector<28x144xf32>
    %cst_29 = arith.constant dense<0.000000e+00> : vector<24x144xf32>
    %96 = tpu.matmul %93, %95, %cst_29 {dimension_numbers = #tpu.dot_dimension_numbers<[1], [0], [0], [1], [0, 0, 1, 1], [], []>} : vector<24x28xf32>, vector<28x144xf32>, vector<24x144xf32> -> vector<24x144xf32>
    %97 = arith.addf %92, %96 : vector<24x144xf32>
    %c0_30 = arith.constant 0 : index
    %c0_31 = arith.constant 0 : index
    %98 = vector.load %arg2[%c0_30, %c0_31] : memref<1x144xf32, #tpu.memory_space<vmem>>, vector<1x144xf32>
    %99 = vector.broadcast %98 : vector<1x144xf32> to vector<24x144xf32>
    %100 = arith.addf %97, %99 : vector<24x144xf32>
    %cst_32 = arith.constant 0.000000e+00 : f32
    %101 = vector.broadcast %cst_32 : f32 to vector<24x144xf32>
    %102 = arith.maximumf %100, %101 : vector<24x144xf32>
    %cst_33 = arith.constant dense<0.000000e+00> : vector<24x72xf32>
    %103 = tpu.matmul %102, %26, %cst_33 {dimension_numbers = #tpu.dot_dimension_numbers<[1], [0], [0], [1], [0, 0, 1, 1], [], []>} : vector<24x144xf32>, vector<144x72xf32>, vector<24x72xf32> -> vector<24x72xf32>
    %cst_34 = arith.constant dense<0.000000e+00> : vector<24x72xf32>
    %104 = tpu.matmul %102, %35, %cst_34 {dimension_numbers = #tpu.dot_dimension_numbers<[1], [0], [0], [1], [0, 0, 1, 1], [], []>} : vector<24x144xf32>, vector<144x72xf32>, vector<24x72xf32> -> vector<24x72xf32>
    %105 = arith.maximumf %103, %104 : vector<24x72xf32>
    %cst_35 = arith.constant dense<0.000000e+00> : vector<12x72xf32>
    %106 = tpu.matmul %8, %105, %cst_35 {dimension_numbers = #tpu.dot_dimension_numbers<[1], [0], [0], [1], [0, 0, 1, 1], [], []>} : vector<12x24xf32>, vector<24x72xf32>, vector<12x72xf32> -> vector<12x72xf32>
    %cst_36 = arith.constant dense<0.000000e+00> : vector<12x72xf32>
    %107 = tpu.matmul %17, %105, %cst_36 {dimension_numbers = #tpu.dot_dimension_numbers<[1], [0], [0], [1], [0, 0, 1, 1], [], []>} : vector<12x24xf32>, vector<24x72xf32>, vector<12x72xf32> -> vector<12x72xf32>
    %108 = arith.maximumf %106, %107 : vector<12x72xf32>
    %109 = vector.extract_strided_slice %108 {offsets = [0, 0], sizes = [8, 72], strides = [1, 1]} : vector<12x72xf32> to vector<8x72xf32>
    %c0_37 = arith.constant 0 : index
    %c0_38 = arith.constant 0 : index
    %c0_39 = arith.constant 0 : index
    %110 = vector.load %arg3[%c0_37, %c0_38, %c0_39] : memref<5x72x128xf32, #tpu.memory_space<vmem>>, vector<1x72x128xf32>
    %111 = vector.shape_cast %110 : vector<1x72x128xf32> to vector<72x128xf32>
    %cst_40 = arith.constant dense<0.000000e+00> : vector<8x128xf32>
    %112 = tpu.matmul %109, %111, %cst_40 {dimension_numbers = #tpu.dot_dimension_numbers<[1], [0], [0], [1], [0, 0, 1, 1], [], []>} : vector<8x72xf32>, vector<72x128xf32>, vector<8x128xf32> -> vector<8x128xf32>
    %113 = vector.extract_strided_slice %108 {offsets = [1, 0], sizes = [8, 72], strides = [1, 1]} : vector<12x72xf32> to vector<8x72xf32>
    %c1_41 = arith.constant 1 : index
    %c0_42 = arith.constant 0 : index
    %c0_43 = arith.constant 0 : index
    %114 = vector.load %arg3[%c1_41, %c0_42, %c0_43] : memref<5x72x128xf32, #tpu.memory_space<vmem>>, vector<1x72x128xf32>
    %115 = vector.shape_cast %114 : vector<1x72x128xf32> to vector<72x128xf32>
    %cst_44 = arith.constant dense<0.000000e+00> : vector<8x128xf32>
    %116 = tpu.matmul %113, %115, %cst_44 {dimension_numbers = #tpu.dot_dimension_numbers<[1], [0], [0], [1], [0, 0, 1, 1], [], []>} : vector<8x72xf32>, vector<72x128xf32>, vector<8x128xf32> -> vector<8x128xf32>
    %117 = arith.addf %112, %116 : vector<8x128xf32>
    %118 = vector.extract_strided_slice %108 {offsets = [2, 0], sizes = [8, 72], strides = [1, 1]} : vector<12x72xf32> to vector<8x72xf32>
    %c2_45 = arith.constant 2 : index
    %c0_46 = arith.constant 0 : index
    %c0_47 = arith.constant 0 : index
    %119 = vector.load %arg3[%c2_45, %c0_46, %c0_47] : memref<5x72x128xf32, #tpu.memory_space<vmem>>, vector<1x72x128xf32>
    %120 = vector.shape_cast %119 : vector<1x72x128xf32> to vector<72x128xf32>
    %cst_48 = arith.constant dense<0.000000e+00> : vector<8x128xf32>
    %121 = tpu.matmul %118, %120, %cst_48 {dimension_numbers = #tpu.dot_dimension_numbers<[1], [0], [0], [1], [0, 0, 1, 1], [], []>} : vector<8x72xf32>, vector<72x128xf32>, vector<8x128xf32> -> vector<8x128xf32>
    %122 = arith.addf %117, %121 : vector<8x128xf32>
    %123 = vector.extract_strided_slice %108 {offsets = [3, 0], sizes = [8, 72], strides = [1, 1]} : vector<12x72xf32> to vector<8x72xf32>
    %c3_49 = arith.constant 3 : index
    %c0_50 = arith.constant 0 : index
    %c0_51 = arith.constant 0 : index
    %124 = vector.load %arg3[%c3_49, %c0_50, %c0_51] : memref<5x72x128xf32, #tpu.memory_space<vmem>>, vector<1x72x128xf32>
    %125 = vector.shape_cast %124 : vector<1x72x128xf32> to vector<72x128xf32>
    %cst_52 = arith.constant dense<0.000000e+00> : vector<8x128xf32>
    %126 = tpu.matmul %123, %125, %cst_52 {dimension_numbers = #tpu.dot_dimension_numbers<[1], [0], [0], [1], [0, 0, 1, 1], [], []>} : vector<8x72xf32>, vector<72x128xf32>, vector<8x128xf32> -> vector<8x128xf32>
    %127 = arith.addf %122, %126 : vector<8x128xf32>
    %128 = vector.extract_strided_slice %108 {offsets = [4, 0], sizes = [8, 72], strides = [1, 1]} : vector<12x72xf32> to vector<8x72xf32>
    %c4_53 = arith.constant 4 : index
    %c0_54 = arith.constant 0 : index
    %c0_55 = arith.constant 0 : index
    %129 = vector.load %arg3[%c4_53, %c0_54, %c0_55] : memref<5x72x128xf32, #tpu.memory_space<vmem>>, vector<1x72x128xf32>
    %130 = vector.shape_cast %129 : vector<1x72x128xf32> to vector<72x128xf32>
    %cst_56 = arith.constant dense<0.000000e+00> : vector<8x128xf32>
    %131 = tpu.matmul %128, %130, %cst_56 {dimension_numbers = #tpu.dot_dimension_numbers<[1], [0], [0], [1], [0, 0, 1, 1], [], []>} : vector<8x72xf32>, vector<72x128xf32>, vector<8x128xf32> -> vector<8x128xf32>
    %132 = arith.addf %127, %131 : vector<8x128xf32>
    %c0_57 = arith.constant 0 : index
    %c0_58 = arith.constant 0 : index
    %133 = vector.load %arg4[%c0_57, %c0_58] : memref<1x128xf32, #tpu.memory_space<vmem>>, vector<1x128xf32>
    %134 = vector.broadcast %133 : vector<1x128xf32> to vector<8x128xf32>
    %135 = arith.addf %132, %134 : vector<8x128xf32>
    %cst_59 = arith.constant 0.000000e+00 : f32
    %136 = vector.broadcast %cst_59 : f32 to vector<8x128xf32>
    %137 = arith.maximumf %135, %136 : vector<8x128xf32>
    %cst_60 = arith.constant dense<0.000000e+00> : vector<8x64xf32>
    %138 = tpu.matmul %137, %62, %cst_60 {dimension_numbers = #tpu.dot_dimension_numbers<[1], [0], [0], [1], [0, 0, 1, 1], [], []>} : vector<8x128xf32>, vector<128x64xf32>, vector<8x64xf32> -> vector<8x64xf32>
    %cst_61 = arith.constant dense<0.000000e+00> : vector<8x64xf32>
    %139 = tpu.matmul %137, %71, %cst_61 {dimension_numbers = #tpu.dot_dimension_numbers<[1], [0], [0], [1], [0, 0, 1, 1], [], []>} : vector<8x128xf32>, vector<128x64xf32>, vector<8x64xf32> -> vector<8x64xf32>
    %140 = arith.maximumf %138, %139 : vector<8x64xf32>
    %cst_62 = arith.constant dense<0.000000e+00> : vector<4x64xf32>
    %141 = tpu.matmul %44, %140, %cst_62 {dimension_numbers = #tpu.dot_dimension_numbers<[1], [0], [0], [1], [0, 0, 1, 1], [], []>} : vector<4x8xf32>, vector<8x64xf32>, vector<4x64xf32> -> vector<4x64xf32>
    %cst_63 = arith.constant dense<0.000000e+00> : vector<4x64xf32>
    %142 = tpu.matmul %53, %140, %cst_63 {dimension_numbers = #tpu.dot_dimension_numbers<[1], [0], [0], [1], [0, 0, 1, 1], [], []>} : vector<4x8xf32>, vector<8x64xf32>, vector<4x64xf32> -> vector<4x64xf32>
    %143 = arith.maximumf %141, %142 : vector<4x64xf32>
    %144 = vector.extract_strided_slice %143 {offsets = [0, 0], sizes = [1, 64], strides = [1, 1]} : vector<4x64xf32> to vector<1x64xf32>
    %145 = vector.extract_strided_slice %143 {offsets = [1, 0], sizes = [1, 64], strides = [1, 1]} : vector<4x64xf32> to vector<1x64xf32>
    %146 = vector.extract_strided_slice %143 {offsets = [2, 0], sizes = [1, 64], strides = [1, 1]} : vector<4x64xf32> to vector<1x64xf32>
    %147 = vector.extract_strided_slice %143 {offsets = [3, 0], sizes = [1, 64], strides = [1, 1]} : vector<4x64xf32> to vector<1x64xf32>
    %148 = tpu.concatenate %144, %145, %146, %147 in 1 : vector<1x64xf32>, vector<1x64xf32>, vector<1x64xf32>, vector<1x64xf32> -> vector<1x256xf32>
    %c1_64 = arith.constant 1 : index
    %c0_65 = arith.constant 0 : index
    %c0_66 = arith.constant 0 : index
    %149 = vector.load %arg0[%c1_64, %c0_65, %c0_66] : memref<2x28x28xf32, #tpu.memory_space<vmem>>, vector<1x28x28xf32>
    %150 = vector.shape_cast %149 : vector<1x28x28xf32> to vector<28x28xf32>
    %151 = vector.extract_strided_slice %150 {offsets = [0, 0], sizes = [24, 28], strides = [1, 1]} : vector<28x28xf32> to vector<24x28xf32>
    %c0_67 = arith.constant 0 : index
    %c0_68 = arith.constant 0 : index
    %c0_69 = arith.constant 0 : index
    %152 = vector.load %arg1[%c0_67, %c0_68, %c0_69] : memref<5x28x144xf32, #tpu.memory_space<vmem>>, vector<1x28x144xf32>
    %153 = vector.shape_cast %152 : vector<1x28x144xf32> to vector<28x144xf32>
    %cst_70 = arith.constant dense<0.000000e+00> : vector<24x144xf32>
    %154 = tpu.matmul %151, %153, %cst_70 {dimension_numbers = #tpu.dot_dimension_numbers<[1], [0], [0], [1], [0, 0, 1, 1], [], []>} : vector<24x28xf32>, vector<28x144xf32>, vector<24x144xf32> -> vector<24x144xf32>
    %155 = vector.extract_strided_slice %150 {offsets = [1, 0], sizes = [24, 28], strides = [1, 1]} : vector<28x28xf32> to vector<24x28xf32>
    %c1_71 = arith.constant 1 : index
    %c0_72 = arith.constant 0 : index
    %c0_73 = arith.constant 0 : index
    %156 = vector.load %arg1[%c1_71, %c0_72, %c0_73] : memref<5x28x144xf32, #tpu.memory_space<vmem>>, vector<1x28x144xf32>
    %157 = vector.shape_cast %156 : vector<1x28x144xf32> to vector<28x144xf32>
    %cst_74 = arith.constant dense<0.000000e+00> : vector<24x144xf32>
    %158 = tpu.matmul %155, %157, %cst_74 {dimension_numbers = #tpu.dot_dimension_numbers<[1], [0], [0], [1], [0, 0, 1, 1], [], []>} : vector<24x28xf32>, vector<28x144xf32>, vector<24x144xf32> -> vector<24x144xf32>
    %159 = arith.addf %154, %158 : vector<24x144xf32>
    %160 = vector.extract_strided_slice %150 {offsets = [2, 0], sizes = [24, 28], strides = [1, 1]} : vector<28x28xf32> to vector<24x28xf32>
    %c2_75 = arith.constant 2 : index
    %c0_76 = arith.constant 0 : index
    %c0_77 = arith.constant 0 : index
    %161 = vector.load %arg1[%c2_75, %c0_76, %c0_77] : memref<5x28x144xf32, #tpu.memory_space<vmem>>, vector<1x28x144xf32>
    %162 = vector.shape_cast %161 : vector<1x28x144xf32> to vector<28x144xf32>
    %cst_78 = arith.constant dense<0.000000e+00> : vector<24x144xf32>
    %163 = tpu.matmul %160, %162, %cst_78 {dimension_numbers = #tpu.dot_dimension_numbers<[1], [0], [0], [1], [0, 0, 1, 1], [], []>} : vector<24x28xf32>, vector<28x144xf32>, vector<24x144xf32> -> vector<24x144xf32>
    %164 = arith.addf %159, %163 : vector<24x144xf32>
    %165 = vector.extract_strided_slice %150 {offsets = [3, 0], sizes = [24, 28], strides = [1, 1]} : vector<28x28xf32> to vector<24x28xf32>
    %c3_79 = arith.constant 3 : index
    %c0_80 = arith.constant 0 : index
    %c0_81 = arith.constant 0 : index
    %166 = vector.load %arg1[%c3_79, %c0_80, %c0_81] : memref<5x28x144xf32, #tpu.memory_space<vmem>>, vector<1x28x144xf32>
    %167 = vector.shape_cast %166 : vector<1x28x144xf32> to vector<28x144xf32>
    %cst_82 = arith.constant dense<0.000000e+00> : vector<24x144xf32>
    %168 = tpu.matmul %165, %167, %cst_82 {dimension_numbers = #tpu.dot_dimension_numbers<[1], [0], [0], [1], [0, 0, 1, 1], [], []>} : vector<24x28xf32>, vector<28x144xf32>, vector<24x144xf32> -> vector<24x144xf32>
    %169 = arith.addf %164, %168 : vector<24x144xf32>
    %170 = vector.extract_strided_slice %150 {offsets = [4, 0], sizes = [24, 28], strides = [1, 1]} : vector<28x28xf32> to vector<24x28xf32>
    %c4_83 = arith.constant 4 : index
    %c0_84 = arith.constant 0 : index
    %c0_85 = arith.constant 0 : index
    %171 = vector.load %arg1[%c4_83, %c0_84, %c0_85] : memref<5x28x144xf32, #tpu.memory_space<vmem>>, vector<1x28x144xf32>
    %172 = vector.shape_cast %171 : vector<1x28x144xf32> to vector<28x144xf32>
    %cst_86 = arith.constant dense<0.000000e+00> : vector<24x144xf32>
    %173 = tpu.matmul %170, %172, %cst_86 {dimension_numbers = #tpu.dot_dimension_numbers<[1], [0], [0], [1], [0, 0, 1, 1], [], []>} : vector<24x28xf32>, vector<28x144xf32>, vector<24x144xf32> -> vector<24x144xf32>
    %174 = arith.addf %169, %173 : vector<24x144xf32>
    %c0_87 = arith.constant 0 : index
    %c0_88 = arith.constant 0 : index
    %175 = vector.load %arg2[%c0_87, %c0_88] : memref<1x144xf32, #tpu.memory_space<vmem>>, vector<1x144xf32>
    %176 = vector.broadcast %175 : vector<1x144xf32> to vector<24x144xf32>
    %177 = arith.addf %174, %176 : vector<24x144xf32>
    %cst_89 = arith.constant 0.000000e+00 : f32
    %178 = vector.broadcast %cst_89 : f32 to vector<24x144xf32>
    %179 = arith.maximumf %177, %178 : vector<24x144xf32>
    %cst_90 = arith.constant dense<0.000000e+00> : vector<24x72xf32>
    %180 = tpu.matmul %179, %26, %cst_90 {dimension_numbers = #tpu.dot_dimension_numbers<[1], [0], [0], [1], [0, 0, 1, 1], [], []>} : vector<24x144xf32>, vector<144x72xf32>, vector<24x72xf32> -> vector<24x72xf32>
    %cst_91 = arith.constant dense<0.000000e+00> : vector<24x72xf32>
    %181 = tpu.matmul %179, %35, %cst_91 {dimension_numbers = #tpu.dot_dimension_numbers<[1], [0], [0], [1], [0, 0, 1, 1], [], []>} : vector<24x144xf32>, vector<144x72xf32>, vector<24x72xf32> -> vector<24x72xf32>
    %182 = arith.maximumf %180, %181 : vector<24x72xf32>
    %cst_92 = arith.constant dense<0.000000e+00> : vector<12x72xf32>
    %183 = tpu.matmul %8, %182, %cst_92 {dimension_numbers = #tpu.dot_dimension_numbers<[1], [0], [0], [1], [0, 0, 1, 1], [], []>} : vector<12x24xf32>, vector<24x72xf32>, vector<12x72xf32> -> vector<12x72xf32>
    %cst_93 = arith.constant dense<0.000000e+00> : vector<12x72xf32>
    %184 = tpu.matmul %17, %182, %cst_93 {dimension_numbers = #tpu.dot_dimension_numbers<[1], [0], [0], [1], [0, 0, 1, 1], [], []>} : vector<12x24xf32>, vector<24x72xf32>, vector<12x72xf32> -> vector<12x72xf32>
    %185 = arith.maximumf %183, %184 : vector<12x72xf32>
    %186 = vector.extract_strided_slice %185 {offsets = [0, 0], sizes = [8, 72], strides = [1, 1]} : vector<12x72xf32> to vector<8x72xf32>
    %c0_94 = arith.constant 0 : index
    %c0_95 = arith.constant 0 : index
    %c0_96 = arith.constant 0 : index
    %187 = vector.load %arg3[%c0_94, %c0_95, %c0_96] : memref<5x72x128xf32, #tpu.memory_space<vmem>>, vector<1x72x128xf32>
    %188 = vector.shape_cast %187 : vector<1x72x128xf32> to vector<72x128xf32>
    %cst_97 = arith.constant dense<0.000000e+00> : vector<8x128xf32>
    %189 = tpu.matmul %186, %188, %cst_97 {dimension_numbers = #tpu.dot_dimension_numbers<[1], [0], [0], [1], [0, 0, 1, 1], [], []>} : vector<8x72xf32>, vector<72x128xf32>, vector<8x128xf32> -> vector<8x128xf32>
    %190 = vector.extract_strided_slice %185 {offsets = [1, 0], sizes = [8, 72], strides = [1, 1]} : vector<12x72xf32> to vector<8x72xf32>
    %c1_98 = arith.constant 1 : index
    %c0_99 = arith.constant 0 : index
    %c0_100 = arith.constant 0 : index
    %191 = vector.load %arg3[%c1_98, %c0_99, %c0_100] : memref<5x72x128xf32, #tpu.memory_space<vmem>>, vector<1x72x128xf32>
    %192 = vector.shape_cast %191 : vector<1x72x128xf32> to vector<72x128xf32>
    %cst_101 = arith.constant dense<0.000000e+00> : vector<8x128xf32>
    %193 = tpu.matmul %190, %192, %cst_101 {dimension_numbers = #tpu.dot_dimension_numbers<[1], [0], [0], [1], [0, 0, 1, 1], [], []>} : vector<8x72xf32>, vector<72x128xf32>, vector<8x128xf32> -> vector<8x128xf32>
    %194 = arith.addf %189, %193 : vector<8x128xf32>
    %195 = vector.extract_strided_slice %185 {offsets = [2, 0], sizes = [8, 72], strides = [1, 1]} : vector<12x72xf32> to vector<8x72xf32>
    %c2_102 = arith.constant 2 : index
    %c0_103 = arith.constant 0 : index
    %c0_104 = arith.constant 0 : index
    %196 = vector.load %arg3[%c2_102, %c0_103, %c0_104] : memref<5x72x128xf32, #tpu.memory_space<vmem>>, vector<1x72x128xf32>
    %197 = vector.shape_cast %196 : vector<1x72x128xf32> to vector<72x128xf32>
    %cst_105 = arith.constant dense<0.000000e+00> : vector<8x128xf32>
    %198 = tpu.matmul %195, %197, %cst_105 {dimension_numbers = #tpu.dot_dimension_numbers<[1], [0], [0], [1], [0, 0, 1, 1], [], []>} : vector<8x72xf32>, vector<72x128xf32>, vector<8x128xf32> -> vector<8x128xf32>
    %199 = arith.addf %194, %198 : vector<8x128xf32>
    %200 = vector.extract_strided_slice %185 {offsets = [3, 0], sizes = [8, 72], strides = [1, 1]} : vector<12x72xf32> to vector<8x72xf32>
    %c3_106 = arith.constant 3 : index
    %c0_107 = arith.constant 0 : index
    %c0_108 = arith.constant 0 : index
    %201 = vector.load %arg3[%c3_106, %c0_107, %c0_108] : memref<5x72x128xf32, #tpu.memory_space<vmem>>, vector<1x72x128xf32>
    %202 = vector.shape_cast %201 : vector<1x72x128xf32> to vector<72x128xf32>
    %cst_109 = arith.constant dense<0.000000e+00> : vector<8x128xf32>
    %203 = tpu.matmul %200, %202, %cst_109 {dimension_numbers = #tpu.dot_dimension_numbers<[1], [0], [0], [1], [0, 0, 1, 1], [], []>} : vector<8x72xf32>, vector<72x128xf32>, vector<8x128xf32> -> vector<8x128xf32>
    %204 = arith.addf %199, %203 : vector<8x128xf32>
    %205 = vector.extract_strided_slice %185 {offsets = [4, 0], sizes = [8, 72], strides = [1, 1]} : vector<12x72xf32> to vector<8x72xf32>
    %c4_110 = arith.constant 4 : index
    %c0_111 = arith.constant 0 : index
    %c0_112 = arith.constant 0 : index
    %206 = vector.load %arg3[%c4_110, %c0_111, %c0_112] : memref<5x72x128xf32, #tpu.memory_space<vmem>>, vector<1x72x128xf32>
    %207 = vector.shape_cast %206 : vector<1x72x128xf32> to vector<72x128xf32>
    %cst_113 = arith.constant dense<0.000000e+00> : vector<8x128xf32>
    %208 = tpu.matmul %205, %207, %cst_113 {dimension_numbers = #tpu.dot_dimension_numbers<[1], [0], [0], [1], [0, 0, 1, 1], [], []>} : vector<8x72xf32>, vector<72x128xf32>, vector<8x128xf32> -> vector<8x128xf32>
    %209 = arith.addf %204, %208 : vector<8x128xf32>
    %c0_114 = arith.constant 0 : index
    %c0_115 = arith.constant 0 : index
    %210 = vector.load %arg4[%c0_114, %c0_115] : memref<1x128xf32, #tpu.memory_space<vmem>>, vector<1x128xf32>
    %211 = vector.broadcast %210 : vector<1x128xf32> to vector<8x128xf32>
    %212 = arith.addf %209, %211 : vector<8x128xf32>
    %cst_116 = arith.constant 0.000000e+00 : f32
    %213 = vector.broadcast %cst_116 : f32 to vector<8x128xf32>
    %214 = arith.maximumf %212, %213 : vector<8x128xf32>
    %cst_117 = arith.constant dense<0.000000e+00> : vector<8x64xf32>
    %215 = tpu.matmul %214, %62, %cst_117 {dimension_numbers = #tpu.dot_dimension_numbers<[1], [0], [0], [1], [0, 0, 1, 1], [], []>} : vector<8x128xf32>, vector<128x64xf32>, vector<8x64xf32> -> vector<8x64xf32>
    %cst_118 = arith.constant dense<0.000000e+00> : vector<8x64xf32>
    %216 = tpu.matmul %214, %71, %cst_118 {dimension_numbers = #tpu.dot_dimension_numbers<[1], [0], [0], [1], [0, 0, 1, 1], [], []>} : vector<8x128xf32>, vector<128x64xf32>, vector<8x64xf32> -> vector<8x64xf32>
    %217 = arith.maximumf %215, %216 : vector<8x64xf32>
    %cst_119 = arith.constant dense<0.000000e+00> : vector<4x64xf32>
    %218 = tpu.matmul %44, %217, %cst_119 {dimension_numbers = #tpu.dot_dimension_numbers<[1], [0], [0], [1], [0, 0, 1, 1], [], []>} : vector<4x8xf32>, vector<8x64xf32>, vector<4x64xf32> -> vector<4x64xf32>
    %cst_120 = arith.constant dense<0.000000e+00> : vector<4x64xf32>
    %219 = tpu.matmul %53, %217, %cst_120 {dimension_numbers = #tpu.dot_dimension_numbers<[1], [0], [0], [1], [0, 0, 1, 1], [], []>} : vector<4x8xf32>, vector<8x64xf32>, vector<4x64xf32> -> vector<4x64xf32>
    %220 = arith.maximumf %218, %219 : vector<4x64xf32>
    %221 = vector.extract_strided_slice %220 {offsets = [0, 0], sizes = [1, 64], strides = [1, 1]} : vector<4x64xf32> to vector<1x64xf32>
    %222 = vector.extract_strided_slice %220 {offsets = [1, 0], sizes = [1, 64], strides = [1, 1]} : vector<4x64xf32> to vector<1x64xf32>
    %223 = vector.extract_strided_slice %220 {offsets = [2, 0], sizes = [1, 64], strides = [1, 1]} : vector<4x64xf32> to vector<1x64xf32>
    %224 = vector.extract_strided_slice %220 {offsets = [3, 0], sizes = [1, 64], strides = [1, 1]} : vector<4x64xf32> to vector<1x64xf32>
    %225 = tpu.concatenate %221, %222, %223, %224 in 1 : vector<1x64xf32>, vector<1x64xf32>, vector<1x64xf32>, vector<1x64xf32> -> vector<1x256xf32>
    %226 = tpu.concatenate %148, %225 in 0 : vector<1x256xf32>, vector<1x256xf32> -> vector<2x256xf32>
    %c0_121 = arith.constant 0 : index
    %c0_122 = arith.constant 0 : index
    %227 = vector.load %arg5[%c0_121, %c0_122] : memref<256x128xf32, #tpu.memory_space<vmem>>, vector<256x128xf32>
    %cst_123 = arith.constant dense<0.000000e+00> : vector<2x128xf32>
    %228 = tpu.matmul %226, %227, %cst_123 {dimension_numbers = #tpu.dot_dimension_numbers<[1], [0], [0], [1], [0, 0, 1, 1], [], []>} : vector<2x256xf32>, vector<256x128xf32>, vector<2x128xf32> -> vector<2x128xf32>
    %c0_124 = arith.constant 0 : index
    %c0_125 = arith.constant 0 : index
    %229 = vector.load %arg6[%c0_124, %c0_125] : memref<1x128xf32, #tpu.memory_space<vmem>>, vector<1x128xf32>
    %230 = vector.broadcast %229 : vector<1x128xf32> to vector<2x128xf32>
    %231 = arith.addf %228, %230 : vector<2x128xf32>
    %cst_126 = arith.constant 0.000000e+00 : f32
    %232 = vector.broadcast %cst_126 : f32 to vector<2x128xf32>
    %233 = arith.maximumf %231, %232 : vector<2x128xf32>
    %c0_127 = arith.constant 0 : index
    %c0_128 = arith.constant 0 : index
    %234 = vector.load %arg7[%c0_127, %c0_128] : memref<128x128xf32, #tpu.memory_space<vmem>>, vector<128x128xf32>
    %cst_129 = arith.constant dense<0.000000e+00> : vector<2x128xf32>
    %235 = tpu.matmul %233, %234, %cst_129 {dimension_numbers = #tpu.dot_dimension_numbers<[1], [0], [0], [1], [0, 0, 1, 1], [], []>} : vector<2x128xf32>, vector<128x128xf32>, vector<2x128xf32> -> vector<2x128xf32>
    %c0_130 = arith.constant 0 : index
    %c0_131 = arith.constant 0 : index
    %236 = vector.load %arg8[%c0_130, %c0_131] : memref<1x128xf32, #tpu.memory_space<vmem>>, vector<1x128xf32>
    %237 = vector.broadcast %236 : vector<1x128xf32> to vector<2x128xf32>
    %238 = arith.addf %235, %237 : vector<2x128xf32>
    %cst_132 = arith.constant 0.000000e+00 : f32
    %239 = vector.broadcast %cst_132 : f32 to vector<2x128xf32>
    %240 = arith.maximumf %238, %239 : vector<2x128xf32>
    %c0_133 = arith.constant 0 : index
    %c0_134 = arith.constant 0 : index
    %241 = vector.load %arg9[%c0_133, %c0_134] : memref<128x128xf32, #tpu.memory_space<vmem>>, vector<128x128xf32>
    %cst_135 = arith.constant dense<0.000000e+00> : vector<2x128xf32>
    %242 = tpu.matmul %240, %241, %cst_135 {dimension_numbers = #tpu.dot_dimension_numbers<[1], [0], [0], [1], [0, 0, 1, 1], [], []>} : vector<2x128xf32>, vector<128x128xf32>, vector<2x128xf32> -> vector<2x128xf32>
    %c0_136 = arith.constant 0 : index
    %c0_137 = arith.constant 0 : index
    %243 = vector.load %arg10[%c0_136, %c0_137] : memref<1x128xf32, #tpu.memory_space<vmem>>, vector<1x128xf32>
    %244 = vector.broadcast %243 : vector<1x128xf32> to vector<2x128xf32>
    %245 = arith.addf %242, %244 : vector<2x128xf32>
    %c0_138 = arith.constant 0 : index
    %c0_139 = arith.constant 0 : index
    %246 = vector.load %arg11[%c0_138, %c0_139] : memref<2x128xf32, #tpu.memory_space<vmem>>, vector<2x128xf32>
    tpu.vector_store %arg11[%c0_138, %c0_139], %245 {strides = array<i32>} : memref<2x128xf32, #tpu.memory_space<vmem>>, vector<2x128xf32>,
    return
  }
}

</mosaic_0001>

<llo_original>
// kernel: net_forward.1
$region0: #{net_forward.1}
  #allocation0 [shape = 'u32[]', space=smem, size = 0x4, offset = 0x4, fixed_abs, tag = 'smem constant byte address 0x4 - core index']
  #allocation1 [shape = 'u32[144,128]{1,0:T(1,128)}', space=vmem, size = 0x12000, scoped, tag = 'internal scratch']
  %s0 = inlined_call_operand.vmem [shape: f32[2,28,28], index: 0, kind: input, shape index: {}]
  %s1 = inlined_call_operand.hbm [shape: f32[5,28,144], index: 1, kind: input, shape index: {}]
  %s2 = inlined_call_operand.vmem [shape: f32[1,144], index: 2, kind: input, shape index: {}]
  %s3 = inlined_call_operand.hbm [shape: f32[5,72,128], index: 3, kind: input, shape index: {}]
  %s4 = inlined_call_operand.vmem [shape: f32[1,128], index: 4, kind: input, shape index: {}]
  %s5 = inlined_call_operand.vmem [shape: f32[256,128], index: 5, kind: input, shape index: {}]
  %s6 = inlined_call_operand.vmem [shape: f32[1,128], index: 6, kind: input, shape index: {}]
  %s7 = inlined_call_operand.hbm [shape: f32[128,128], index: 7, kind: input, shape index: {}]
  %s8 = inlined_call_operand.vmem [shape: f32[1,128], index: 8, kind: input, shape index: {}]
  %s9 = inlined_call_operand.hbm [shape: f32[128,128], index: 9, kind: input, shape index: {}]
  %s10 = inlined_call_operand.vmem [shape: f32[1,128], index: 10, kind: input, shape index: {}]
  %s11 = inlined_call_operand.hbm [shape: f32[2,128], index: 11, kind: output, shape index: {}]
  %s12 = sld [smem:[#allocation0]]
  $region70: #{net_forward.1} parent=0
    _
  %s14 = ssub.s32 1, %s12
  %s15 = scalar_select 0, %s14, %s12
  $region1: #{net_forward.1} parent=0
    #allocation2 [shape = 'u8[163840]{0}', space=vmem, size = 0x28000, scoped, tag = 'input window, operand 1, single buffered']
    #allocation3 [shape = 's32[1]{0}', space=sflag, size = 0x4, scoped, tag = 'scoped memory for net_forward.1']
    #allocation4 [shape = 's32[1]{0}', space=sflag, size = 0x4, scoped, tag = 'scoped memory for net_forward.1']
    #allocation5 [shape = 'u8[184320]{0}', space=vmem, size = 0x2d000, scoped, tag = 'input window, operand 3, single buffered']
    #allocation6 [shape = 's32[1]{0}', space=sflag, size = 0x4, scoped, tag = 'scoped memory for net_forward.1']
    #allocation7 [shape = 'u8[65536]{0}', space=vmem, size = 0x10000, scoped, tag = 'input window, operand 7, single buffered']
    #allocation8 [shape = 'u8[65536]{0}', space=vmem, size = 0x10000, scoped, tag = 'input window, operand 9, single buffered']
    #allocation9 [shape = 's32[1]{0}', space=sflag, size = 0x4, scoped, tag = 'scoped memory for net_forward.1']
    #allocation10 [shape = 'u8[1024]{0}', space=vmem, size = 0x400, scoped, tag = 'output window, operand 0, single buffered']
    %16 = vsyncpa [#allocation3], 0
    %17 = vsyncpa [#allocation6], 0
    %18 = vsyncpa [#allocation9], 0
    %19 = vsyncpa [#allocation4], 0
    // Predicated region
    $region2: #{net_forward.1} parent=1 // pred_check
      _
    $region3: #{net_forward.1} parent=1 // pred_check_branch
      %21 = sbr.rel (0) target = $region5
    $region4: #{net_forward.1} parent=1 // pred_region
      _
    $region5: #{net_forward.1} parent=1 // pred_fallthru
      _
    // Predicated region
    $region6: #{net_forward.1} parent=1 // pred_check
      _
    $region7: #{net_forward.1} parent=1 // pred_check_branch
      %23 = sbr.rel (0) target = $region9
    $region8: #{net_forward.1} parent=1 // pred_region
      %s25 = ssub.s32 5120, 5120
      %26 = vsyncadd [#allocation3], %s25
      %s27 = sshll.u32 [#allocation2], 4
      %s28 = int_to_ptr.vmem [resolvable:$true] %s27
      %33 = dma.hbm_to_vmem [thread:$0]  %s1, 5120, %s28, [#allocation3], 256, 256, 16
    $region9: #{net_forward.1} parent=1 // pred_fallthru
      _
    // Predicated region
    $region10: #{net_forward.1} parent=1 // pred_check
      _
    $region11: #{net_forward.1} parent=1 // pred_check_branch
      %35 = sbr.rel (0) target = $region13
    $region12: #{net_forward.1} parent=1 // pred_region
      _
    $region13: #{net_forward.1} parent=1 // pred_fallthru
      _
    // Predicated region
    $region14: #{net_forward.1} parent=1 // pred_check
      _
    $region15: #{net_forward.1} parent=1 // pred_check_branch
      %37 = sbr.rel (0) target = $region17
    $region16: #{net_forward.1} parent=1 // pred_region
      %s39 = ssub.s32 5760, 5760
      %40 = vsyncadd [#allocation6], %s39
      %s41 = sshll.u32 [#allocation5], 4
      %s42 = int_to_ptr.vmem [resolvable:$true] %s41
      %47 = dma.hbm_to_vmem [thread:$0]  %s3, 5760, %s42, [#allocation6], 128, 128, 8
    $region17: #{net_forward.1} parent=1 // pred_fallthru
      _
    // Predicated region
    $region18: #{net_forward.1} parent=1 // pred_check
      _
    $region19: #{net_forward.1} parent=1 // pred_check_branch
      %49 = sbr.rel (0) target = $region21
    $region20: #{net_forward.1} parent=1 // pred_region
      _
    $region21: #{net_forward.1} parent=1 // pred_fallthru
      _
    // Predicated region
    $region22: #{net_forward.1} parent=1 // pred_check
      _
    $region23: #{net_forward.1} parent=1 // pred_check_branch
      %51 = sbr.rel (0) target = $region25
    $region24: #{net_forward.1} parent=1 // pred_region
      _
    $region25: #{net_forward.1} parent=1 // pred_fallthru
      _
    // Predicated region
    $region26: #{net_forward.1} parent=1 // pred_check
      _
    $region27: #{net_forward.1} parent=1 // pred_check_branch
      %53 = sbr.rel (0) target = $region29
    $region28: #{net_forward.1} parent=1 // pred_region
      _
    $region29: #{net_forward.1} parent=1 // pred_fallthru
      _
    // Predicated region
    $region30: #{net_forward.1} parent=1 // pred_check
      _
    $region31: #{net_forward.1} parent=1 // pred_check_branch
      %55 = sbr.rel (0) target = $region33
    $region32: #{net_forward.1} parent=1 // pred_region
      %s57 = ssub.s32 2048, 2048
      %58 = vsyncadd [#allocation6], %s57
      %s59 = sshll.u32 [#allocation7], 4
      %s60 = int_to_ptr.vmem [resolvable:$true] %s59
      %65 = dma.hbm_to_vmem [thread:$0]  %s7, 2048, %s60, [#allocation6], 128, 128, 8
    $region33: #{net_forward.1} parent=1 // pred_fallthru
      _
    // Predicated region
    $region34: #{net_forward.1} parent=1 // pred_check
      _
    $region35: #{net_forward.1} parent=1 // pred_check_branch
      %67 = sbr.rel (0) target = $region37
    $region36: #{net_forward.1} parent=1 // pred_region
      _
    $region37: #{net_forward.1} parent=1 // pred_fallthru
      _
    // Predicated region
    $region38: #{net_forward.1} parent=1 // pred_check
      _
    $region39: #{net_forward.1} parent=1 // pred_check_branch
      %69 = sbr.rel (0) target = $region41
    $region40: #{net_forward.1} parent=1 // pred_region
      %s71 = ssub.s32 2048, 2048
      %72 = vsyncadd [#allocation9], %s71
      %s73 = sshll.u32 [#allocation8], 4
      %s74 = int_to_ptr.vmem [resolvable:$true] %s73
      %79 = dma.hbm_to_vmem [thread:$0]  %s9, 2048, %s74, [#allocation9], 128, 128, 8
    $region41: #{net_forward.1} parent=1 // pred_fallthru
      _
    // Predicated region
    $region42: #{net_forward.1} parent=1 // pred_check
      _
    $region43: #{net_forward.1} parent=1 // pred_check_branch
      %81 = sbr.rel (0) target = $region45
    $region44: #{net_forward.1} parent=1 // pred_region
      _
    $region45: #{net_forward.1} parent=1 // pred_fallthru
      _
    // Predicated region
    $region46: #{net_forward.1} parent=1 // pred_check
      _
    $region47: #{net_forward.1} parent=1 // pred_check_branch
      %83 = sbr.rel (0) target = $region49
    $region48: #{net_forward.1} parent=1 // pred_region
      %84 = dma.done [#allocation3], 5120
    $region49: #{net_forward.1} parent=1 // pred_fallthru
      _
    // Predicated region
    $region50: #{net_forward.1} parent=1 // pred_check
      _
    $region51: #{net_forward.1} parent=1 // pred_check_branch
      %86 = sbr.rel (0) target = $region53
    $region52: #{net_forward.1} parent=1 // pred_region
      %87 = dma.done [#allocation6], 5760
    $region53: #{net_forward.1} parent=1 // pred_fallthru
      _
    // Predicated region
    $region54: #{net_forward.1} parent=1 // pred_check
      _
    $region55: #{net_forward.1} parent=1 // pred_check_branch
      %89 = sbr.rel (0) target = $region57
    $region56: #{net_forward.1} parent=1 // pred_region
      %90 = dma.done [#allocation6], 2048
    $region57: #{net_forward.1} parent=1 // pred_fallthru
      _
    // Predicated region
    $region58: #{net_forward.1} parent=1 // pred_check
      _
    $region59: #{net_forward.1} parent=1 // pred_check_branch
      %92 = sbr.rel (0) target = $region61
    $region60: #{net_forward.1} parent=1 // pred_region
      %93 = dma.done [#allocation9], 2048
    $region61: #{net_forward.1} parent=1 // pred_fallthru
      _
    %v94 = vlaneseq
    %v95 = vshrl.u32 %v94, 7
    %v96 = vadd.s32 %v95, 8
    %v97 = vlaneseq
    %v98 = vand.u32 %v97, 127
    %v99 = vmul.u32 %v95, 2
    %v100 = vmul.u32 %v96, 2
    %vm101 = vcmp.eq.s32.totalorder %v98, %v99
    %vm102 = vcmp.eq.s32.totalorder %v98, %v100
    %v103 = vsel %vm101, 1, 0
    %v104 = vsel %vm102, 1, 0
    %v105 = vcvt.s32.f32 %v103
    %v106 = vcvt.s32.f32 %v104
    %v107 = vadd.s32 %v99, 1
    %v108 = vadd.s32 %v100, 1
    %vm109 = vcmp.eq.s32.totalorder %v98, %v107
    %vm110 = vcmp.eq.s32.totalorder %v98, %v108
    %v111 = vsel %vm109, 1, 0
    %v112 = vsel %vm110, 1, 0
    %v113 = vcvt.s32.f32 %v111
    %v114 = vcvt.s32.f32 %v112
    %v115 = vadd.s32 %v95, 16
    %v116 = vadd.s32 %v95, 24
    %v117 = vadd.s32 %v95, 32
    %v118 = vadd.s32 %v95, 40
    %v119 = vadd.s32 %v95, 48
    %v120 = vadd.s32 %v95, 56
    %v121 = vadd.s32 %v95, 64
    %v122 = vadd.s32 %v95, 72
    %v123 = vadd.s32 %v95, 80
    %v124 = vadd.s32 %v95, 88
    %v125 = vadd.s32 %v95, 96
    %v126 = vadd.s32 %v95, 104
    %v127 = vadd.s32 %v95, 112
    %v128 = vadd.s32 %v95, 120
    %v129 = vadd.s32 %v95, 128
    %v130 = vadd.s32 %v95, 136
    %v131 = vmul.u32 %v98, 2
    %vm132 = vcmp.eq.s32.totalorder %v95, %v131
    %vm133 = vcmp.eq.s32.totalorder %v96, %v131
    %vm134 = vcmp.eq.s32.totalorder %v115, %v131
    %vm135 = vcmp.eq.s32.totalorder %v116, %v131
    %vm136 = vcmp.eq.s32.totalorder %v117, %v131
    %vm137 = vcmp.eq.s32.totalorder %v118, %v131
    %vm138 = vcmp.eq.s32.totalorder %v119, %v131
    %vm139 = vcmp.eq.s32.totalorder %v120, %v131
    %vm140 = vcmp.eq.s32.totalorder %v121, %v131
    %vm141 = vcmp.eq.s32.totalorder %v122, %v131
    %vm142 = vcmp.eq.s32.totalorder %v123, %v131
    %vm143 = vcmp.eq.s32.totalorder %v124, %v131
    %vm144 = vcmp.eq.s32.totalorder %v125, %v131
    %vm145 = vcmp.eq.s32.totalorder %v126, %v131
    %vm146 = vcmp.eq.s32.totalorder %v127, %v131
    %vm147 = vcmp.eq.s32.totalorder %v128, %v131
    %vm148 = vcmp.eq.s32.totalorder %v129, %v131
    %vm149 = vcmp.eq.s32.totalorder %v130, %v131
    %v150 = vsel %vm132, 1, 0
    %v151 = vsel %vm133, 1, 0
    %v152 = vsel %vm134, 1, 0
    %v153 = vsel %vm135, 1, 0
    %v154 = vsel %vm136, 1, 0
    %v155 = vsel %vm137, 1, 0
    %v156 = vsel %vm138, 1, 0
    %v157 = vsel %vm139, 1, 0
    %v158 = vsel %vm140, 1, 0
    %v159 = vsel %vm141, 1, 0
    %v160 = vsel %vm142, 1, 0
    %v161 = vsel %vm143, 1, 0
    %v162 = vsel %vm144, 1, 0
    %v163 = vsel %vm145, 1, 0
    %v164 = vsel %vm146, 1, 0
    %v165 = vsel %vm147, 1, 0
    %v166 = vsel %vm148, 1, 0
    %v167 = vsel %vm149, 1, 0
    %v168 = vcvt.s32.f32 %v150
    %v169 = vcvt.s32.f32 %v151
    %v170 = vcvt.s32.f32 %v152
    %v171 = vcvt.s32.f32 %v153
    %v172 = vcvt.s32.f32 %v154
    %v173 = vcvt.s32.f32 %v155
    %v174 = vcvt.s32.f32 %v156
    %v175 = vcvt.s32.f32 %v157
    %v176 = vcvt.s32.f32 %v158
    %v177 = vcvt.s32.f32 %v159
    %v178 = vcvt.s32.f32 %v160
    %v179 = vcvt.s32.f32 %v161
    %v180 = vcvt.s32.f32 %v162
    %v181 = vcvt.s32.f32 %v163
    %v182 = vcvt.s32.f32 %v164
    %v183 = vcvt.s32.f32 %v165
    %v184 = vcvt.s32.f32 %v166
    %v185 = vcvt.s32.f32 %v167
    %v186 = vadd.s32 %v131, 1
    %vm187 = vcmp.eq.s32.totalorder %v95, %v186
    %vm188 = vcmp.eq.s32.totalorder %v96, %v186
    %vm189 = vcmp.eq.s32.totalorder %v115, %v186
    %vm190 = vcmp.eq.s32.totalorder %v116, %v186
    %vm191 = vcmp.eq.s32.totalorder %v117, %v186
    %vm192 = vcmp.eq.s32.totalorder %v118, %v186
    %vm193 = vcmp.eq.s32.totalorder %v119, %v186
    %vm194 = vcmp.eq.s32.totalorder %v120, %v186
    %vm195 = vcmp.eq.s32.totalorder %v121, %v186
    %vm196 = vcmp.eq.s32.totalorder %v122, %v186
    %vm197 = vcmp.eq.s32.totalorder %v123, %v186
    %vm198 = vcmp.eq.s32.totalorder %v124, %v186
    %vm199 = vcmp.eq.s32.totalorder %v125, %v186
    %vm200 = vcmp.eq.s32.totalorder %v126, %v186
    %vm201 = vcmp.eq.s32.totalorder %v127, %v186
    %vm202 = vcmp.eq.s32.totalorder %v128, %v186
    %vm203 = vcmp.eq.s32.totalorder %v129, %v186
    %vm204 = vcmp.eq.s32.totalorder %v130, %v186
    %v205 = vsel %vm187, 1, 0
    %v206 = vsel %vm188, 1, 0
    %v207 = vsel %vm189, 1, 0
    %v208 = vsel %vm190, 1, 0
    %v209 = vsel %vm191, 1, 0
    %v210 = vsel %vm192, 1, 0
    %v211 = vsel %vm193, 1, 0
    %v212 = vsel %vm194, 1, 0
    %v213 = vsel %vm195, 1, 0
    %v214 = vsel %vm196, 1, 0
    %v215 = vsel %vm197, 1, 0
    %v216 = vsel %vm198, 1, 0
    %v217 = vsel %vm199, 1, 0
    %v218 = vsel %vm200, 1, 0
    %v219 = vsel %vm201, 1, 0
    %v220 = vsel %vm202, 1, 0
    %v221 = vsel %vm203, 1, 0
    %v222 = vsel %vm204, 1, 0
    %v223 = vcvt.s32.f32 %v205
    %v224 = vcvt.s32.f32 %v206
    %v225 = vcvt.s32.f32 %v207
    %v226 = vcvt.s32.f32 %v208
    %v227 = vcvt.s32.f32 %v209
    %v228 = vcvt.s32.f32 %v210
    %v229 = vcvt.s32.f32 %v211
    %v230 = vcvt.s32.f32 %v212
    %v231 = vcvt.s32.f32 %v213
    %v232 = vcvt.s32.f32 %v214
    %v233 = vcvt.s32.f32 %v215
    %v234 = vcvt.s32.f32 %v216
    %v235 = vcvt.s32.f32 %v217
    %v236 = vcvt.s32.f32 %v218
    %v237 = vcvt.s32.f32 %v219
    %v238 = vcvt.s32.f32 %v220
    %v239 = vcvt.s32.f32 %v221
    %v240 = vcvt.s32.f32 %v222
    %v241 = vld [vmem:[%s0] sm:$0xff]
    %v242 = vld [vmem:[%s0 + $0x8] sm:$0xff]
    %v243 = vld [vmem:[%s0 + $0x10] sm:$0xff]
    %v244 = vld [vmem:[%s0 + $0x18] sm:$0xf]
    %v245 = vld [vmem:[#allocation2] sm:$0xff]
    %v246 = vld [vmem:[#allocation2 + $0x8] sm:$0xff]
    %v247 = vld [vmem:[#allocation2 + $0x10] sm:$0xff]
    %v248 = vld [vmem:[#allocation2 + $0x18] sm:$0xff]
    %v249 = vld [vmem:[#allocation2 + $0x20] sm:$0xff]
    %v250 = vld [vmem:[#allocation2 + $0x28] sm:$0xff]
    %v251 = vld [vmem:[#allocation2 + $0x30] sm:$0xf]
    %v252 = vld [vmem:[#allocation2 + $0x38] sm:$0xf]
    %s253 = scalar_lea.vmem [#allocation2], 64
    %v254 = vld [vmem:[%s253] sm:$0xff]
    %v255 = vld [vmem:[%s253 + $0x8] sm:$0xff]
    %v256 = vld [vmem:[%s253 + $0x10] sm:$0xff]
    %v257 = vld [vmem:[%s253 + $0x18] sm:$0xff]
    %v258 = vld [vmem:[%s253 + $0x20] sm:$0xff]
    %v259 = vld [vmem:[%s253 + $0x28] sm:$0xff]
    %v260 = vld [vmem:[%s253 + $0x30] sm:$0xf]
    %v261 = vld [vmem:[%s253 + $0x38] sm:$0xf]
    %vm266 = vcmask 1046528
    %v267 = vrot.slane %v241, 1
    %v268 = vrot.slane %v242, 1
    %v269 = vsel %vm266, %v267, %v268
    %v270 = vrot.slane %v243, 1
    %v271 = vsel %vm266, %v268, %v270
    %v272 = vrot.slane %v244, 1
    %v273 = vsel %vm266, %v270, %v272
    %vm274 = vcmask 228352
    %v275 = vsel %vm274, %v269, 0
    %v277 = vsel %vm274, %v271, 0
    %v279 = vsel %vm274, %v273, 0
    %vm281 = vcmask 1043456
    %v283 = vsel %vm281, %v260, 0
    %v286 = vsel %vm281, %v261, 0
    %288 = vmatprep.subr.mxu0 %v255
    %289 = vmatpush1.msra.mxu0 %v254
    %290 = vmatprep.subr.mxu0 %v257
    %291 = vmatpush1.msra.mxu0 %v256
    %292 = vmatprep.subr.mxu0 %v259
    %293 = vmatpush1.msra.mxu0 %v258
    %294 = vmatprep.subr.mxu0 %v286
    %295 = vmatpush1.msra.mxu0 %v283
    %296 = vmatprep.subr.mxu0 0.0
    %297 = vmatpush1.msra.mxu0 0.0
    %298 = vmatprep.subr.mxu0 0.0
    %299 = vmatpush1.msra.mxu0 0.0
    %300 = vmatprep.subr.mxu0 0.0
    %301 = vmatpush1.msra.mxu0 0.0
    %302 = vmatprep.subr.mxu0 0.0
    %303 = vmatpush1.msra.mxu0 0.0
    %304 = vmatprep.subr.mxu0 0.0
    %305 = vmatpush1.msra.mxu0 0.0
    %306 = vmatprep.subr.mxu0 0.0
    %307 = vmatpush1.msra.mxu0 0.0
    %308 = vmatprep.subr.mxu0 0.0
    %309 = vmatpush1.msra.mxu0 0.0
    %310 = vmatprep.subr.mxu0 0.0
    %311 = vmatpush1.msra.mxu0 0.0
    %312 = vmatprep.subr.mxu0 0.0
    %313 = vmatpush1.msra.mxu0 0.0
    %314 = vmatprep.subr.mxu0 0.0
    %315 = vmatpush1.msra.mxu0 0.0
    %316 = vmatprep.subr.mxu0 0.0
    %317 = vmatpush1.msra.mxu0 0.0
    %318 = vmatprep.subr.mxu0 0.0
    %319 = vmatpush1.msra.mxu0 0.0
    %320 = vmatprep.subr.mxu0 0.0
    %321 = vmatpush1.msra.mxu0 0.0
    %322 = vmatprep.subr.mxu0 0.0
    %323 = vmatpush1.msra.mxu0 0.0
    %324 = vmatprep.subr.mxu0 0.0
    %325 = vmatpush1.msra.mxu0 0.0
    %326 = vmatprep.subr.mxu0 0.0
    %327 = vmatpush1.msra.mxu0 0.0
    %328 = vmatprep.subr.mxu0 0.0
    %329 = vmatpush1.msra.mxu0 0.0
    %330 = vmatprep.subr.mxu0 0.0
    %331 = vmatpush1.msra.mxu0 0.0
    %332 = vmatprep.subr.mxu0 0.0
    %333 = vmatpush1.msra.mxu0 0.0
    %334 = vmatprep.subr.mxu0 0.0
    %335 = vmatpush1.msra.mxu0 0.0
    %336 = vmatprep.subr.mxu0 0.0
    %337 = vmatpush1.msra.mxu0 0.0
    %338 = vmatprep.subr.mxu0 0.0
    %339 = vmatpush1.msra.mxu0 0.0
    %340 = vmatprep.subr.mxu0 0.0
    %341 = vmatpush1.msra.mxu0 0.0
    %342 = vmatprep.subr.mxu0 0.0
    %343 = vmatpush1.msra.mxu0 0.0
    %344 = vmatprep.subr.mxu0 0.0
    %345 = vmatpush1.msra.mxu0 0.0
    %346 = vmatprep.subr.mxu0 0.0
    %347 = vmatpush1.msra.mxu0 0.0
    %348 = vmatprep.subr.mxu0 0.0
    %349 = vmatpush1.msra.mxu0 0.0
    %350 = vmatprep.subr.mxu0 0.0
    %351 = vmatpush1.msra.mxu0 0.0
    %352 = vmatprep.mubr.f32.mxu0 0.0
    %353 = vmatmul.mubr.f32.gmra.mrb[0].mxu0 %v275
    %v354 = vpop.f32.mrb[0].mxu0
    %v355 = vadd.f32 0.0, %v354
    %v356 = vpop.f32.mrb[0].mxu0
    %v357 = vadd.f32 0.0, %v356
    %358 = vmatprep.mubr.f32.mxu0 0.0
    %359 = vmatmul.mubr.f32.gmra.mrb[0].mxu0 %v277
    %v360 = vpop.f32.mrb[0].mxu0
    %v361 = vadd.f32 0.0, %v360
    %v362 = vpop.f32.mrb[0].mxu0
    %v363 = vadd.f32 0.0, %v362
    %364 = vmatprep.mubr.f32.mxu0 0.0
    %365 = vmatmul.mubr.f32.gmra.mrb[0].mxu0 %v279
    %v366 = vpop.f32.mrb[0].mxu0
    %v367 = vadd.f32 0.0, %v366
    %v368 = vpop.f32.mrb[0].mxu0
    %v369 = vadd.f32 0.0, %v368
    %370 = vdwg.mxu0
    %v371 = vsel %vm274, %v241, 0
    %v373 = vsel %vm274, %v242, 0
    %v375 = vsel %vm274, %v243, 0
    %v378 = vsel %vm281, %v251, 0
    %v381 = vsel %vm281, %v252, 0
    %383 = vmatprep.subr.mxu0 %v246
    %384 = vmatpush1.msra.mxu0 %v245
    %385 = vmatprep.subr.mxu0 %v248
    %386 = vmatpush1.msra.mxu0 %v247
    %387 = vmatprep.subr.mxu0 %v250
    %388 = vmatpush1.msra.mxu0 %v249
    %389 = vmatprep.subr.mxu0 %v381
    %390 = vmatpush1.msra.mxu0 %v378
    %391 = vmatprep.subr.mxu0 0.0
    %392 = vmatpush1.msra.mxu0 0.0
    %393 = vmatprep.subr.mxu0 0.0
    %394 = vmatpush1.msra.mxu0 0.0
    %395 = vmatprep.subr.mxu0 0.0
    %396 = vmatpush1.msra.mxu0 0.0
    %397 = vmatprep.subr.mxu0 0.0
    %398 = vmatpush1.msra.mxu0 0.0
    %399 = vmatprep.subr.mxu0 0.0
    %400 = vmatpush1.msra.mxu0 0.0
    %401 = vmatprep.subr.mxu0 0.0
    %402 = vmatpush1.msra.mxu0 0.0
    %403 = vmatprep.subr.mxu0 0.0
    %404 = vmatpush1.msra.mxu0 0.0
    %405 = vmatprep.subr.mxu0 0.0
    %406 = vmatpush1.msra.mxu0 0.0
    %407 = vmatprep.subr.mxu0 0.0
    %408 = vmatpush1.msra.mxu0 0.0
    %409 = vmatprep.subr.mxu0 0.0
    %410 = vmatpush1.msra.mxu0 0.0
    %411 = vmatprep.subr.mxu0 0.0
    %412 = vmatpush1.msra.mxu0 0.0
    %413 = vmatprep.subr.mxu0 0.0
    %414 = vmatpush1.msra.mxu0 0.0
    %415 = vmatprep.subr.mxu0 0.0
    %416 = vmatpush1.msra.mxu0 0.0
    %417 = vmatprep.subr.mxu0 0.0
    %418 = vmatpush1.msra.mxu0 0.0
    %419 = vmatprep.subr.mxu0 0.0
    %420 = vmatpush1.msra.mxu0 0.0
    %421 = vmatprep.subr.mxu0 0.0
    %422 = vmatpush1.msra.mxu0 0.0
    %423 = vmatprep.subr.mxu0 0.0
    %424 = vmatpush1.msra.mxu0 0.0
    %425 = vmatprep.subr.mxu0 0.0
    %426 = vmatpush1.msra.mxu0 0.0
    %427 = vmatprep.subr.mxu0 0.0
    %428 = vmatpush1.msra.mxu0 0.0
    %429 = vmatprep.subr.mxu0 0.0
    %430 = vmatpush1.msra.mxu0 0.0
    %431 = vmatprep.subr.mxu0 0.0
    %432 = vmatpush1.msra.mxu0 0.0
    %433 = vmatprep.subr.mxu0 0.0
    %434 = vmatpush1.msra.mxu0 0.0
    %435 = vmatprep.subr.mxu0 0.0
    %436 = vmatpush1.msra.mxu0 0.0
    %437 = vmatprep.subr.mxu0 0.0
    %438 = vmatpush1.msra.mxu0 0.0
    %439 = vmatprep.subr.mxu0 0.0
    %440 = vmatpush1.msra.mxu0 0.0
    %441 = vmatprep.subr.mxu0 0.0
    %442 = vmatpush1.msra.mxu0 0.0
    %443 = vmatprep.subr.mxu0 0.0
    %444 = vmatpush1.msra.mxu0 0.0
    %445 = vmatprep.subr.mxu0 0.0
    %446 = vmatpush1.msra.mxu0 0.0
    %447 = vmatprep.mubr.f32.mxu0 0.0
    %448 = vmatmul.mubr.f32.gmra.mrb[0].mxu0 %v371
    %v449 = vpop.f32.mrb[0].mxu0
    %v450 = vadd.f32 %v355, %v449
    %v451 = vpop.f32.mrb[0].mxu0
    %v452 = vadd.f32 %v357, %v451
    %453 = vmatprep.mubr.f32.mxu0 0.0
    %454 = vmatmul.mubr.f32.gmra.mrb[0].mxu0 %v373
    %v455 = vpop.f32.mrb[0].mxu0
    %v456 = vadd.f32 %v361, %v455
    %v457 = vpop.f32.mrb[0].mxu0
    %v458 = vadd.f32 %v363, %v457
    %459 = vmatprep.mubr.f32.mxu0 0.0
    %460 = vmatmul.mubr.f32.gmra.mrb[0].mxu0 %v375
    %v461 = vpop.f32.mrb[0].mxu0
    %v462 = vadd.f32 %v367, %v461
    %v463 = vpop.f32.mrb[0].mxu0
    %v464 = vadd.f32 %v369, %v463
    %465 = vdwg.mxu0
    %s466 = scalar_lea.vmem [#allocation2], 128
    %v467 = vld [vmem:[%s466] sm:$0xff]
    %v468 = vld [vmem:[%s466 + $0x8] sm:$0xff]
    %v469 = vld [vmem:[%s466 + $0x10] sm:$0xff]
    %v470 = vld [vmem:[%s466 + $0x18] sm:$0xff]
    %v471 = vld [vmem:[%s466 + $0x20] sm:$0xff]
    %v472 = vld [vmem:[%s466 + $0x28] sm:$0xff]
    %v473 = vld [vmem:[%s466 + $0x30] sm:$0xf]
    %v474 = vld [vmem:[%s466 + $0x38] sm:$0xf]
    %vm475 = vcmask 1045504
    %v476 = vrot.slane %v241, 2
    %v477 = vrot.slane %v242, 2
    %v478 = vsel %vm475, %v476, %v477
    %v479 = vrot.slane %v243, 2
    %v480 = vsel %vm475, %v477, %v479
    %v481 = vrot.slane %v244, 2
    %v482 = vsel %vm475, %v479, %v481
    %v483 = vsel %vm274, %v478, 0
    %v485 = vsel %vm274, %v480, 0
    %v487 = vsel %vm274, %v482, 0
    %v490 = vsel %vm281, %v473, 0
    %v493 = vsel %vm281, %v474, 0
    %495 = vmatprep.subr.mxu0 %v468
    %496 = vmatpush1.msra.mxu0 %v467
    %497 = vmatprep.subr.mxu0 %v470
    %498 = vmatpush1.msra.mxu0 %v469
    %499 = vmatprep.subr.mxu0 %v472
    %500 = vmatpush1.msra.mxu0 %v471
    %501 = vmatprep.subr.mxu0 %v493
    %502 = vmatpush1.msra.mxu0 %v490
    %503 = vmatprep.subr.mxu0 0.0
    %504 = vmatpush1.msra.mxu0 0.0
    %505 = vmatprep.subr.mxu0 0.0
    %506 = vmatpush1.msra.mxu0 0.0
    %507 = vmatprep.subr.mxu0 0.0
    %508 = vmatpush1.msra.mxu0 0.0
    %509 = vmatprep.subr.mxu0 0.0
    %510 = vmatpush1.msra.mxu0 0.0
    %511 = vmatprep.subr.mxu0 0.0
    %512 = vmatpush1.msra.mxu0 0.0
    %513 = vmatprep.subr.mxu0 0.0
    %514 = vmatpush1.msra.mxu0 0.0
    %515 = vmatprep.subr.mxu0 0.0
    %516 = vmatpush1.msra.mxu0 0.0
    %517 = vmatprep.subr.mxu0 0.0
    %518 = vmatpush1.msra.mxu0 0.0
    %519 = vmatprep.subr.mxu0 0.0
    %520 = vmatpush1.msra.mxu0 0.0
    %521 = vmatprep.subr.mxu0 0.0
    %522 = vmatpush1.msra.mxu0 0.0
    %523 = vmatprep.subr.mxu0 0.0
    %524 = vmatpush1.msra.mxu0 0.0
    %525 = vmatprep.subr.mxu0 0.0
    %526 = vmatpush1.msra.mxu0 0.0
    %527 = vmatprep.subr.mxu0 0.0
    %528 = vmatpush1.msra.mxu0 0.0
    %529 = vmatprep.subr.mxu0 0.0
    %530 = vmatpush1.msra.mxu0 0.0
    %531 = vmatprep.subr.mxu0 0.0
    %532 = vmatpush1.msra.mxu0 0.0
    %533 = vmatprep.subr.mxu0 0.0
    %534 = vmatpush1.msra.mxu0 0.0
    %535 = vmatprep.subr.mxu0 0.0
    %536 = vmatpush1.msra.mxu0 0.0
    %537 = vmatprep.subr.mxu0 0.0
    %538 = vmatpush1.msra.mxu0 0.0
    %539 = vmatprep.subr.mxu0 0.0
    %540 = vmatpush1.msra.mxu0 0.0
    %541 = vmatprep.subr.mxu0 0.0
    %542 = vmatpush1.msra.mxu0 0.0
    %543 = vmatprep.subr.mxu0 0.0
    %544 = vmatpush1.msra.mxu0 0.0
    %545 = vmatprep.subr.mxu0 0.0
    %546 = vmatpush1.msra.mxu0 0.0
    %547 = vmatprep.subr.mxu0 0.0
    %548 = vmatpush1.msra.mxu0 0.0
    %549 = vmatprep.subr.mxu0 0.0
    %550 = vmatpush1.msra.mxu0 0.0
    %551 = vmatprep.subr.mxu0 0.0
    %552 = vmatpush1.msra.mxu0 0.0
    %553 = vmatprep.subr.mxu0 0.0
    %554 = vmatpush1.msra.mxu0 0.0
    %555 = vmatprep.subr.mxu0 0.0
    %556 = vmatpush1.msra.mxu0 0.0
    %557 = vmatprep.subr.mxu0 0.0
    %558 = vmatpush1.msra.mxu0 0.0
    %559 = vmatprep.mubr.f32.mxu0 0.0
    %560 = vmatmul.mubr.f32.gmra.mrb[0].mxu0 %v483
    %v561 = vpop.f32.mrb[0].mxu0
    %v562 = vadd.f32 0.0, %v561
    %v563 = vpop.f32.mrb[0].mxu0
    %v564 = vadd.f32 0.0, %v563
    %565 = vmatprep.mubr.f32.mxu0 0.0
    %566 = vmatmul.mubr.f32.gmra.mrb[0].mxu0 %v485
    %v567 = vpop.f32.mrb[0].mxu0
    %v568 = vadd.f32 0.0, %v567
    %v569 = vpop.f32.mrb[0].mxu0
    %v570 = vadd.f32 0.0, %v569
    %571 = vmatprep.mubr.f32.mxu0 0.0
    %572 = vmatmul.mubr.f32.gmra.mrb[0].mxu0 %v487
    %v573 = vpop.f32.mrb[0].mxu0
    %v574 = vadd.f32 0.0, %v573
    %v575 = vpop.f32.mrb[0].mxu0
    %v576 = vadd.f32 0.0, %v575
    %577 = vdwg.mxu0
    %v578 = vadd.f32 %v450, %v562
    %v579 = vadd.f32 %v452, %v564
    %v580 = vadd.f32 %v456, %v568
    %v581 = vadd.f32 %v458, %v570
    %v582 = vadd.f32 %v462, %v574
    %v583 = vadd.f32 %v464, %v576
    %s584 = scalar_lea.vmem [#allocation2], 192
    %v585 = vld [vmem:[%s584] sm:$0xff]
    %v586 = vld [vmem:[%s584 + $0x8] sm:$0xff]
    %v587 = vld [vmem:[%s584 + $0x10] sm:$0xff]
    %v588 = vld [vmem:[%s584 + $0x18] sm:$0xff]
    %v589 = vld [vmem:[%s584 + $0x20] sm:$0xff]
    %v590 = vld [vmem:[%s584 + $0x28] sm:$0xff]
    %v591 = vld [vmem:[%s584 + $0x30] sm:$0xf]
    %v592 = vld [vmem:[%s584 + $0x38] sm:$0xf]
    %vm593 = vcmask 1044480
    %v594 = vrot.slane %v241, 3
    %v595 = vrot.slane %v242, 3
    %v596 = vsel %vm593, %v594, %v595
    %v597 = vrot.slane %v243, 3
    %v598 = vsel %vm593, %v595, %v597
    %v599 = vrot.slane %v244, 3
    %v600 = vsel %vm593, %v597, %v599
    %v601 = vsel %vm274, %v596, 0
    %v603 = vsel %vm274, %v598, 0
    %v605 = vsel %vm274, %v600, 0
    %v608 = vsel %vm281, %v591, 0
    %v611 = vsel %vm281, %v592, 0
    %613 = vmatprep.subr.mxu0 %v586
    %614 = vmatpush1.msra.mxu0 %v585
    %615 = vmatprep.subr.mxu0 %v588
    %616 = vmatpush1.msra.mxu0 %v587
    %617 = vmatprep.subr.mxu0 %v590
    %618 = vmatpush1.msra.mxu0 %v589
    %619 = vmatprep.subr.mxu0 %v611
    %620 = vmatpush1.msra.mxu0 %v608
    %621 = vmatprep.subr.mxu0 0.0
    %622 = vmatpush1.msra.mxu0 0.0
    %623 = vmatprep.subr.mxu0 0.0
    %624 = vmatpush1.msra.mxu0 0.0
    %625 = vmatprep.subr.mxu0 0.0
    %626 = vmatpush1.msra.mxu0 0.0
    %627 = vmatprep.subr.mxu0 0.0
    %628 = vmatpush1.msra.mxu0 0.0
    %629 = vmatprep.subr.mxu0 0.0
    %630 = vmatpush1.msra.mxu0 0.0
    %631 = vmatprep.subr.mxu0 0.0
    %632 = vmatpush1.msra.mxu0 0.0
    %633 = vmatprep.subr.mxu0 0.0
    %634 = vmatpush1.msra.mxu0 0.0
    %635 = vmatprep.subr.mxu0 0.0
    %636 = vmatpush1.msra.mxu0 0.0
    %637 = vmatprep.subr.mxu0 0.0
    %638 = vmatpush1.msra.mxu0 0.0
    %639 = vmatprep.subr.mxu0 0.0
    %640 = vmatpush1.msra.mxu0 0.0
    %641 = vmatprep.subr.mxu0 0.0
    %642 = vmatpush1.msra.mxu0 0.0
    %643 = vmatprep.subr.mxu0 0.0
    %644 = vmatpush1.msra.mxu0 0.0
    %645 = vmatprep.subr.mxu0 0.0
    %646 = vmatpush1.msra.mxu0 0.0
    %647 = vmatprep.subr.mxu0 0.0
    %648 = vmatpush1.msra.mxu0 0.0
    %649 = vmatprep.subr.mxu0 0.0
    %650 = vmatpush1.msra.mxu0 0.0
    %651 = vmatprep.subr.mxu0 0.0
    %652 = vmatpush1.msra.mxu0 0.0
    %653 = vmatprep.subr.mxu0 0.0
    %654 = vmatpush1.msra.mxu0 0.0
    %655 = vmatprep.subr.mxu0 0.0
    %656 = vmatpush1.msra.mxu0 0.0
    %657 = vmatprep.subr.mxu0 0.0
    %658 = vmatpush1.msra.mxu0 0.0
    %659 = vmatprep.subr.mxu0 0.0
    %660 = vmatpush1.msra.mxu0 0.0
    %661 = vmatprep.subr.mxu0 0.0
    %662 = vmatpush1.msra.mxu0 0.0
    %663 = vmatprep.subr.mxu0 0.0
    %664 = vmatpush1.msra.mxu0 0.0
    %665 = vmatprep.subr.mxu0 0.0
    %666 = vmatpush1.msra.mxu0 0.0
    %667 = vmatprep.subr.mxu0 0.0
    %668 = vmatpush1.msra.mxu0 0.0
    %669 = vmatprep.subr.mxu0 0.0
    %670 = vmatpush1.msra.mxu0 0.0
    %671 = vmatprep.subr.mxu0 0.0
    %672 = vmatpush1.msra.mxu0 0.0
    %673 = vmatprep.subr.mxu0 0.0
    %674 = vmatpush1.msra.mxu0 0.0
    %675 = vmatprep.subr.mxu0 0.0
    %676 = vmatpush1.msra.mxu0 0.0
    %677 = vmatprep.mubr.f32.mxu0 0.0
    %678 = vmatmul.mubr.f32.gmra.mrb[0].mxu0 %v601
    %v679 = vpop.f32.mrb[0].mxu0
    %v680 = vadd.f32 0.0, %v679
    %v681 = vpop.f32.mrb[0].mxu0
    %v682 = vadd.f32 0.0, %v681
    %683 = vmatprep.mubr.f32.mxu0 0.0
    %684 = vmatmul.mubr.f32.gmra.mrb[0].mxu0 %v603
    %v685 = vpop.f32.mrb[0].mxu0
    %v686 = vadd.f32 0.0, %v685
    %v687 = vpop.f32.mrb[0].mxu0
    %v688 = vadd.f32 0.0, %v687
    %689 = vmatprep.mubr.f32.mxu0 0.0
    %690 = vmatmul.mubr.f32.gmra.mrb[0].mxu0 %v605
    %v691 = vpop.f32.mrb[0].mxu0
    %v692 = vadd.f32 0.0, %v691
    %v693 = vpop.f32.mrb[0].mxu0
    %v694 = vadd.f32 0.0, %v693
    %695 = vdwg.mxu0
    %v696 = vadd.f32 %v578, %v680
    %v697 = vadd.f32 %v579, %v682
    %v698 = vadd.f32 %v580, %v686
    %v699 = vadd.f32 %v581, %v688
    %v700 = vadd.f32 %v582, %v692
    %v701 = vadd.f32 %v583, %v694
    %s702 = scalar_lea.vmem [#allocation2], 256
    %v703 = vld [vmem:[%s702] sm:$0xff]
    %v704 = vld [vmem:[%s702 + $0x8] sm:$0xff]
    %v705 = vld [vmem:[%s702 + $0x10] sm:$0xff]
    %v706 = vld [vmem:[%s702 + $0x18] sm:$0xff]
    %v707 = vld [vmem:[%s702 + $0x20] sm:$0xff]
    %v708 = vld [vmem:[%s702 + $0x28] sm:$0xff]
    %v709 = vld [vmem:[%s702 + $0x30] sm:$0xf]
    %v710 = vld [vmem:[%s702 + $0x38] sm:$0xf]
    %v711 = vrot.slane %v241, 4
    %v712 = vrot.slane %v242, 4
    %v713 = vsel %vm281, %v711, %v712
    %v714 = vrot.slane %v243, 4
    %v715 = vsel %vm281, %v712, %v714
    %v716 = vrot.slane %v244, 4
    %v717 = vsel %vm281, %v714, %v716
    %v718 = vsel %vm274, %v713, 0
    %v720 = vsel %vm274, %v715, 0
    %v722 = vsel %vm274, %v717, 0
    %v725 = vsel %vm281, %v709, 0
    %v728 = vsel %vm281, %v710, 0
    %730 = vmatprep.subr.mxu0 %v704
    %731 = vmatpush1.msra.mxu0 %v703
    %732 = vmatprep.subr.mxu0 %v706
    %733 = vmatpush1.msra.mxu0 %v705
    %734 = vmatprep.subr.mxu0 %v708
    %735 = vmatpush1.msra.mxu0 %v707
    %736 = vmatprep.subr.mxu0 %v728
    %737 = vmatpush1.msra.mxu0 %v725
    %738 = vmatprep.subr.mxu0 0.0
    %739 = vmatpush1.msra.mxu0 0.0
    %740 = vmatprep.subr.mxu0 0.0
    %741 = vmatpush1.msra.mxu0 0.0
    %742 = vmatprep.subr.mxu0 0.0
    %743 = vmatpush1.msra.mxu0 0.0
    %744 = vmatprep.subr.mxu0 0.0
    %745 = vmatpush1.msra.mxu0 0.0
    %746 = vmatprep.subr.mxu0 0.0
    %747 = vmatpush1.msra.mxu0 0.0
    %748 = vmatprep.subr.mxu0 0.0
    %749 = vmatpush1.msra.mxu0 0.0
    %750 = vmatprep.subr.mxu0 0.0
    %751 = vmatpush1.msra.mxu0 0.0
    %752 = vmatprep.subr.mxu0 0.0
    %753 = vmatpush1.msra.mxu0 0.0
    %754 = vmatprep.subr.mxu0 0.0
    %755 = vmatpush1.msra.mxu0 0.0
    %756 = vmatprep.subr.mxu0 0.0
    %757 = vmatpush1.msra.mxu0 0.0
    %758 = vmatprep.subr.mxu0 0.0
    %759 = vmatpush1.msra.mxu0 0.0
    %760 = vmatprep.subr.mxu0 0.0
    %761 = vmatpush1.msra.mxu0 0.0
    %762 = vmatprep.subr.mxu0 0.0
    %763 = vmatpush1.msra.mxu0 0.0
    %764 = vmatprep.subr.mxu0 0.0
    %765 = vmatpush1.msra.mxu0 0.0
    %766 = vmatprep.subr.mxu0 0.0
    %767 = vmatpush1.msra.mxu0 0.0
    %768 = vmatprep.subr.mxu0 0.0
    %769 = vmatpush1.msra.mxu0 0.0
    %770 = vmatprep.subr.mxu0 0.0
    %771 = vmatpush1.msra.mxu0 0.0
    %772 = vmatprep.subr.mxu0 0.0
    %773 = vmatpush1.msra.mxu0 0.0
    %774 = vmatprep.subr.mxu0 0.0
    %775 = vmatpush1.msra.mxu0 0.0
    %776 = vmatprep.subr.mxu0 0.0
    %777 = vmatpush1.msra.mxu0 0.0
    %778 = vmatprep.subr.mxu0 0.0
    %779 = vmatpush1.msra.mxu0 0.0
    %780 = vmatprep.subr.mxu0 0.0
    %781 = vmatpush1.msra.mxu0 0.0
    %782 = vmatprep.subr.mxu0 0.0
    %783 = vmatpush1.msra.mxu0 0.0
    %784 = vmatprep.subr.mxu0 0.0
    %785 = vmatpush1.msra.mxu0 0.0
    %786 = vmatprep.subr.mxu0 0.0
    %787 = vmatpush1.msra.mxu0 0.0
    %788 = vmatprep.subr.mxu0 0.0
    %789 = vmatpush1.msra.mxu0 0.0
    %790 = vmatprep.subr.mxu0 0.0
    %791 = vmatpush1.msra.mxu0 0.0
    %792 = vmatprep.subr.mxu0 0.0
    %793 = vmatpush1.msra.mxu0 0.0
    %794 = vmatprep.mubr.f32.mxu0 0.0
    %795 = vmatmul.mubr.f32.gmra.mrb[0].mxu0 %v718
    %v796 = vpop.f32.mrb[0].mxu0
    %v797 = vadd.f32 0.0, %v796
    %v798 = vpop.f32.mrb[0].mxu0
    %v799 = vadd.f32 0.0, %v798
    %800 = vmatprep.mubr.f32.mxu0 0.0
    %801 = vmatmul.mubr.f32.gmra.mrb[0].mxu0 %v720
    %v802 = vpop.f32.mrb[0].mxu0
    %v803 = vadd.f32 0.0, %v802
    %v804 = vpop.f32.mrb[0].mxu0
    %v805 = vadd.f32 0.0, %v804
    %806 = vmatprep.mubr.f32.mxu0 0.0
    %807 = vmatmul.mubr.f32.gmra.mrb[0].mxu0 %v722
    %v808 = vpop.f32.mrb[0].mxu0
    %v809 = vadd.f32 0.0, %v808
    %v810 = vpop.f32.mrb[0].mxu0
    %v811 = vadd.f32 0.0, %v810
    %812 = vdwg.mxu0
    %v813 = vadd.f32 %v696, %v797
    %v814 = vadd.f32 %v697, %v799
    %v815 = vadd.f32 %v698, %v803
    %v816 = vadd.f32 %v699, %v805
    %v817 = vadd.f32 %v700, %v809
    %v818 = vadd.f32 %v701, %v811
    %v819 = vld [vmem:[%s2] sm:$0x3]
    %v821 = vlaneseq
    %v822 = vshrl.u32 %v821, 7
    %v823 = vsub.s32 0, %v822
    %v824 = vrot.slane %v819, %v823
    %v825 = vlaneseq
    %v826 = vshrl.u32 %v825, 7
    %v827 = vsub.s32 1, %v826
    %v828 = vrot.slane %v819, %v827
    %v831 = vadd.f32 %v813, %v824
    %v832 = vadd.f32 %v814, %v828
    %v833 = vadd.f32 %v815, %v824
    %v834 = vadd.f32 %v816, %v828
    %v835 = vadd.f32 %v817, %v824
    %v836 = vadd.f32 %v818, %v828
    %v837 = vmax.f32 %v831, 0.0
    %v838 = vmax.f32 %v832, 0.0
    %v839 = vmax.f32 %v833, 0.0
    %v840 = vmax.f32 %v834, 0.0
    %v841 = vmax.f32 %v835, 0.0
    %v842 = vmax.f32 %v836, 0.0
    %vm843 = vcmask 130048
    %v845 = vsel %vm843, %v838, 0
    %v848 = vsel %vm843, %v840, 0
    %v851 = vsel %vm843, %v842, 0
    %853 = vmatprep.subr.mxu0 0.0
    %854 = vmatpush1.msra.mxu0 %v168
    %855 = vmatprep.subr.mxu0 0.0
    %856 = vmatpush1.msra.mxu0 %v169
    %857 = vmatprep.subr.mxu0 0.0
    %858 = vmatpush1.msra.mxu0 %v170
    %859 = vmatprep.subr.mxu0 0.0
    %860 = vmatpush1.msra.mxu0 %v171
    %861 = vmatprep.subr.mxu0 0.0
    %862 = vmatpush1.msra.mxu0 %v172
    %863 = vmatprep.subr.mxu0 0.0
    %864 = vmatpush1.msra.mxu0 %v173
    %865 = vmatprep.subr.mxu0 0.0
    %866 = vmatpush1.msra.mxu0 %v174
    %867 = vmatprep.subr.mxu0 0.0
    %868 = vmatpush1.msra.mxu0 %v175
    %869 = vmatprep.subr.mxu0 0.0
    %870 = vmatpush1.msra.mxu0 %v176
    %871 = vmatprep.subr.mxu0 0.0
    %872 = vmatpush1.msra.mxu0 %v177
    %873 = vmatprep.subr.mxu0 0.0
    %874 = vmatpush1.msra.mxu0 %v178
    %875 = vmatprep.subr.mxu0 0.0
    %876 = vmatpush1.msra.mxu0 %v179
    %877 = vmatprep.subr.mxu0 0.0
    %878 = vmatpush1.msra.mxu0 %v180
    %879 = vmatprep.subr.mxu0 0.0
    %880 = vmatpush1.msra.mxu0 %v181
    %881 = vmatprep.subr.mxu0 0.0
    %882 = vmatpush1.msra.mxu0 %v182
    %883 = vmatprep.subr.mxu0 0.0
    %884 = vmatpush1.msra.mxu0 %v183
    %885 = vmatprep.subr.mxu0 0.0
    %886 = vmatpush1.msra.mxu0 %v184
    %887 = vmatprep.subr.mxu0 0.0
    %888 = vmatpush1.msra.mxu0 %v185
    %889 = vmatprep.subr.mxu0 0.0
    %890 = vmatpush1.msra.mxu0 0.0
    %891 = vmatprep.subr.mxu0 0.0
    %892 = vmatpush1.msra.mxu0 0.0
    %893 = vmatprep.subr.mxu0 0.0
    %894 = vmatpush1.msra.mxu0 0.0
    %895 = vmatprep.subr.mxu0 0.0
    %896 = vmatpush1.msra.mxu0 0.0
    %897 = vmatprep.subr.mxu0 0.0
    %898 = vmatpush1.msra.mxu0 0.0
    %899 = vmatprep.subr.mxu0 0.0
    %900 = vmatpush1.msra.mxu0 0.0
    %901 = vmatprep.subr.mxu0 0.0
    %902 = vmatpush1.msra.mxu0 0.0
    %903 = vmatprep.subr.mxu0 0.0
    %904 = vmatpush1.msra.mxu0 0.0
    %905 = vmatprep.subr.mxu0 0.0
    %906 = vmatpush1.msra.mxu0 0.0
    %907 = vmatprep.subr.mxu0 0.0
    %908 = vmatpush1.msra.mxu0 0.0
    %909 = vmatprep.subr.mxu0 0.0
    %910 = vmatpush1.msra.mxu0 0.0
    %911 = vmatprep.subr.mxu0 0.0
    %912 = vmatpush1.msra.mxu0 0.0
    %913 = vmatprep.subr.mxu0 0.0
    %914 = vmatpush1.msra.mxu0 0.0
    %915 = vmatprep.subr.mxu0 0.0
    %916 = vmatpush1.msra.mxu0 0.0
    %917 = vmatprep.mubr.f32.mxu0 %v845
    %918 = vmatmul.mubr.f32.gmra.mrb[0].mxu0 %v837
    %v919 = vpop.f32.mrb[0].mxu0
    %v920 = vadd.f32 0.0, %v919
    %v921 = vpop.f32.mrb[0].mxu0
    %922 = vmatprep.mubr.f32.mxu0 %v848
    %923 = vmatmul.mubr.f32.gmra.mrb[0].mxu0 %v839
    %v924 = vpop.f32.mrb[0].mxu0
    %v925 = vadd.f32 0.0, %v924
    %v926 = vpop.f32.mrb[0].mxu0
    %927 = vmatprep.mubr.f32.mxu0 %v851
    %928 = vmatmul.mubr.f32.gmra.mrb[0].mxu0 %v841
    %v929 = vpop.f32.mrb[0].mxu0
    %v930 = vadd.f32 0.0, %v929
    %v931 = vpop.f32.mrb[0].mxu0
    %932 = vdwg.mxu0
    %933 = vmatprep.subr.mxu0 0.0
    %934 = vmatpush1.msra.mxu0 %v223
    %935 = vmatprep.subr.mxu0 0.0
    %936 = vmatpush1.msra.mxu0 %v224
    %937 = vmatprep.subr.mxu0 0.0
    %938 = vmatpush1.msra.mxu0 %v225
    %939 = vmatprep.subr.mxu0 0.0
    %940 = vmatpush1.msra.mxu0 %v226
    %941 = vmatprep.subr.mxu0 0.0
    %942 = vmatpush1.msra.mxu0 %v227
    %943 = vmatprep.subr.mxu0 0.0
    %944 = vmatpush1.msra.mxu0 %v228
    %945 = vmatprep.subr.mxu0 0.0
    %946 = vmatpush1.msra.mxu0 %v229
    %947 = vmatprep.subr.mxu0 0.0
    %948 = vmatpush1.msra.mxu0 %v230
    %949 = vmatprep.subr.mxu0 0.0
    %950 = vmatpush1.msra.mxu0 %v231
    %951 = vmatprep.subr.mxu0 0.0
    %952 = vmatpush1.msra.mxu0 %v232
    %953 = vmatprep.subr.mxu0 0.0
    %954 = vmatpush1.msra.mxu0 %v233
    %955 = vmatprep.subr.mxu0 0.0
    %956 = vmatpush1.msra.mxu0 %v234
    %957 = vmatprep.subr.mxu0 0.0
    %958 = vmatpush1.msra.mxu0 %v235
    %959 = vmatprep.subr.mxu0 0.0
    %960 = vmatpush1.msra.mxu0 %v236
    %961 = vmatprep.subr.mxu0 0.0
    %962 = vmatpush1.msra.mxu0 %v237
    %963 = vmatprep.subr.mxu0 0.0
    %964 = vmatpush1.msra.mxu0 %v238
    %965 = vmatprep.subr.mxu0 0.0
    %966 = vmatpush1.msra.mxu0 %v239
    %967 = vmatprep.subr.mxu0 0.0
    %968 = vmatpush1.msra.mxu0 %v240
    %969 = vmatprep.subr.mxu0 0.0
    %970 = vmatpush1.msra.mxu0 0.0
    %971 = vmatprep.subr.mxu0 0.0
    %972 = vmatpush1.msra.mxu0 0.0
    %973 = vmatprep.subr.mxu0 0.0
    %974 = vmatpush1.msra.mxu0 0.0
    %975 = vmatprep.subr.mxu0 0.0
    %976 = vmatpush1.msra.mxu0 0.0
    %977 = vmatprep.subr.mxu0 0.0
    %978 = vmatpush1.msra.mxu0 0.0
    %979 = vmatprep.subr.mxu0 0.0
    %980 = vmatpush1.msra.mxu0 0.0
    %981 = vmatprep.subr.mxu0 0.0
    %982 = vmatpush1.msra.mxu0 0.0
    %983 = vmatprep.subr.mxu0 0.0
    %984 = vmatpush1.msra.mxu0 0.0
    %985 = vmatprep.subr.mxu0 0.0
    %986 = vmatpush1.msra.mxu0 0.0
    %987 = vmatprep.subr.mxu0 0.0
    %988 = vmatpush1.msra.mxu0 0.0
    %989 = vmatprep.subr.mxu0 0.0
    %990 = vmatpush1.msra.mxu0 0.0
    %991 = vmatprep.subr.mxu0 0.0
    %992 = vmatpush1.msra.mxu0 0.0
    %993 = vmatprep.subr.mxu0 0.0
    %994 = vmatpush1.msra.mxu0 0.0
    %995 = vmatprep.subr.mxu0 0.0
    %996 = vmatpush1.msra.mxu0 0.0
    %997 = vmatprep.mubr.f32.mxu0 %v845
    %998 = vmatmul.mubr.f32.gmra.mrb[0].mxu0 %v837
    %v999 = vpop.f32.mrb[0].mxu0
    %v1000 = vadd.f32 0.0, %v999
    %v1001 = vpop.f32.mrb[0].mxu0
    %1002 = vmatprep.mubr.f32.mxu0 %v848
    %1003 = vmatmul.mubr.f32.gmra.mrb[0].mxu0 %v839
    %v1004 = vpop.f32.mrb[0].mxu0
    %v1005 = vadd.f32 0.0, %v1004
    %v1006 = vpop.f32.mrb[0].mxu0
    %1007 = vmatprep.mubr.f32.mxu0 %v851
    %1008 = vmatmul.mubr.f32.gmra.mrb[0].mxu0 %v841
    %v1009 = vpop.f32.mrb[0].mxu0
    %v1010 = vadd.f32 0.0, %v1009
    %v1011 = vpop.f32.mrb[0].mxu0
    %1012 = vdwg.mxu0
    %v1013 = vmax.f32 %v920, %v1000
    %v1014 = vmax.f32 %v925, %v1005
    %v1015 = vmax.f32 %v930, %v1010
    %vm1016 = vcmask 195584
    %v1018 = vsel %vm1016, %v105, 0
    %v1021 = vsel %vm1016, %v106, 0
    %1023 = vmatprep.subr.mxu0 0.0
    %1024 = vmatpush1.msra.mxu0 %v1013
    %1025 = vmatprep.subr.mxu0 0.0
    %1026 = vmatpush1.msra.mxu0 %v1014
    %1027 = vmatprep.subr.mxu0 0.0
    %1028 = vmatpush1.msra.mxu0 %v1015
    %1029 = vmatprep.subr.mxu0 0.0
    %1030 = vmatpush1.msra.mxu0 0.0
    %1031 = vmatprep.subr.mxu0 0.0
    %1032 = vmatpush1.msra.mxu0 0.0
    %1033 = vmatprep.subr.mxu0 0.0
    %1034 = vmatpush1.msra.mxu0 0.0
    %1035 = vmatprep.subr.mxu0 0.0
    %1036 = vmatpush1.msra.mxu0 0.0
    %1037 = vmatprep.subr.mxu0 0.0
    %1038 = vmatpush1.msra.mxu0 0.0
    %1039 = vmatprep.subr.mxu0 0.0
    %1040 = vmatpush1.msra.mxu0 0.0
    %1041 = vmatprep.subr.mxu0 0.0
    %1042 = vmatpush1.msra.mxu0 0.0
    %1043 = vmatprep.subr.mxu0 0.0
    %1044 = vmatpush1.msra.mxu0 0.0
    %1045 = vmatprep.subr.mxu0 0.0
    %1046 = vmatpush1.msra.mxu0 0.0
    %1047 = vmatprep.subr.mxu0 0.0
    %1048 = vmatpush1.msra.mxu0 0.0
    %1049 = vmatprep.subr.mxu0 0.0
    %1050 = vmatpush1.msra.mxu0 0.0
    %1051 = vmatprep.subr.mxu0 0.0
    %1052 = vmatpush1.msra.mxu0 0.0
    %1053 = vmatprep.subr.mxu0 0.0
    %1054 = vmatpush1.msra.mxu0 0.0
    %1055 = vmatprep.subr.mxu0 0.0
    %1056 = vmatpush1.msra.mxu0 0.0
    %1057 = vmatprep.subr.mxu0 0.0
    %1058 = vmatpush1.msra.mxu0 0.0
    %1059 = vmatprep.subr.mxu0 0.0
    %1060 = vmatpush1.msra.mxu0 0.0
    %1061 = vmatprep.subr.mxu0 0.0
    %1062 = vmatpush1.msra.mxu0 0.0
    %1063 = vmatprep.subr.mxu0 0.0
    %1064 = vmatpush1.msra.mxu0 0.0
    %1065 = vmatprep.subr.mxu0 0.0
    %1066 = vmatpush1.msra.mxu0 0.0
    %1067 = vmatprep.subr.mxu0 0.0
    %1068 = vmatpush1.msra.mxu0 0.0
    %1069 = vmatprep.subr.mxu0 0.0
    %1070 = vmatpush1.msra.mxu0 0.0
    %1071 = vmatprep.subr.mxu0 0.0
    %1072 = vmatpush1.msra.mxu0 0.0
    %1073 = vmatprep.subr.mxu0 0.0
    %1074 = vmatpush1.msra.mxu0 0.0
    %1075 = vmatprep.subr.mxu0 0.0
    %1076 = vmatpush1.msra.mxu0 0.0
    %1077 = vmatprep.subr.mxu0 0.0
    %1078 = vmatpush1.msra.mxu0 0.0
    %1079 = vmatprep.subr.mxu0 0.0
    %1080 = vmatpush1.msra.mxu0 0.0
    %1081 = vmatprep.subr.mxu0 0.0
    %1082 = vmatpush1.msra.mxu0 0.0
    %1083 = vmatprep.subr.mxu0 0.0
    %1084 = vmatpush1.msra.mxu0 0.0
    %1085 = vmatprep.subr.mxu0 0.0
    %1086 = vmatpush1.msra.mxu0 0.0
    %1087 = vmatprep.mubr.f32.mxu0 0.0
    %1088 = vmatmul.mubr.f32.gmra.mrb[0].mxu0 %v1018
    %v1089 = vpop.f32.mrb[0].mxu0
    %v1090 = vadd.f32 0.0, %v1089
    %v1091 = vpop.f32.mrb[0].mxu0
    %1092 = vmatprep.mubr.f32.mxu0 0.0
    %1093 = vmatmul.mubr.f32.gmra.mrb[0].mxu0 %v1021
    %v1094 = vpop.f32.mrb[0].mxu0
    %v1095 = vadd.f32 0.0, %v1094
    %v1096 = vpop.f32.mrb[0].mxu0
    %1097 = vdwg.mxu0
    %v1099 = vsel %vm1016, %v113, 0
    %v1102 = vsel %vm1016, %v114, 0
    %1104 = vmatprep.subr.mxu0 0.0
    %1105 = vmatpush1.msra.mxu0 %v1013
    %1106 = vmatprep.subr.mxu0 0.0
    %1107 = vmatpush1.msra.mxu0 %v1014
    %1108 = vmatprep.subr.mxu0 0.0
    %1109 = vmatpush1.msra.mxu0 %v1015
    %1110 = vmatprep.subr.mxu0 0.0
    %1111 = vmatpush1.msra.mxu0 0.0
    %1112 = vmatprep.subr.mxu0 0.0
    %1113 = vmatpush1.msra.mxu0 0.0
    %1114 = vmatprep.subr.mxu0 0.0
    %1115 = vmatpush1.msra.mxu0 0.0
    %1116 = vmatprep.subr.mxu0 0.0
    %1117 = vmatpush1.msra.mxu0 0.0
    %1118 = vmatprep.subr.mxu0 0.0
    %1119 = vmatpush1.msra.mxu0 0.0
    %1120 = vmatprep.subr.mxu0 0.0
    %1121 = vmatpush1.msra.mxu0 0.0
    %1122 = vmatprep.subr.mxu0 0.0
    %1123 = vmatpush1.msra.mxu0 0.0
    %1124 = vmatprep.subr.mxu0 0.0
    %1125 = vmatpush1.msra.mxu0 0.0
    %1126 = vmatprep.subr.mxu0 0.0
    %1127 = vmatpush1.msra.mxu0 0.0
    %1128 = vmatprep.subr.mxu0 0.0
    %1129 = vmatpush1.msra.mxu0 0.0
    %1130 = vmatprep.subr.mxu0 0.0
    %1131 = vmatpush1.msra.mxu0 0.0
    %1132 = vmatprep.subr.mxu0 0.0
    %1133 = vmatpush1.msra.mxu0 0.0
    %1134 = vmatprep.subr.mxu0 0.0
    %1135 = vmatpush1.msra.mxu0 0.0
    %1136 = vmatprep.subr.mxu0 0.0
    %1137 = vmatpush1.msra.mxu0 0.0
    %1138 = vmatprep.subr.mxu0 0.0
    %1139 = vmatpush1.msra.mxu0 0.0
    %1140 = vmatprep.subr.mxu0 0.0
    %1141 = vmatpush1.msra.mxu0 0.0
    %1142 = vmatprep.subr.mxu0 0.0
    %1143 = vmatpush1.msra.mxu0 0.0
    %1144 = vmatprep.subr.mxu0 0.0
    %1145 = vmatpush1.msra.mxu0 0.0
    %1146 = vmatprep.subr.mxu0 0.0
    %1147 = vmatpush1.msra.mxu0 0.0
    %1148 = vmatprep.subr.mxu0 0.0
    %1149 = vmatpush1.msra.mxu0 0.0
    %1150 = vmatprep.subr.mxu0 0.0
    %1151 = vmatpush1.msra.mxu0 0.0
    %1152 = vmatprep.subr.mxu0 0.0
    %1153 = vmatpush1.msra.mxu0 0.0
    %1154 = vmatprep.subr.mxu0 0.0
    %1155 = vmatpush1.msra.mxu0 0.0
    %1156 = vmatprep.subr.mxu0 0.0
    %1157 = vmatpush1.msra.mxu0 0.0
    %1158 = vmatprep.subr.mxu0 0.0
    %1159 = vmatpush1.msra.mxu0 0.0
    %1160 = vmatprep.subr.mxu0 0.0
    %1161 = vmatpush1.msra.mxu0 0.0
    %1162 = vmatprep.subr.mxu0 0.0
    %1163 = vmatpush1.msra.mxu0 0.0
    %1164 = vmatprep.subr.mxu0 0.0
    %1165 = vmatpush1.msra.mxu0 0.0
    %1166 = vmatprep.subr.mxu0 0.0
    %1167 = vmatpush1.msra.mxu0 0.0
    %1168 = vmatprep.mubr.f32.mxu0 0.0
    %1169 = vmatmul.mubr.f32.gmra.mrb[0].mxu0 %v1099
    %v1170 = vpop.f32.mrb[0].mxu0
    %v1171 = vadd.f32 0.0, %v1170
    %v1172 = vpop.f32.mrb[0].mxu0
    %1173 = vmatprep.mubr.f32.mxu0 0.0
    %1174 = vmatmul.mubr.f32.gmra.mrb[0].mxu0 %v1102
    %v1175 = vpop.f32.mrb[0].mxu0
    %v1176 = vadd.f32 0.0, %v1175
    %v1177 = vpop.f32.mrb[0].mxu0
    %1178 = vdwg.mxu0
    %v1179 = vmax.f32 %v1090, %v1171
    %v1180 = vmax.f32 %v1095, %v1176
    %v1181 = vld [vmem:[#allocation5] sm:$0xff]
    %v1182 = vld [vmem:[#allocation5 + $0x8] sm:$0xff]
    %v1183 = vld [vmem:[#allocation5 + $0x10] sm:$0xff]
    %v1184 = vld [vmem:[#allocation5 + $0x18] sm:$0xff]
    %v1185 = vld [vmem:[#allocation5 + $0x20] sm:$0xff]
    %v1186 = vld [vmem:[#allocation5 + $0x28] sm:$0xff]
    %v1187 = vld [vmem:[#allocation5 + $0x30] sm:$0xff]
    %v1188 = vld [vmem:[#allocation5 + $0x38] sm:$0xff]
    %v1189 = vld [vmem:[#allocation5 + $0x40] sm:$0xff]
    %s1190 = scalar_lea.vmem [#allocation5], 72
    %v1191 = vld [vmem:[%s1190] sm:$0xff]
    %v1192 = vld [vmem:[%s1190 + $0x8] sm:$0xff]
    %v1193 = vld [vmem:[%s1190 + $0x10] sm:$0xff]
    %v1194 = vld [vmem:[%s1190 + $0x18] sm:$0xff]
    %v1195 = vld [vmem:[%s1190 + $0x20] sm:$0xff]
    %v1196 = vld [vmem:[%s1190 + $0x28] sm:$0xff]
    %v1197 = vld [vmem:[%s1190 + $0x30] sm:$0xff]
    %v1198 = vld [vmem:[%s1190 + $0x38] sm:$0xff]
    %v1199 = vld [vmem:[%s1190 + $0x40] sm:$0xff]
    %v1202 = vrot.slane %v1179, 1
    %v1203 = vrot.slane %v1180, 1
    %v1204 = vsel %vm266, %v1202, %v1203
    %vm1205 = vcmask 588800
    %v1206 = vsel %vm1205, %v1204, 0
    %1208 = vmatprep.subr.mxu0 0.0
    %1209 = vmatpush1.msra.mxu0 %v1191
    %1210 = vmatprep.subr.mxu0 0.0
    %1211 = vmatpush1.msra.mxu0 %v1192
    %1212 = vmatprep.subr.mxu0 0.0
    %1213 = vmatpush1.msra.mxu0 %v1193
    %1214 = vmatprep.subr.mxu0 0.0
    %1215 = vmatpush1.msra.mxu0 %v1194
    %1216 = vmatprep.subr.mxu0 0.0
    %1217 = vmatpush1.msra.mxu0 %v1195
    %1218 = vmatprep.subr.mxu0 0.0
    %1219 = vmatpush1.msra.mxu0 %v1196
    %1220 = vmatprep.subr.mxu0 0.0
    %1221 = vmatpush1.msra.mxu0 %v1197
    %1222 = vmatprep.subr.mxu0 0.0
    %1223 = vmatpush1.msra.mxu0 %v1198
    %1224 = vmatprep.subr.mxu0 0.0
    %1225 = vmatpush1.msra.mxu0 %v1199
    %1226 = vmatprep.subr.mxu0 0.0
    %1227 = vmatpush1.msra.mxu0 0.0
    %1228 = vmatprep.subr.mxu0 0.0
    %1229 = vmatpush1.msra.mxu0 0.0
    %1230 = vmatprep.subr.mxu0 0.0
    %1231 = vmatpush1.msra.mxu0 0.0
    %1232 = vmatprep.subr.mxu0 0.0
    %1233 = vmatpush1.msra.mxu0 0.0
    %1234 = vmatprep.subr.mxu0 0.0
    %1235 = vmatpush1.msra.mxu0 0.0
    %1236 = vmatprep.subr.mxu0 0.0
    %1237 = vmatpush1.msra.mxu0 0.0
    %1238 = vmatprep.subr.mxu0 0.0
    %1239 = vmatpush1.msra.mxu0 0.0
    %1240 = vmatprep.subr.mxu0 0.0
    %1241 = vmatpush1.msra.mxu0 0.0
    %1242 = vmatprep.subr.mxu0 0.0
    %1243 = vmatpush1.msra.mxu0 0.0
    %1244 = vmatprep.subr.mxu0 0.0
    %1245 = vmatpush1.msra.mxu0 0.0
    %1246 = vmatprep.subr.mxu0 0.0
    %1247 = vmatpush1.msra.mxu0 0.0
    %1248 = vmatprep.subr.mxu0 0.0
    %1249 = vmatpush1.msra.mxu0 0.0
    %1250 = vmatprep.subr.mxu0 0.0
    %1251 = vmatpush1.msra.mxu0 0.0
    %1252 = vmatprep.subr.mxu0 0.0
    %1253 = vmatpush1.msra.mxu0 0.0
    %1254 = vmatprep.subr.mxu0 0.0
    %1255 = vmatpush1.msra.mxu0 0.0
    %1256 = vmatprep.subr.mxu0 0.0
    %1257 = vmatpush1.msra.mxu0 0.0
    %1258 = vmatprep.subr.mxu0 0.0
    %1259 = vmatpush1.msra.mxu0 0.0
    %1260 = vmatprep.subr.mxu0 0.0
    %1261 = vmatpush1.msra.mxu0 0.0
    %1262 = vmatprep.subr.mxu0 0.0
    %1263 = vmatpush1.msra.mxu0 0.0
    %1264 = vmatprep.subr.mxu0 0.0
    %1265 = vmatpush1.msra.mxu0 0.0
    %1266 = vmatprep.subr.mxu0 0.0
    %1267 = vmatpush1.msra.mxu0 0.0
    %1268 = vmatprep.subr.mxu0 0.0
    %1269 = vmatpush1.msra.mxu0 0.0
    %1270 = vmatprep.subr.mxu0 0.0
    %1271 = vmatpush1.msra.mxu0 0.0
    %1272 = vmatprep.mubr.f32.mxu0 0.0
    %1273 = vmatmul.mubr.f32.gmra.mrb[0].mxu0 %v1206
    %v1274 = vpop.f32.mrb[0].mxu0
    %v1275 = vadd.f32 0.0, %v1274
    %v1276 = vpop.f32.mrb[0].mxu0
    %1277 = vdwg.mxu0
    %v1278 = vsel %vm1205, %v1179, 0
    %1280 = vmatprep.subr.mxu0 0.0
    %1281 = vmatpush1.msra.mxu0 %v1181
    %1282 = vmatprep.subr.mxu0 0.0
    %1283 = vmatpush1.msra.mxu0 %v1182
    %1284 = vmatprep.subr.mxu0 0.0
    %1285 = vmatpush1.msra.mxu0 %v1183
    %1286 = vmatprep.subr.mxu0 0.0
    %1287 = vmatpush1.msra.mxu0 %v1184
    %1288 = vmatprep.subr.mxu0 0.0
    %1289 = vmatpush1.msra.mxu0 %v1185
    %1290 = vmatprep.subr.mxu0 0.0
    %1291 = vmatpush1.msra.mxu0 %v1186
    %1292 = vmatprep.subr.mxu0 0.0
    %1293 = vmatpush1.msra.mxu0 %v1187
    %1294 = vmatprep.subr.mxu0 0.0
    %1295 = vmatpush1.msra.mxu0 %v1188
    %1296 = vmatprep.subr.mxu0 0.0
    %1297 = vmatpush1.msra.mxu0 %v1189
    %1298 = vmatprep.subr.mxu0 0.0
    %1299 = vmatpush1.msra.mxu0 0.0
    %1300 = vmatprep.subr.mxu0 0.0
    %1301 = vmatpush1.msra.mxu0 0.0
    %1302 = vmatprep.subr.mxu0 0.0
    %1303 = vmatpush1.msra.mxu0 0.0
    %1304 = vmatprep.subr.mxu0 0.0
    %1305 = vmatpush1.msra.mxu0 0.0
    %1306 = vmatprep.subr.mxu0 0.0
    %1307 = vmatpush1.msra.mxu0 0.0
    %1308 = vmatprep.subr.mxu0 0.0
    %1309 = vmatpush1.msra.mxu0 0.0
    %1310 = vmatprep.subr.mxu0 0.0
    %1311 = vmatpush1.msra.mxu0 0.0
    %1312 = vmatprep.subr.mxu0 0.0
    %1313 = vmatpush1.msra.mxu0 0.0
    %1314 = vmatprep.subr.mxu0 0.0
    %1315 = vmatpush1.msra.mxu0 0.0
    %1316 = vmatprep.subr.mxu0 0.0
    %1317 = vmatpush1.msra.mxu0 0.0
    %1318 = vmatprep.subr.mxu0 0.0
    %1319 = vmatpush1.msra.mxu0 0.0
    %1320 = vmatprep.subr.mxu0 0.0
    %1321 = vmatpush1.msra.mxu0 0.0
    %1322 = vmatprep.subr.mxu0 0.0
    %1323 = vmatpush1.msra.mxu0 0.0
    %1324 = vmatprep.subr.mxu0 0.0
    %1325 = vmatpush1.msra.mxu0 0.0
    %1326 = vmatprep.subr.mxu0 0.0
    %1327 = vmatpush1.msra.mxu0 0.0
    %1328 = vmatprep.subr.mxu0 0.0
    %1329 = vmatpush1.msra.mxu0 0.0
    %1330 = vmatprep.subr.mxu0 0.0
    %1331 = vmatpush1.msra.mxu0 0.0
    %1332 = vmatprep.subr.mxu0 0.0
    %1333 = vmatpush1.msra.mxu0 0.0
    %1334 = vmatprep.subr.mxu0 0.0
    %1335 = vmatpush1.msra.mxu0 0.0
    %1336 = vmatprep.subr.mxu0 0.0
    %1337 = vmatpush1.msra.mxu0 0.0
    %1338 = vmatprep.subr.mxu0 0.0
    %1339 = vmatpush1.msra.mxu0 0.0
    %1340 = vmatprep.subr.mxu0 0.0
    %1341 = vmatpush1.msra.mxu0 0.0
    %1342 = vmatprep.subr.mxu0 0.0
    %1343 = vmatpush1.msra.mxu0 0.0
    %1344 = vmatprep.mubr.f32.mxu0 0.0
    %1345 = vmatmul.mubr.f32.gmra.mrb[0].mxu0 %v1278
    %v1346 = vpop.f32.mrb[0].mxu0
    %v1347 = vadd.f32 %v1275, %v1346
    %v1348 = vpop.f32.mrb[0].mxu0
    %1349 = vdwg.mxu0
    %s1350 = scalar_lea.vmem [#allocation5], 144
    %v1351 = vld [vmem:[%s1350] sm:$0xff]
    %v1352 = vld [vmem:[%s1350 + $0x8] sm:$0xff]
    %v1353 = vld [vmem:[%s1350 + $0x10] sm:$0xff]
    %v1354 = vld [vmem:[%s1350 + $0x18] sm:$0xff]
    %v1355 = vld [vmem:[%s1350 + $0x20] sm:$0xff]
    %v1356 = vld [vmem:[%s1350 + $0x28] sm:$0xff]
    %v1357 = vld [vmem:[%s1350 + $0x30] sm:$0xff]
    %v1358 = vld [vmem:[%s1350 + $0x38] sm:$0xff]
    %v1359 = vld [vmem:[%s1350 + $0x40] sm:$0xff]
    %v1360 = vrot.slane %v1179, 2
    %v1361 = vrot.slane %v1180, 2
    %v1362 = vsel %vm475, %v1360, %v1361
    %v1363 = vsel %vm1205, %v1362, 0
    %1365 = vmatprep.subr.mxu0 0.0
    %1366 = vmatpush1.msra.mxu0 %v1351
    %1367 = vmatprep.subr.mxu0 0.0
    %1368 = vmatpush1.msra.mxu0 %v1352
    %1369 = vmatprep.subr.mxu0 0.0
    %1370 = vmatpush1.msra.mxu0 %v1353
    %1371 = vmatprep.subr.mxu0 0.0
    %1372 = vmatpush1.msra.mxu0 %v1354
    %1373 = vmatprep.subr.mxu0 0.0
    %1374 = vmatpush1.msra.mxu0 %v1355
    %1375 = vmatprep.subr.mxu0 0.0
    %1376 = vmatpush1.msra.mxu0 %v1356
    %1377 = vmatprep.subr.mxu0 0.0
    %1378 = vmatpush1.msra.mxu0 %v1357
    %1379 = vmatprep.subr.mxu0 0.0
    %1380 = vmatpush1.msra.mxu0 %v1358
    %1381 = vmatprep.subr.mxu0 0.0
    %1382 = vmatpush1.msra.mxu0 %v1359
    %1383 = vmatprep.subr.mxu0 0.0
    %1384 = vmatpush1.msra.mxu0 0.0
    %1385 = vmatprep.subr.mxu0 0.0
    %1386 = vmatpush1.msra.mxu0 0.0
    %1387 = vmatprep.subr.mxu0 0.0
    %1388 = vmatpush1.msra.mxu0 0.0
    %1389 = vmatprep.subr.mxu0 0.0
    %1390 = vmatpush1.msra.mxu0 0.0
    %1391 = vmatprep.subr.mxu0 0.0
    %1392 = vmatpush1.msra.mxu0 0.0
    %1393 = vmatprep.subr.mxu0 0.0
    %1394 = vmatpush1.msra.mxu0 0.0
    %1395 = vmatprep.subr.mxu0 0.0
    %1396 = vmatpush1.msra.mxu0 0.0
    %1397 = vmatprep.subr.mxu0 0.0
    %1398 = vmatpush1.msra.mxu0 0.0
    %1399 = vmatprep.subr.mxu0 0.0
    %1400 = vmatpush1.msra.mxu0 0.0
    %1401 = vmatprep.subr.mxu0 0.0
    %1402 = vmatpush1.msra.mxu0 0.0
    %1403 = vmatprep.subr.mxu0 0.0
    %1404 = vmatpush1.msra.mxu0 0.0
    %1405 = vmatprep.subr.mxu0 0.0
    %1406 = vmatpush1.msra.mxu0 0.0
    %1407 = vmatprep.subr.mxu0 0.0
    %1408 = vmatpush1.msra.mxu0 0.0
    %1409 = vmatprep.subr.mxu0 0.0
    %1410 = vmatpush1.msra.mxu0 0.0
    %1411 = vmatprep.subr.mxu0 0.0
    %1412 = vmatpush1.msra.mxu0 0.0
    %1413 = vmatprep.subr.mxu0 0.0
    %1414 = vmatpush1.msra.mxu0 0.0
    %1415 = vmatprep.subr.mxu0 0.0
    %1416 = vmatpush1.msra.mxu0 0.0
    %1417 = vmatprep.subr.mxu0 0.0
    %1418 = vmatpush1.msra.mxu0 0.0
    %1419 = vmatprep.subr.mxu0 0.0
    %1420 = vmatpush1.msra.mxu0 0.0
    %1421 = vmatprep.subr.mxu0 0.0
    %1422 = vmatpush1.msra.mxu0 0.0
    %1423 = vmatprep.subr.mxu0 0.0
    %1424 = vmatpush1.msra.mxu0 0.0
    %1425 = vmatprep.subr.mxu0 0.0
    %1426 = vmatpush1.msra.mxu0 0.0
    %1427 = vmatprep.subr.mxu0 0.0
    %1428 = vmatpush1.msra.mxu0 0.0
    %1429 = vmatprep.mubr.f32.mxu0 0.0
    %1430 = vmatmul.mubr.f32.gmra.mrb[0].mxu0 %v1363
    %v1431 = vpop.f32.mrb[0].mxu0
    %v1432 = vadd.f32 0.0, %v1431
    %v1433 = vpop.f32.mrb[0].mxu0
    %1434 = vdwg.mxu0
    %v1435 = vadd.f32 %v1347, %v1432
    %s1436 = scalar_lea.vmem [#allocation5], 216
    %v1437 = vld [vmem:[%s1436] sm:$0xff]
    %v1438 = vld [vmem:[%s1436 + $0x8] sm:$0xff]
    %v1439 = vld [vmem:[%s1436 + $0x10] sm:$0xff]
    %v1440 = vld [vmem:[%s1436 + $0x18] sm:$0xff]
    %v1441 = vld [vmem:[%s1436 + $0x20] sm:$0xff]
    %v1442 = vld [vmem:[%s1436 + $0x28] sm:$0xff]
    %v1443 = vld [vmem:[%s1436 + $0x30] sm:$0xff]
    %v1444 = vld [vmem:[%s1436 + $0x38] sm:$0xff]
    %v1445 = vld [vmem:[%s1436 + $0x40] sm:$0xff]
    %v1446 = vrot.slane %v1179, 3
    %v1447 = vrot.slane %v1180, 3
    %v1448 = vsel %vm593, %v1446, %v1447
    %v1449 = vsel %vm1205, %v1448, 0
    %1451 = vmatprep.subr.mxu0 0.0
    %1452 = vmatpush1.msra.mxu0 %v1437
    %1453 = vmatprep.subr.mxu0 0.0
    %1454 = vmatpush1.msra.mxu0 %v1438
    %1455 = vmatprep.subr.mxu0 0.0
    %1456 = vmatpush1.msra.mxu0 %v1439
    %1457 = vmatprep.subr.mxu0 0.0
    %1458 = vmatpush1.msra.mxu0 %v1440
    %1459 = vmatprep.subr.mxu0 0.0
    %1460 = vmatpush1.msra.mxu0 %v1441
    %1461 = vmatprep.subr.mxu0 0.0
    %1462 = vmatpush1.msra.mxu0 %v1442
    %1463 = vmatprep.subr.mxu0 0.0
    %1464 = vmatpush1.msra.mxu0 %v1443
    %1465 = vmatprep.subr.mxu0 0.0
    %1466 = vmatpush1.msra.mxu0 %v1444
    %1467 = vmatprep.subr.mxu0 0.0
    %1468 = vmatpush1.msra.mxu0 %v1445
    %1469 = vmatprep.subr.mxu0 0.0
    %1470 = vmatpush1.msra.mxu0 0.0
    %1471 = vmatprep.subr.mxu0 0.0
    %1472 = vmatpush1.msra.mxu0 0.0
    %1473 = vmatprep.subr.mxu0 0.0
    %1474 = vmatpush1.msra.mxu0 0.0
    %1475 = vmatprep.subr.mxu0 0.0
    %1476 = vmatpush1.msra.mxu0 0.0
    %1477 = vmatprep.subr.mxu0 0.0
    %1478 = vmatpush1.msra.mxu0 0.0
    %1479 = vmatprep.subr.mxu0 0.0
    %1480 = vmatpush1.msra.mxu0 0.0
    %1481 = vmatprep.subr.mxu0 0.0
    %1482 = vmatpush1.msra.mxu0 0.0
    %1483 = vmatprep.subr.mxu0 0.0
    %1484 = vmatpush1.msra.mxu0 0.0
    %1485 = vmatprep.subr.mxu0 0.0
    %1486 = vmatpush1.msra.mxu0 0.0
    %1487 = vmatprep.subr.mxu0 0.0
    %1488 = vmatpush1.msra.mxu0 0.0
    %1489 = vmatprep.subr.mxu0 0.0
    %1490 = vmatpush1.msra.mxu0 0.0
    %1491 = vmatprep.subr.mxu0 0.0
    %1492 = vmatpush1.msra.mxu0 0.0
    %1493 = vmatprep.subr.mxu0 0.0
    %1494 = vmatpush1.msra.mxu0 0.0
    %1495 = vmatprep.subr.mxu0 0.0
    %1496 = vmatpush1.msra.mxu0 0.0
    %1497 = vmatprep.subr.mxu0 0.0
    %1498 = vmatpush1.msra.mxu0 0.0
    %1499 = vmatprep.subr.mxu0 0.0
    %1500 = vmatpush1.msra.mxu0 0.0
    %1501 = vmatprep.subr.mxu0 0.0
    %1502 = vmatpush1.msra.mxu0 0.0
    %1503 = vmatprep.subr.mxu0 0.0
    %1504 = vmatpush1.msra.mxu0 0.0
    %1505 = vmatprep.subr.mxu0 0.0
    %1506 = vmatpush1.msra.mxu0 0.0
    %1507 = vmatprep.subr.mxu0 0.0
    %1508 = vmatpush1.msra.mxu0 0.0
    %1509 = vmatprep.subr.mxu0 0.0
    %1510 = vmatpush1.msra.mxu0 0.0
    %1511 = vmatprep.subr.mxu0 0.0
    %1512 = vmatpush1.msra.mxu0 0.0
    %1513 = vmatprep.subr.mxu0 0.0
    %1514 = vmatpush1.msra.mxu0 0.0
    %1515 = vmatprep.mubr.f32.mxu0 0.0
    %1516 = vmatmul.mubr.f32.gmra.mrb[0].mxu0 %v1449
    %v1517 = vpop.f32.mrb[0].mxu0
    %v1518 = vadd.f32 0.0, %v1517
    %v1519 = vpop.f32.mrb[0].mxu0
    %1520 = vdwg.mxu0
    %v1521 = vadd.f32 %v1435, %v1518
    %s1522 = scalar_lea.vmem [#allocation5], 288
    %v1523 = vld [vmem:[%s1522] sm:$0xff]
    %v1524 = vld [vmem:[%s1522 + $0x8] sm:$0xff]
    %v1525 = vld [vmem:[%s1522 + $0x10] sm:$0xff]
    %v1526 = vld [vmem:[%s1522 + $0x18] sm:$0xff]
    %v1527 = vld [vmem:[%s1522 + $0x20] sm:$0xff]
    %v1528 = vld [vmem:[%s1522 + $0x28] sm:$0xff]
    %v1529 = vld [vmem:[%s1522 + $0x30] sm:$0xff]
    %v1530 = vld [vmem:[%s1522 + $0x38] sm:$0xff]
    %v1531 = vld [vmem:[%s1522 + $0x40] sm:$0xff]
    %v1532 = vrot.slane %v1179, 4
    %v1533 = vrot.slane %v1180, 4
    %v1534 = vsel %vm281, %v1532, %v1533
    %v1535 = vsel %vm1205, %v1534, 0
    %1537 = vmatprep.subr.mxu0 0.0
    %1538 = vmatpush1.msra.mxu0 %v1523
    %1539 = vmatprep.subr.mxu0 0.0
    %1540 = vmatpush1.msra.mxu0 %v1524
    %1541 = vmatprep.subr.mxu0 0.0
    %1542 = vmatpush1.msra.mxu0 %v1525
    %1543 = vmatprep.subr.mxu0 0.0
    %1544 = vmatpush1.msra.mxu0 %v1526
    %1545 = vmatprep.subr.mxu0 0.0
    %1546 = vmatpush1.msra.mxu0 %v1527
    %1547 = vmatprep.subr.mxu0 0.0
    %1548 = vmatpush1.msra.mxu0 %v1528
    %1549 = vmatprep.subr.mxu0 0.0
    %1550 = vmatpush1.msra.mxu0 %v1529
    %1551 = vmatprep.subr.mxu0 0.0
    %1552 = vmatpush1.msra.mxu0 %v1530
    %1553 = vmatprep.subr.mxu0 0.0
    %1554 = vmatpush1.msra.mxu0 %v1531
    %1555 = vmatprep.subr.mxu0 0.0
    %1556 = vmatpush1.msra.mxu0 0.0
    %1557 = vmatprep.subr.mxu0 0.0
    %1558 = vmatpush1.msra.mxu0 0.0
    %1559 = vmatprep.subr.mxu0 0.0
    %1560 = vmatpush1.msra.mxu0 0.0
    %1561 = vmatprep.subr.mxu0 0.0
    %1562 = vmatpush1.msra.mxu0 0.0
    %1563 = vmatprep.subr.mxu0 0.0
    %1564 = vmatpush1.msra.mxu0 0.0
    %1565 = vmatprep.subr.mxu0 0.0
    %1566 = vmatpush1.msra.mxu0 0.0
    %1567 = vmatprep.subr.mxu0 0.0
    %1568 = vmatpush1.msra.mxu0 0.0
    %1569 = vmatprep.subr.mxu0 0.0
    %1570 = vmatpush1.msra.mxu0 0.0
    %1571 = vmatprep.subr.mxu0 0.0
    %1572 = vmatpush1.msra.mxu0 0.0
    %1573 = vmatprep.subr.mxu0 0.0
    %1574 = vmatpush1.msra.mxu0 0.0
    %1575 = vmatprep.subr.mxu0 0.0
    %1576 = vmatpush1.msra.mxu0 0.0
    %1577 = vmatprep.subr.mxu0 0.0
    %1578 = vmatpush1.msra.mxu0 0.0
    %1579 = vmatprep.subr.mxu0 0.0
    %1580 = vmatpush1.msra.mxu0 0.0
    %1581 = vmatprep.subr.mxu0 0.0
    %1582 = vmatpush1.msra.mxu0 0.0
    %1583 = vmatprep.subr.mxu0 0.0
    %1584 = vmatpush1.msra.mxu0 0.0
    %1585 = vmatprep.subr.mxu0 0.0
    %1586 = vmatpush1.msra.mxu0 0.0
    %1587 = vmatprep.subr.mxu0 0.0
    %1588 = vmatpush1.msra.mxu0 0.0
    %1589 = vmatprep.subr.mxu0 0.0
    %1590 = vmatpush1.msra.mxu0 0.0
    %1591 = vmatprep.subr.mxu0 0.0
    %1592 = vmatpush1.msra.mxu0 0.0
    %1593 = vmatprep.subr.mxu0 0.0
    %1594 = vmatpush1.msra.mxu0 0.0
    %1595 = vmatprep.subr.mxu0 0.0
    %1596 = vmatpush1.msra.mxu0 0.0
    %1597 = vmatprep.subr.mxu0 0.0
    %1598 = vmatpush1.msra.mxu0 0.0
    %1599 = vmatprep.subr.mxu0 0.0
    %1600 = vmatpush1.msra.mxu0 0.0
    %1601 = vmatprep.mubr.f32.mxu0 0.0
    %1602 = vmatmul.mubr.f32.gmra.mrb[0].mxu0 %v1535
    %v1603 = vpop.f32.mrb[0].mxu0
    %v1604 = vadd.f32 0.0, %v1603
    %v1605 = vpop.f32.mrb[0].mxu0
    %1606 = vdwg.mxu0
    %v1607 = vadd.f32 %v1521, %v1604
    %v1608 = vld [vmem:[%s4] sm:$0x1]
    %v1610 = vlaneseq
    %v1611 = vshrl.u32 %v1610, 7
    %v1612 = vsub.s32 0, %v1611
    %v1613 = vrot.slane %v1608, %v1612
    %v1615 = vadd.f32 %v1607, %v1613
    %v1616 = vmax.f32 %v1615, 0.0
    %1617 = vmatprep.subr.mxu0 0.0
    %1618 = vmatpush1.msra.mxu0 %v168
    %1619 = vmatprep.subr.mxu0 0.0
    %1620 = vmatpush1.msra.mxu0 %v169
    %1621 = vmatprep.subr.mxu0 0.0
    %1622 = vmatpush1.msra.mxu0 %v170
    %1623 = vmatprep.subr.mxu0 0.0
    %1624 = vmatpush1.msra.mxu0 %v171
    %1625 = vmatprep.subr.mxu0 0.0
    %1626 = vmatpush1.msra.mxu0 %v172
    %1627 = vmatprep.subr.mxu0 0.0
    %1628 = vmatpush1.msra.mxu0 %v173
    %1629 = vmatprep.subr.mxu0 0.0
    %1630 = vmatpush1.msra.mxu0 %v174
    %1631 = vmatprep.subr.mxu0 0.0
    %1632 = vmatpush1.msra.mxu0 %v175
    %1633 = vmatprep.subr.mxu0 0.0
    %1634 = vmatpush1.msra.mxu0 %v176
    %1635 = vmatprep.subr.mxu0 0.0
    %1636 = vmatpush1.msra.mxu0 %v177
    %1637 = vmatprep.subr.mxu0 0.0
    %1638 = vmatpush1.msra.mxu0 %v178
    %1639 = vmatprep.subr.mxu0 0.0
    %1640 = vmatpush1.msra.mxu0 %v179
    %1641 = vmatprep.subr.mxu0 0.0
    %1642 = vmatpush1.msra.mxu0 %v180
    %1643 = vmatprep.subr.mxu0 0.0
    %1644 = vmatpush1.msra.mxu0 %v181
    %1645 = vmatprep.subr.mxu0 0.0
    %1646 = vmatpush1.msra.mxu0 %v182
    %1647 = vmatprep.subr.mxu0 0.0
    %1648 = vmatpush1.msra.mxu0 %v183
    %1649 = vmatprep.subr.mxu0 0.0
    %1650 = vmatpush1.msra.mxu0 0.0
    %1651 = vmatprep.subr.mxu0 0.0
    %1652 = vmatpush1.msra.mxu0 0.0
    %1653 = vmatprep.subr.mxu0 0.0
    %1654 = vmatpush1.msra.mxu0 0.0
    %1655 = vmatprep.subr.mxu0 0.0
    %1656 = vmatpush1.msra.mxu0 0.0
    %1657 = vmatprep.subr.mxu0 0.0
    %1658 = vmatpush1.msra.mxu0 0.0
    %1659 = vmatprep.subr.mxu0 0.0
    %1660 = vmatpush1.msra.mxu0 0.0
    %1661 = vmatprep.subr.mxu0 0.0
    %1662 = vmatpush1.msra.mxu0 0.0
    %1663 = vmatprep.subr.mxu0 0.0
    %1664 = vmatpush1.msra.mxu0 0.0
    %1665 = vmatprep.subr.mxu0 0.0
    %1666 = vmatpush1.msra.mxu0 0.0
    %1667 = vmatprep.subr.mxu0 0.0
    %1668 = vmatpush1.msra.mxu0 0.0
    %1669 = vmatprep.subr.mxu0 0.0
    %1670 = vmatpush1.msra.mxu0 0.0
    %1671 = vmatprep.subr.mxu0 0.0
    %1672 = vmatpush1.msra.mxu0 0.0
    %1673 = vmatprep.subr.mxu0 0.0
    %1674 = vmatpush1.msra.mxu0 0.0
    %1675 = vmatprep.subr.mxu0 0.0
    %1676 = vmatpush1.msra.mxu0 0.0
    %1677 = vmatprep.subr.mxu0 0.0
    %1678 = vmatpush1.msra.mxu0 0.0
    %1679 = vmatprep.subr.mxu0 0.0
    %1680 = vmatpush1.msra.mxu0 0.0
    %1681 = vmatprep.mubr.f32.mxu0 0.0
    %1682 = vmatmul.mubr.f32.gmra.mrb[0].mxu0 %v1616
    %v1683 = vpop.f32.mrb[0].mxu0
    %v1684 = vadd.f32 0.0, %v1683
    %v1685 = vpop.f32.mrb[0].mxu0
    %1686 = vdwg.mxu0
    %1687 = vmatprep.subr.mxu0 0.0
    %1688 = vmatpush1.msra.mxu0 %v223
    %1689 = vmatprep.subr.mxu0 0.0
    %1690 = vmatpush1.msra.mxu0 %v224
    %1691 = vmatprep.subr.mxu0 0.0
    %1692 = vmatpush1.msra.mxu0 %v225
    %1693 = vmatprep.subr.mxu0 0.0
    %1694 = vmatpush1.msra.mxu0 %v226
    %1695 = vmatprep.subr.mxu0 0.0
    %1696 = vmatpush1.msra.mxu0 %v227
    %1697 = vmatprep.subr.mxu0 0.0
    %1698 = vmatpush1.msra.mxu0 %v228
    %1699 = vmatprep.subr.mxu0 0.0
    %1700 = vmatpush1.msra.mxu0 %v229
    %1701 = vmatprep.subr.mxu0 0.0
    %1702 = vmatpush1.msra.mxu0 %v230
    %1703 = vmatprep.subr.mxu0 0.0
    %1704 = vmatpush1.msra.mxu0 %v231
    %1705 = vmatprep.subr.mxu0 0.0
    %1706 = vmatpush1.msra.mxu0 %v232
    %1707 = vmatprep.subr.mxu0 0.0
    %1708 = vmatpush1.msra.mxu0 %v233
    %1709 = vmatprep.subr.mxu0 0.0
    %1710 = vmatpush1.msra.mxu0 %v234
    %1711 = vmatprep.subr.mxu0 0.0
    %1712 = vmatpush1.msra.mxu0 %v235
    %1713 = vmatprep.subr.mxu0 0.0
    %1714 = vmatpush1.msra.mxu0 %v236
    %1715 = vmatprep.subr.mxu0 0.0
    %1716 = vmatpush1.msra.mxu0 %v237
    %1717 = vmatprep.subr.mxu0 0.0
    %1718 = vmatpush1.msra.mxu0 %v238
    %1719 = vmatprep.subr.mxu0 0.0
    %1720 = vmatpush1.msra.mxu0 0.0
    %1721 = vmatprep.subr.mxu0 0.0
    %1722 = vmatpush1.msra.mxu0 0.0
    %1723 = vmatprep.subr.mxu0 0.0
    %1724 = vmatpush1.msra.mxu0 0.0
    %1725 = vmatprep.subr.mxu0 0.0
    %1726 = vmatpush1.msra.mxu0 0.0
    %1727 = vmatprep.subr.mxu0 0.0
    %1728 = vmatpush1.msra.mxu0 0.0
    %1729 = vmatprep.subr.mxu0 0.0
    %1730 = vmatpush1.msra.mxu0 0.0
    %1731 = vmatprep.subr.mxu0 0.0
    %1732 = vmatpush1.msra.mxu0 0.0
    %1733 = vmatprep.subr.mxu0 0.0
    %1734 = vmatpush1.msra.mxu0 0.0
    %1735 = vmatprep.subr.mxu0 0.0
    %1736 = vmatpush1.msra.mxu0 0.0
    %1737 = vmatprep.subr.mxu0 0.0
    %1738 = vmatpush1.msra.mxu0 0.0
    %1739 = vmatprep.subr.mxu0 0.0
    %1740 = vmatpush1.msra.mxu0 0.0
    %1741 = vmatprep.subr.mxu0 0.0
    %1742 = vmatpush1.msra.mxu0 0.0
    %1743 = vmatprep.subr.mxu0 0.0
    %1744 = vmatpush1.msra.mxu0 0.0
    %1745 = vmatprep.subr.mxu0 0.0
    %1746 = vmatpush1.msra.mxu0 0.0
    %1747 = vmatprep.subr.mxu0 0.0
    %1748 = vmatpush1.msra.mxu0 0.0
    %1749 = vmatprep.subr.mxu0 0.0
    %1750 = vmatpush1.msra.mxu0 0.0
    %1751 = vmatprep.mubr.f32.mxu0 0.0
    %1752 = vmatmul.mubr.f32.gmra.mrb[0].mxu0 %v1616
    %v1753 = vpop.f32.mrb[0].mxu0
    %v1754 = vadd.f32 0.0, %v1753
    %v1755 = vpop.f32.mrb[0].mxu0
    %1756 = vdwg.mxu0
    %v1757 = vmax.f32 %v1684, %v1754
    %vm1758 = vcmask 64512
    %v1759 = vsel %vm1758, %v105, 0
    %1761 = vmatprep.subr.mxu0 0.0
    %1762 = vmatpush1.msra.mxu0 %v1757
    %1763 = vmatprep.subr.mxu0 0.0
    %1764 = vmatpush1.msra.mxu0 0.0
    %1765 = vmatprep.subr.mxu0 0.0
    %1766 = vmatpush1.msra.mxu0 0.0
    %1767 = vmatprep.subr.mxu0 0.0
    %1768 = vmatpush1.msra.mxu0 0.0
    %1769 = vmatprep.subr.mxu0 0.0
    %1770 = vmatpush1.msra.mxu0 0.0
    %1771 = vmatprep.subr.mxu0 0.0
    %1772 = vmatpush1.msra.mxu0 0.0
    %1773 = vmatprep.subr.mxu0 0.0
    %1774 = vmatpush1.msra.mxu0 0.0
    %1775 = vmatprep.subr.mxu0 0.0
    %1776 = vmatpush1.msra.mxu0 0.0
    %1777 = vmatprep.subr.mxu0 0.0
    %1778 = vmatpush1.msra.mxu0 0.0
    %1779 = vmatprep.subr.mxu0 0.0
    %1780 = vmatpush1.msra.mxu0 0.0
    %1781 = vmatprep.subr.mxu0 0.0
    %1782 = vmatpush1.msra.mxu0 0.0
    %1783 = vmatprep.subr.mxu0 0.0
    %1784 = vmatpush1.msra.mxu0 0.0
    %1785 = vmatprep.subr.mxu0 0.0
    %1786 = vmatpush1.msra.mxu0 0.0
    %1787 = vmatprep.subr.mxu0 0.0
    %1788 = vmatpush1.msra.mxu0 0.0
    %1789 = vmatprep.subr.mxu0 0.0
    %1790 = vmatpush1.msra.mxu0 0.0
    %1791 = vmatprep.subr.mxu0 0.0
    %1792 = vmatpush1.msra.mxu0 0.0
    %1793 = vmatprep.subr.mxu0 0.0
    %1794 = vmatpush1.msra.mxu0 0.0
    %1795 = vmatprep.subr.mxu0 0.0
    %1796 = vmatpush1.msra.mxu0 0.0
    %1797 = vmatprep.subr.mxu0 0.0
    %1798 = vmatpush1.msra.mxu0 0.0
    %1799 = vmatprep.subr.mxu0 0.0
    %1800 = vmatpush1.msra.mxu0 0.0
    %1801 = vmatprep.subr.mxu0 0.0
    %1802 = vmatpush1.msra.mxu0 0.0
    %1803 = vmatprep.subr.mxu0 0.0
    %1804 = vmatpush1.msra.mxu0 0.0
    %1805 = vmatprep.subr.mxu0 0.0
    %1806 = vmatpush1.msra.mxu0 0.0
    %1807 = vmatprep.subr.mxu0 0.0
    %1808 = vmatpush1.msra.mxu0 0.0
    %1809 = vmatprep.subr.mxu0 0.0
    %1810 = vmatpush1.msra.mxu0 0.0
    %1811 = vmatprep.subr.mxu0 0.0
    %1812 = vmatpush1.msra.mxu0 0.0
    %1813 = vmatprep.subr.mxu0 0.0
    %1814 = vmatpush1.msra.mxu0 0.0
    %1815 = vmatprep.subr.mxu0 0.0
    %1816 = vmatpush1.msra.mxu0 0.0
    %1817 = vmatprep.subr.mxu0 0.0
    %1818 = vmatpush1.msra.mxu0 0.0
    %1819 = vmatprep.subr.mxu0 0.0
    %1820 = vmatpush1.msra.mxu0 0.0
    %1821 = vmatprep.subr.mxu0 0.0
    %1822 = vmatpush1.msra.mxu0 0.0
    %1823 = vmatprep.subr.mxu0 0.0
    %1824 = vmatpush1.msra.mxu0 0.0
    %1825 = vmatprep.mubr.f32.mxu0 0.0
    %1826 = vmatmul.mubr.f32.gmra.mrb[0].mxu0 %v1759
    %v1827 = vpop.f32.mrb[0].mxu0
    %v1828 = vadd.f32 0.0, %v1827
    %v1829 = vpop.f32.mrb[0].mxu0
    %1830 = vdwg.mxu0
    %v1831 = vsel %vm1758, %v113, 0
    %1833 = vmatprep.subr.mxu0 0.0
    %1834 = vmatpush1.msra.mxu0 %v1757
    %1835 = vmatprep.subr.mxu0 0.0
    %1836 = vmatpush1.msra.mxu0 0.0
    %1837 = vmatprep.subr.mxu0 0.0
    %1838 = vmatpush1.msra.mxu0 0.0
    %1839 = vmatprep.subr.mxu0 0.0
    %1840 = vmatpush1.msra.mxu0 0.0
    %1841 = vmatprep.subr.mxu0 0.0
    %1842 = vmatpush1.msra.mxu0 0.0
    %1843 = vmatprep.subr.mxu0 0.0
    %1844 = vmatpush1.msra.mxu0 0.0
    %1845 = vmatprep.subr.mxu0 0.0
    %1846 = vmatpush1.msra.mxu0 0.0
    %1847 = vmatprep.subr.mxu0 0.0
    %1848 = vmatpush1.msra.mxu0 0.0
    %1849 = vmatprep.subr.mxu0 0.0
    %1850 = vmatpush1.msra.mxu0 0.0
    %1851 = vmatprep.subr.mxu0 0.0
    %1852 = vmatpush1.msra.mxu0 0.0
    %1853 = vmatprep.subr.mxu0 0.0
    %1854 = vmatpush1.msra.mxu0 0.0
    %1855 = vmatprep.subr.mxu0 0.0
    %1856 = vmatpush1.msra.mxu0 0.0
    %1857 = vmatprep.subr.mxu0 0.0
    %1858 = vmatpush1.msra.mxu0 0.0
    %1859 = vmatprep.subr.mxu0 0.0
    %1860 = vmatpush1.msra.mxu0 0.0
    %1861 = vmatprep.subr.mxu0 0.0
    %1862 = vmatpush1.msra.mxu0 0.0
    %1863 = vmatprep.subr.mxu0 0.0
    %1864 = vmatpush1.msra.mxu0 0.0
    %1865 = vmatprep.subr.mxu0 0.0
    %1866 = vmatpush1.msra.mxu0 0.0
    %1867 = vmatprep.subr.mxu0 0.0
    %1868 = vmatpush1.msra.mxu0 0.0
    %1869 = vmatprep.subr.mxu0 0.0
    %1870 = vmatpush1.msra.mxu0 0.0
    %1871 = vmatprep.subr.mxu0 0.0
    %1872 = vmatpush1.msra.mxu0 0.0
    %1873 = vmatprep.subr.mxu0 0.0
    %1874 = vmatpush1.msra.mxu0 0.0
    %1875 = vmatprep.subr.mxu0 0.0
    %1876 = vmatpush1.msra.mxu0 0.0
    %1877 = vmatprep.subr.mxu0 0.0
    %1878 = vmatpush1.msra.mxu0 0.0
    %1879 = vmatprep.subr.mxu0 0.0
    %1880 = vmatpush1.msra.mxu0 0.0
    %1881 = vmatprep.subr.mxu0 0.0
    %1882 = vmatpush1.msra.mxu0 0.0
    %1883 = vmatprep.subr.mxu0 0.0
    %1884 = vmatpush1.msra.mxu0 0.0
    %1885 = vmatprep.subr.mxu0 0.0
    %1886 = vmatpush1.msra.mxu0 0.0
    %1887 = vmatprep.subr.mxu0 0.0
    %1888 = vmatpush1.msra.mxu0 0.0
    %1889 = vmatprep.subr.mxu0 0.0
    %1890 = vmatpush1.msra.mxu0 0.0
    %1891 = vmatprep.subr.mxu0 0.0
    %1892 = vmatpush1.msra.mxu0 0.0
    %1893 = vmatprep.subr.mxu0 0.0
    %1894 = vmatpush1.msra.mxu0 0.0
    %1895 = vmatprep.subr.mxu0 0.0
    %1896 = vmatpush1.msra.mxu0 0.0
    %1897 = vmatprep.mubr.f32.mxu0 0.0
    %1898 = vmatmul.mubr.f32.gmra.mrb[0].mxu0 %v1831
    %v1899 = vpop.f32.mrb[0].mxu0
    %v1900 = vadd.f32 0.0, %v1899
    %v1901 = vpop.f32.mrb[0].mxu0
    %1902 = vdwg.mxu0
    %v1903 = vmax.f32 %v1828, %v1900
    %v1905 = vrot.slane %v1903, 1
    %1906 = vrot.lane.b32.xlu0 %v1905, 64
    %v1907 = vpop.permute.xlu0 %1906
    %v1909 = vrot.slane %v1903, 2
    %v1911 = vrot.slane %v1903, 3
    %1912 = vrot.lane.b32.xlu0 %v1911, 64
    %v1913 = vpop.permute.xlu0 %1912
    %vm1915 = vcmask 523264
    %v1916 = vsel %vm1915, %v1903, %v1907
    %v1917 = vsel %vm1915, %v1909, %v1913
    %s1918 = scalar_lea.vmem %s0, 32
    %v1919 = vld [vmem:[%s1918] sm:$0xff]
    %v1920 = vld [vmem:[%s1918 + $0x8] sm:$0xff]
    %v1921 = vld [vmem:[%s1918 + $0x10] sm:$0xff]
    %v1922 = vld [vmem:[%s1918 + $0x18] sm:$0xf]
    %v1927 = vrot.slane %v1919, 1
    %v1928 = vrot.slane %v1920, 1
    %v1929 = vsel %vm266, %v1927, %v1928
    %v1930 = vrot.slane %v1921, 1
    %v1931 = vsel %vm266, %v1928, %v1930
    %v1932 = vrot.slane %v1922, 1
    %v1933 = vsel %vm266, %v1930, %v1932
    %v1934 = vsel %vm274, %v1929, 0
    %v1936 = vsel %vm274, %v1931, 0
    %v1938 = vsel %vm274, %v1933, 0
    %1940 = vmatprep.subr.mxu0 %v255
    %1941 = vmatpush1.msra.mxu0 %v254
    %1942 = vmatprep.subr.mxu0 %v257
    %1943 = vmatpush1.msra.mxu0 %v256
    %1944 = vmatprep.subr.mxu0 %v259
    %1945 = vmatpush1.msra.mxu0 %v258
    %1946 = vmatprep.subr.mxu0 %v286
    %1947 = vmatpush1.msra.mxu0 %v283
    %1948 = vmatprep.subr.mxu0 0.0
    %1949 = vmatpush1.msra.mxu0 0.0
    %1950 = vmatprep.subr.mxu0 0.0
    %1951 = vmatpush1.msra.mxu0 0.0
    %1952 = vmatprep.subr.mxu0 0.0
    %1953 = vmatpush1.msra.mxu0 0.0
    %1954 = vmatprep.subr.mxu0 0.0
    %1955 = vmatpush1.msra.mxu0 0.0
    %1956 = vmatprep.subr.mxu0 0.0
    %1957 = vmatpush1.msra.mxu0 0.0
    %1958 = vmatprep.subr.mxu0 0.0
    %1959 = vmatpush1.msra.mxu0 0.0
    %1960 = vmatprep.subr.mxu0 0.0
    %1961 = vmatpush1.msra.mxu0 0.0
    %1962 = vmatprep.subr.mxu0 0.0
    %1963 = vmatpush1.msra.mxu0 0.0
    %1964 = vmatprep.subr.mxu0 0.0
    %1965 = vmatpush1.msra.mxu0 0.0
    %1966 = vmatprep.subr.mxu0 0.0
    %1967 = vmatpush1.msra.mxu0 0.0
    %1968 = vmatprep.subr.mxu0 0.0
    %1969 = vmatpush1.msra.mxu0 0.0
    %1970 = vmatprep.subr.mxu0 0.0
    %1971 = vmatpush1.msra.mxu0 0.0
    %1972 = vmatprep.subr.mxu0 0.0
    %1973 = vmatpush1.msra.mxu0 0.0
    %1974 = vmatprep.subr.mxu0 0.0
    %1975 = vmatpush1.msra.mxu0 0.0
    %1976 = vmatprep.subr.mxu0 0.0
    %1977 = vmatpush1.msra.mxu0 0.0
    %1978 = vmatprep.subr.mxu0 0.0
    %1979 = vmatpush1.msra.mxu0 0.0
    %1980 = vmatprep.subr.mxu0 0.0
    %1981 = vmatpush1.msra.mxu0 0.0
    %1982 = vmatprep.subr.mxu0 0.0
    %1983 = vmatpush1.msra.mxu0 0.0
    %1984 = vmatprep.subr.mxu0 0.0
    %1985 = vmatpush1.msra.mxu0 0.0
    %1986 = vmatprep.subr.mxu0 0.0
    %1987 = vmatpush1.msra.mxu0 0.0
    %1988 = vmatprep.subr.mxu0 0.0
    %1989 = vmatpush1.msra.mxu0 0.0
    %1990 = vmatprep.subr.mxu0 0.0
    %1991 = vmatpush1.msra.mxu0 0.0
    %1992 = vmatprep.subr.mxu0 0.0
    %1993 = vmatpush1.msra.mxu0 0.0
    %1994 = vmatprep.subr.mxu0 0.0
    %1995 = vmatpush1.msra.mxu0 0.0
    %1996 = vmatprep.subr.mxu0 0.0
    %1997 = vmatpush1.msra.mxu0 0.0
    %1998 = vmatprep.subr.mxu0 0.0
    %1999 = vmatpush1.msra.mxu0 0.0
    %2000 = vmatprep.subr.mxu0 0.0
    %2001 = vmatpush1.msra.mxu0 0.0
    %2002 = vmatprep.subr.mxu0 0.0
    %2003 = vmatpush1.msra.mxu0 0.0
    %2004 = vmatprep.mubr.f32.mxu0 0.0
    %2005 = vmatmul.mubr.f32.gmra.mrb[0].mxu0 %v1934
    %v2006 = vpop.f32.mrb[0].mxu0
    %v2007 = vadd.f32 0.0, %v2006
    %v2008 = vpop.f32.mrb[0].mxu0
    %v2009 = vadd.f32 0.0, %v2008
    %2010 = vmatprep.mubr.f32.mxu0 0.0
    %2011 = vmatmul.mubr.f32.gmra.mrb[0].mxu0 %v1936
    %v2012 = vpop.f32.mrb[0].mxu0
    %v2013 = vadd.f32 0.0, %v2012
    %v2014 = vpop.f32.mrb[0].mxu0
    %v2015 = vadd.f32 0.0, %v2014
    %2016 = vmatprep.mubr.f32.mxu0 0.0
    %2017 = vmatmul.mubr.f32.gmra.mrb[0].mxu0 %v1938
    %v2018 = vpop.f32.mrb[0].mxu0
    %v2019 = vadd.f32 0.0, %v2018
    %v2020 = vpop.f32.mrb[0].mxu0
    %v2021 = vadd.f32 0.0, %v2020
    %2022 = vdwg.mxu0
    %v2023 = vsel %vm274, %v1919, 0
    %v2025 = vsel %vm274, %v1920, 0
    %v2027 = vsel %vm274, %v1921, 0
    %2029 = vmatprep.subr.mxu0 %v246
    %2030 = vmatpush1.msra.mxu0 %v245
    %2031 = vmatprep.subr.mxu0 %v248
    %2032 = vmatpush1.msra.mxu0 %v247
    %2033 = vmatprep.subr.mxu0 %v250
    %2034 = vmatpush1.msra.mxu0 %v249
    %2035 = vmatprep.subr.mxu0 %v381
    %2036 = vmatpush1.msra.mxu0 %v378
    %2037 = vmatprep.subr.mxu0 0.0
    %2038 = vmatpush1.msra.mxu0 0.0
    %2039 = vmatprep.subr.mxu0 0.0
    %2040 = vmatpush1.msra.mxu0 0.0
    %2041 = vmatprep.subr.mxu0 0.0
    %2042 = vmatpush1.msra.mxu0 0.0
    %2043 = vmatprep.subr.mxu0 0.0
    %2044 = vmatpush1.msra.mxu0 0.0
    %2045 = vmatprep.subr.mxu0 0.0
    %2046 = vmatpush1.msra.mxu0 0.0
    %2047 = vmatprep.subr.mxu0 0.0
    %2048 = vmatpush1.msra.mxu0 0.0
    %2049 = vmatprep.subr.mxu0 0.0
    %2050 = vmatpush1.msra.mxu0 0.0
    %2051 = vmatprep.subr.mxu0 0.0
    %2052 = vmatpush1.msra.mxu0 0.0
    %2053 = vmatprep.subr.mxu0 0.0
    %2054 = vmatpush1.msra.mxu0 0.0
    %2055 = vmatprep.subr.mxu0 0.0
    %2056 = vmatpush1.msra.mxu0 0.0
    %2057 = vmatprep.subr.mxu0 0.0
    %2058 = vmatpush1.msra.mxu0 0.0
    %2059 = vmatprep.subr.mxu0 0.0
    %2060 = vmatpush1.msra.mxu0 0.0
    %2061 = vmatprep.subr.mxu0 0.0
    %2062 = vmatpush1.msra.mxu0 0.0
    %2063 = vmatprep.subr.mxu0 0.0
    %2064 = vmatpush1.msra.mxu0 0.0
    %2065 = vmatprep.subr.mxu0 0.0
    %2066 = vmatpush1.msra.mxu0 0.0
    %2067 = vmatprep.subr.mxu0 0.0
    %2068 = vmatpush1.msra.mxu0 0.0
    %2069 = vmatprep.subr.mxu0 0.0
    %2070 = vmatpush1.msra.mxu0 0.0
    %2071 = vmatprep.subr.mxu0 0.0
    %2072 = vmatpush1.msra.mxu0 0.0
    %2073 = vmatprep.subr.mxu0 0.0
    %2074 = vmatpush1.msra.mxu0 0.0
    %2075 = vmatprep.subr.mxu0 0.0
    %2076 = vmatpush1.msra.mxu0 0.0
    %2077 = vmatprep.subr.mxu0 0.0
    %2078 = vmatpush1.msra.mxu0 0.0
    %2079 = vmatprep.subr.mxu0 0.0
    %2080 = vmatpush1.msra.mxu0 0.0
    %2081 = vmatprep.subr.mxu0 0.0
    %2082 = vmatpush1.msra.mxu0 0.0
    %2083 = vmatprep.subr.mxu0 0.0
    %2084 = vmatpush1.msra.mxu0 0.0
    %2085 = vmatprep.subr.mxu0 0.0
    %2086 = vmatpush1.msra.mxu0 0.0
    %2087 = vmatprep.subr.mxu0 0.0
    %2088 = vmatpush1.msra.mxu0 0.0
    %2089 = vmatprep.subr.mxu0 0.0
    %2090 = vmatpush1.msra.mxu0 0.0
    %2091 = vmatprep.subr.mxu0 0.0
    %2092 = vmatpush1.msra.mxu0 0.0
    %2093 = vmatprep.mubr.f32.mxu0 0.0
    %2094 = vmatmul.mubr.f32.gmra.mrb[0].mxu0 %v2023
    %v2095 = vpop.f32.mrb[0].mxu0
    %v2096 = vadd.f32 %v2007, %v2095
    %v2097 = vpop.f32.mrb[0].mxu0
    %v2098 = vadd.f32 %v2009, %v2097
    %2099 = vmatprep.mubr.f32.mxu0 0.0
    %2100 = vmatmul.mubr.f32.gmra.mrb[0].mxu0 %v2025
    %v2101 = vpop.f32.mrb[0].mxu0
    %v2102 = vadd.f32 %v2013, %v2101
    %v2103 = vpop.f32.mrb[0].mxu0
    %v2104 = vadd.f32 %v2015, %v2103
    %2105 = vmatprep.mubr.f32.mxu0 0.0
    %2106 = vmatmul.mubr.f32.gmra.mrb[0].mxu0 %v2027
    %v2107 = vpop.f32.mrb[0].mxu0
    %v2108 = vadd.f32 %v2019, %v2107
    %v2109 = vpop.f32.mrb[0].mxu0
    %v2110 = vadd.f32 %v2021, %v2109
    %2111 = vdwg.mxu0
    %v2112 = vrot.slane %v1919, 2
    %v2113 = vrot.slane %v1920, 2
    %v2114 = vsel %vm475, %v2112, %v2113
    %v2115 = vrot.slane %v1921, 2
    %v2116 = vsel %vm475, %v2113, %v2115
    %v2117 = vrot.slane %v1922, 2
    %v2118 = vsel %vm475, %v2115, %v2117
    %v2119 = vsel %vm274, %v2114, 0
    %v2121 = vsel %vm274, %v2116, 0
    %v2123 = vsel %vm274, %v2118, 0
    %2125 = vmatprep.subr.mxu0 %v468
    %2126 = vmatpush1.msra.mxu0 %v467
    %2127 = vmatprep.subr.mxu0 %v470
    %2128 = vmatpush1.msra.mxu0 %v469
    %2129 = vmatprep.subr.mxu0 %v472
    %2130 = vmatpush1.msra.mxu0 %v471
    %2131 = vmatprep.subr.mxu0 %v493
    %2132 = vmatpush1.msra.mxu0 %v490
    %2133 = vmatprep.subr.mxu0 0.0
    %2134 = vmatpush1.msra.mxu0 0.0
    %2135 = vmatprep.subr.mxu0 0.0
    %2136 = vmatpush1.msra.mxu0 0.0
    %2137 = vmatprep.subr.mxu0 0.0
    %2138 = vmatpush1.msra.mxu0 0.0
    %2139 = vmatprep.subr.mxu0 0.0
    %2140 = vmatpush1.msra.mxu0 0.0
    %2141 = vmatprep.subr.mxu0 0.0
    %2142 = vmatpush1.msra.mxu0 0.0
    %2143 = vmatprep.subr.mxu0 0.0
    %2144 = vmatpush1.msra.mxu0 0.0
    %2145 = vmatprep.subr.mxu0 0.0
    %2146 = vmatpush1.msra.mxu0 0.0
    %2147 = vmatprep.subr.mxu0 0.0
    %2148 = vmatpush1.msra.mxu0 0.0
    %2149 = vmatprep.subr.mxu0 0.0
    %2150 = vmatpush1.msra.mxu0 0.0
    %2151 = vmatprep.subr.mxu0 0.0
    %2152 = vmatpush1.msra.mxu0 0.0
    %2153 = vmatprep.subr.mxu0 0.0
    %2154 = vmatpush1.msra.mxu0 0.0
    %2155 = vmatprep.subr.mxu0 0.0
    %2156 = vmatpush1.msra.mxu0 0.0
    %2157 = vmatprep.subr.mxu0 0.0
    %2158 = vmatpush1.msra.mxu0 0.0
    %2159 = vmatprep.subr.mxu0 0.0
    %2160 = vmatpush1.msra.mxu0 0.0
    %2161 = vmatprep.subr.mxu0 0.0
    %2162 = vmatpush1.msra.mxu0 0.0
    %2163 = vmatprep.subr.mxu0 0.0
    %2164 = vmatpush1.msra.mxu0 0.0
    %2165 = vmatprep.subr.mxu0 0.0
    %2166 = vmatpush1.msra.mxu0 0.0
    %2167 = vmatprep.subr.mxu0 0.0
    %2168 = vmatpush1.msra.mxu0 0.0
    %2169 = vmatprep.subr.mxu0 0.0
    %2170 = vmatpush1.msra.mxu0 0.0
    %2171 = vmatprep.subr.mxu0 0.0
    %2172 = vmatpush1.msra.mxu0 0.0
    %2173 = vmatprep.subr.mxu0 0.0
    %2174 = vmatpush1.msra.mxu0 0.0
    %2175 = vmatprep.subr.mxu0 0.0
    %2176 = vmatpush1.msra.mxu0 0.0
    %2177 = vmatprep.subr.mxu0 0.0
    %2178 = vmatpush1.msra.mxu0 0.0
    %2179 = vmatprep.subr.mxu0 0.0
    %2180 = vmatpush1.msra.mxu0 0.0
    %2181 = vmatprep.subr.mxu0 0.0
    %2182 = vmatpush1.msra.mxu0 0.0
    %2183 = vmatprep.subr.mxu0 0.0
    %2184 = vmatpush1.msra.mxu0 0.0
    %2185 = vmatprep.subr.mxu0 0.0
    %2186 = vmatpush1.msra.mxu0 0.0
    %2187 = vmatprep.subr.mxu0 0.0
    %2188 = vmatpush1.msra.mxu0 0.0
    %2189 = vmatprep.mubr.f32.mxu0 0.0
    %2190 = vmatmul.mubr.f32.gmra.mrb[0].mxu0 %v2119
    %v2191 = vpop.f32.mrb[0].mxu0
    %v2192 = vadd.f32 0.0, %v2191
    %v2193 = vpop.f32.mrb[0].mxu0
    %v2194 = vadd.f32 0.0, %v2193
    %2195 = vmatprep.mubr.f32.mxu0 0.0
    %2196 = vmatmul.mubr.f32.gmra.mrb[0].mxu0 %v2121
    %v2197 = vpop.f32.mrb[0].mxu0
    %v2198 = vadd.f32 0.0, %v2197
    %v2199 = vpop.f32.mrb[0].mxu0
    %v2200 = vadd.f32 0.0, %v2199
    %2201 = vmatprep.mubr.f32.mxu0 0.0
    %2202 = vmatmul.mubr.f32.gmra.mrb[0].mxu0 %v2123
    %v2203 = vpop.f32.mrb[0].mxu0
    %v2204 = vadd.f32 0.0, %v2203
    %v2205 = vpop.f32.mrb[0].mxu0
    %v2206 = vadd.f32 0.0, %v2205
    %2207 = vdwg.mxu0
    %v2208 = vadd.f32 %v2096, %v2192
    %v2209 = vadd.f32 %v2098, %v2194
    %v2210 = vadd.f32 %v2102, %v2198
    %v2211 = vadd.f32 %v2104, %v2200
    %v2212 = vadd.f32 %v2108, %v2204
    %v2213 = vadd.f32 %v2110, %v2206
    %v2214 = vrot.slane %v1919, 3
    %v2215 = vrot.slane %v1920, 3
    %v2216 = vsel %vm593, %v2214, %v2215
    %v2217 = vrot.slane %v1921, 3
    %v2218 = vsel %vm593, %v2215, %v2217
    %v2219 = vrot.slane %v1922, 3
    %v2220 = vsel %vm593, %v2217, %v2219
    %v2221 = vsel %vm274, %v2216, 0
    %v2223 = vsel %vm274, %v2218, 0
    %v2225 = vsel %vm274, %v2220, 0
    %2227 = vmatprep.subr.mxu0 %v586
    %2228 = vmatpush1.msra.mxu0 %v585
    %2229 = vmatprep.subr.mxu0 %v588
    %2230 = vmatpush1.msra.mxu0 %v587
    %2231 = vmatprep.subr.mxu0 %v590
    %2232 = vmatpush1.msra.mxu0 %v589
    %2233 = vmatprep.subr.mxu0 %v611
    %2234 = vmatpush1.msra.mxu0 %v608
    %2235 = vmatprep.subr.mxu0 0.0
    %2236 = vmatpush1.msra.mxu0 0.0
    %2237 = vmatprep.subr.mxu0 0.0
    %2238 = vmatpush1.msra.mxu0 0.0
    %2239 = vmatprep.subr.mxu0 0.0
    %2240 = vmatpush1.msra.mxu0 0.0
    %2241 = vmatprep.subr.mxu0 0.0
    %2242 = vmatpush1.msra.mxu0 0.0
    %2243 = vmatprep.subr.mxu0 0.0
    %2244 = vmatpush1.msra.mxu0 0.0
    %2245 = vmatprep.subr.mxu0 0.0
    %2246 = vmatpush1.msra.mxu0 0.0
    %2247 = vmatprep.subr.mxu0 0.0
    %2248 = vmatpush1.msra.mxu0 0.0
    %2249 = vmatprep.subr.mxu0 0.0
    %2250 = vmatpush1.msra.mxu0 0.0
    %2251 = vmatprep.subr.mxu0 0.0
    %2252 = vmatpush1.msra.mxu0 0.0
    %2253 = vmatprep.subr.mxu0 0.0
    %2254 = vmatpush1.msra.mxu0 0.0
    %2255 = vmatprep.subr.mxu0 0.0
    %2256 = vmatpush1.msra.mxu0 0.0
    %2257 = vmatprep.subr.mxu0 0.0
    %2258 = vmatpush1.msra.mxu0 0.0
    %2259 = vmatprep.subr.mxu0 0.0
    %2260 = vmatpush1.msra.mxu0 0.0
    %2261 = vmatprep.subr.mxu0 0.0
    %2262 = vmatpush1.msra.mxu0 0.0
    %2263 = vmatprep.subr.mxu0 0.0
    %2264 = vmatpush1.msra.mxu0 0.0
    %2265 = vmatprep.subr.mxu0 0.0
    %2266 = vmatpush1.msra.mxu0 0.0
    %2267 = vmatprep.subr.mxu0 0.0
    %2268 = vmatpush1.msra.mxu0 0.0
    %2269 = vmatprep.subr.mxu0 0.0
    %2270 = vmatpush1.msra.mxu0 0.0
    %2271 = vmatprep.subr.mxu0 0.0
    %2272 = vmatpush1.msra.mxu0 0.0
    %2273 = vmatprep.subr.mxu0 0.0
    %2274 = vmatpush1.msra.mxu0 0.0
    %2275 = vmatprep.subr.mxu0 0.0
    %2276 = vmatpush1.msra.mxu0 0.0
    %2277 = vmatprep.subr.mxu0 0.0
    %2278 = vmatpush1.msra.mxu0 0.0
    %2279 = vmatprep.subr.mxu0 0.0
    %2280 = vmatpush1.msra.mxu0 0.0
    %2281 = vmatprep.subr.mxu0 0.0
    %2282 = vmatpush1.msra.mxu0 0.0
    %2283 = vmatprep.subr.mxu0 0.0
    %2284 = vmatpush1.msra.mxu0 0.0
    %2285 = vmatprep.subr.mxu0 0.0
    %2286 = vmatpush1.msra.mxu0 0.0
    %2287 = vmatprep.subr.mxu0 0.0
    %2288 = vmatpush1.msra.mxu0 0.0
    %2289 = vmatprep.subr.mxu0 0.0
    %2290 = vmatpush1.msra.mxu0 0.0
    %2291 = vmatprep.mubr.f32.mxu0 0.0
    %2292 = vmatmul.mubr.f32.gmra.mrb[0].mxu0 %v2221
    %v2293 = vpop.f32.mrb[0].mxu0
    %v2294 = vadd.f32 0.0, %v2293
    %v2295 = vpop.f32.mrb[0].mxu0
    %v2296 = vadd.f32 0.0, %v2295
    %2297 = vmatprep.mubr.f32.mxu0 0.0
    %2298 = vmatmul.mubr.f32.gmra.mrb[0].mxu0 %v2223
    %v2299 = vpop.f32.mrb[0].mxu0
    %v2300 = vadd.f32 0.0, %v2299
    %v2301 = vpop.f32.mrb[0].mxu0
    %v2302 = vadd.f32 0.0, %v2301
    %2303 = vmatprep.mubr.f32.mxu0 0.0
    %2304 = vmatmul.mubr.f32.gmra.mrb[0].mxu0 %v2225
    %v2305 = vpop.f32.mrb[0].mxu0
    %v2306 = vadd.f32 0.0, %v2305
    %v2307 = vpop.f32.mrb[0].mxu0
    %v2308 = vadd.f32 0.0, %v2307
    %2309 = vdwg.mxu0
    %v2310 = vadd.f32 %v2208, %v2294
    %v2311 = vadd.f32 %v2209, %v2296
    %v2312 = vadd.f32 %v2210, %v2300
    %v2313 = vadd.f32 %v2211, %v2302
    %v2314 = vadd.f32 %v2212, %v2306
    %v2315 = vadd.f32 %v2213, %v2308
    %v2316 = vrot.slane %v1919, 4
    %v2317 = vrot.slane %v1920, 4
    %v2318 = vsel %vm281, %v2316, %v2317
    %v2319 = vrot.slane %v1921, 4
    %v2320 = vsel %vm281, %v2317, %v2319
    %v2321 = vrot.slane %v1922, 4
    %v2322 = vsel %vm281, %v2319, %v2321
    %v2323 = vsel %vm274, %v2318, 0
    %v2325 = vsel %vm274, %v2320, 0
    %v2327 = vsel %vm274, %v2322, 0
    %2329 = vmatprep.subr.mxu0 %v704
    %2330 = vmatpush1.msra.mxu0 %v703
    %2331 = vmatprep.subr.mxu0 %v706
    %2332 = vmatpush1.msra.mxu0 %v705
    %2333 = vmatprep.subr.mxu0 %v708
    %2334 = vmatpush1.msra.mxu0 %v707
    %2335 = vmatprep.subr.mxu0 %v728
    %2336 = vmatpush1.msra.mxu0 %v725
    %2337 = vmatprep.subr.mxu0 0.0
    %2338 = vmatpush1.msra.mxu0 0.0
    %2339 = vmatprep.subr.mxu0 0.0
    %2340 = vmatpush1.msra.mxu0 0.0
    %2341 = vmatprep.subr.mxu0 0.0
    %2342 = vmatpush1.msra.mxu0 0.0
    %2343 = vmatprep.subr.mxu0 0.0
    %2344 = vmatpush1.msra.mxu0 0.0
    %2345 = vmatprep.subr.mxu0 0.0
    %2346 = vmatpush1.msra.mxu0 0.0
    %2347 = vmatprep.subr.mxu0 0.0
    %2348 = vmatpush1.msra.mxu0 0.0
    %2349 = vmatprep.subr.mxu0 0.0
    %2350 = vmatpush1.msra.mxu0 0.0
    %2351 = vmatprep.subr.mxu0 0.0
    %2352 = vmatpush1.msra.mxu0 0.0
    %2353 = vmatprep.subr.mxu0 0.0
    %2354 = vmatpush1.msra.mxu0 0.0
    %2355 = vmatprep.subr.mxu0 0.0
    %2356 = vmatpush1.msra.mxu0 0.0
    %2357 = vmatprep.subr.mxu0 0.0
    %2358 = vmatpush1.msra.mxu0 0.0
    %2359 = vmatprep.subr.mxu0 0.0
    %2360 = vmatpush1.msra.mxu0 0.0
    %2361 = vmatprep.subr.mxu0 0.0
    %2362 = vmatpush1.msra.mxu0 0.0
    %2363 = vmatprep.subr.mxu0 0.0
    %2364 = vmatpush1.msra.mxu0 0.0
    %2365 = vmatprep.subr.mxu0 0.0
    %2366 = vmatpush1.msra.mxu0 0.0
    %2367 = vmatprep.subr.mxu0 0.0
    %2368 = vmatpush1.msra.mxu0 0.0
    %2369 = vmatprep.subr.mxu0 0.0
    %2370 = vmatpush1.msra.mxu0 0.0
    %2371 = vmatprep.subr.mxu0 0.0
    %2372 = vmatpush1.msra.mxu0 0.0
    %2373 = vmatprep.subr.mxu0 0.0
    %2374 = vmatpush1.msra.mxu0 0.0
    %2375 = vmatprep.subr.mxu0 0.0
    %2376 = vmatpush1.msra.mxu0 0.0
    %2377 = vmatprep.subr.mxu0 0.0
    %2378 = vmatpush1.msra.mxu0 0.0
    %2379 = vmatprep.subr.mxu0 0.0
    %2380 = vmatpush1.msra.mxu0 0.0
    %2381 = vmatprep.subr.mxu0 0.0
    %2382 = vmatpush1.msra.mxu0 0.0
    %2383 = vmatprep.subr.mxu0 0.0
    %2384 = vmatpush1.msra.mxu0 0.0
    %2385 = vmatprep.subr.mxu0 0.0
    %2386 = vmatpush1.msra.mxu0 0.0
    %2387 = vmatprep.subr.mxu0 0.0
    %2388 = vmatpush1.msra.mxu0 0.0
    %2389 = vmatprep.subr.mxu0 0.0
    %2390 = vmatpush1.msra.mxu0 0.0
    %2391 = vmatprep.subr.mxu0 0.0
    %2392 = vmatpush1.msra.mxu0 0.0
    %2393 = vmatprep.mubr.f32.mxu0 0.0
    %2394 = vmatmul.mubr.f32.gmra.mrb[0].mxu0 %v2323
    %v2395 = vpop.f32.mrb[0].mxu0
    %v2396 = vadd.f32 0.0, %v2395
    %v2397 = vpop.f32.mrb[0].mxu0
    %v2398 = vadd.f32 0.0, %v2397
    %2399 = vmatprep.mubr.f32.mxu0 0.0
    %2400 = vmatmul.mubr.f32.gmra.mrb[0].mxu0 %v2325
    %v2401 = vpop.f32.mrb[0].mxu0
    %v2402 = vadd.f32 0.0, %v2401
    %v2403 = vpop.f32.mrb[0].mxu0
    %v2404 = vadd.f32 0.0, %v2403
    %2405 = vmatprep.mubr.f32.mxu0 0.0
    %2406 = vmatmul.mubr.f32.gmra.mrb[0].mxu0 %v2327
    %v2407 = vpop.f32.mrb[0].mxu0
    %v2408 = vadd.f32 0.0, %v2407
    %v2409 = vpop.f32.mrb[0].mxu0
    %v2410 = vadd.f32 0.0, %v2409
    %2411 = vdwg.mxu0
    %v2412 = vadd.f32 %v2310, %v2396
    %v2413 = vadd.f32 %v2311, %v2398
    %v2414 = vadd.f32 %v2312, %v2402
    %v2415 = vadd.f32 %v2313, %v2404
    %v2416 = vadd.f32 %v2314, %v2408
    %v2417 = vadd.f32 %v2315, %v2410
    %v2418 = vadd.f32 %v2412, %v824
    %v2419 = vadd.f32 %v2413, %v828
    %v2420 = vadd.f32 %v2414, %v824
    %v2421 = vadd.f32 %v2415, %v828
    %v2422 = vadd.f32 %v2416, %v824
    %v2423 = vadd.f32 %v2417, %v828
    %v2424 = vmax.f32 %v2418, 0.0
    %v2425 = vmax.f32 %v2419, 0.0
    %v2426 = vmax.f32 %v2420, 0.0
    %v2427 = vmax.f32 %v2421, 0.0
    %v2428 = vmax.f32 %v2422, 0.0
    %v2429 = vmax.f32 %v2423, 0.0
    %v2431 = vsel %vm843, %v2425, 0
    %v2434 = vsel %vm843, %v2427, 0
    %v2437 = vsel %vm843, %v2429, 0
    %2439 = vmatprep.subr.mxu0 0.0
    %2440 = vmatpush1.msra.mxu0 %v168
    %2441 = vmatprep.subr.mxu0 0.0
    %2442 = vmatpush1.msra.mxu0 %v169
    %2443 = vmatprep.subr.mxu0 0.0
    %2444 = vmatpush1.msra.mxu0 %v170
    %2445 = vmatprep.subr.mxu0 0.0
    %2446 = vmatpush1.msra.mxu0 %v171
    %2447 = vmatprep.subr.mxu0 0.0
    %2448 = vmatpush1.msra.mxu0 %v172
    %2449 = vmatprep.subr.mxu0 0.0
    %2450 = vmatpush1.msra.mxu0 %v173
    %2451 = vmatprep.subr.mxu0 0.0
    %2452 = vmatpush1.msra.mxu0 %v174
    %2453 = vmatprep.subr.mxu0 0.0
    %2454 = vmatpush1.msra.mxu0 %v175
    %2455 = vmatprep.subr.mxu0 0.0
    %2456 = vmatpush1.msra.mxu0 %v176
    %2457 = vmatprep.subr.mxu0 0.0
    %2458 = vmatpush1.msra.mxu0 %v177
    %2459 = vmatprep.subr.mxu0 0.0
    %2460 = vmatpush1.msra.mxu0 %v178
    %2461 = vmatprep.subr.mxu0 0.0
    %2462 = vmatpush1.msra.mxu0 %v179
    %2463 = vmatprep.subr.mxu0 0.0
    %2464 = vmatpush1.msra.mxu0 %v180
    %2465 = vmatprep.subr.mxu0 0.0
    %2466 = vmatpush1.msra.mxu0 %v181
    %2467 = vmatprep.subr.mxu0 0.0
    %2468 = vmatpush1.msra.mxu0 %v182
    %2469 = vmatprep.subr.mxu0 0.0
    %2470 = vmatpush1.msra.mxu0 %v183
    %2471 = vmatprep.subr.mxu0 0.0
    %2472 = vmatpush1.msra.mxu0 %v184
    %2473 = vmatprep.subr.mxu0 0.0
    %2474 = vmatpush1.msra.mxu0 %v185
    %2475 = vmatprep.subr.mxu0 0.0
    %2476 = vmatpush1.msra.mxu0 0.0
    %2477 = vmatprep.subr.mxu0 0.0
    %2478 = vmatpush1.msra.mxu0 0.0
    %2479 = vmatprep.subr.mxu0 0.0
    %2480 = vmatpush1.msra.mxu0 0.0
    %2481 = vmatprep.subr.mxu0 0.0
    %2482 = vmatpush1.msra.mxu0 0.0
    %2483 = vmatprep.subr.mxu0 0.0
    %2484 = vmatpush1.msra.mxu0 0.0
    %2485 = vmatprep.subr.mxu0 0.0
    %2486 = vmatpush1.msra.mxu0 0.0
    %2487 = vmatprep.subr.mxu0 0.0
    %2488 = vmatpush1.msra.mxu0 0.0
    %2489 = vmatprep.subr.mxu0 0.0
    %2490 = vmatpush1.msra.mxu0 0.0
    %2491 = vmatprep.subr.mxu0 0.0
    %2492 = vmatpush1.msra.mxu0 0.0
    %2493 = vmatprep.subr.mxu0 0.0
    %2494 = vmatpush1.msra.mxu0 0.0
    %2495 = vmatprep.subr.mxu0 0.0
    %2496 = vmatpush1.msra.mxu0 0.0
    %2497 = vmatprep.subr.mxu0 0.0
    %2498 = vmatpush1.msra.mxu0 0.0
    %2499 = vmatprep.subr.mxu0 0.0
    %2500 = vmatpush1.msra.mxu0 0.0
    %2501 = vmatprep.subr.mxu0 0.0
    %2502 = vmatpush1.msra.mxu0 0.0
    %2503 = vmatprep.mubr.f32.mxu0 %v2431
    %2504 = vmatmul.mubr.f32.gmra.mrb[0].mxu0 %v2424
    %v2505 = vpop.f32.mrb[0].mxu0
    %v2506 = vadd.f32 0.0, %v2505
    %v2507 = vpop.f32.mrb[0].mxu0
    %2508 = vmatprep.mubr.f32.mxu0 %v2434
    %2509 = vmatmul.mubr.f32.gmra.mrb[0].mxu0 %v2426
    %v2510 = vpop.f32.mrb[0].mxu0
    %v2511 = vadd.f32 0.0, %v2510
    %v2512 = vpop.f32.mrb[0].mxu0
    %2513 = vmatprep.mubr.f32.mxu0 %v2437
    %2514 = vmatmul.mubr.f32.gmra.mrb[0].mxu0 %v2428
    %v2515 = vpop.f32.mrb[0].mxu0
    %v2516 = vadd.f32 0.0, %v2515
    %v2517 = vpop.f32.mrb[0].mxu0
    %2518 = vdwg.mxu0
    %2519 = vmatprep.subr.mxu0 0.0
    %2520 = vmatpush1.msra.mxu0 %v223
    %2521 = vmatprep.subr.mxu0 0.0
    %2522 = vmatpush1.msra.mxu0 %v224
    %2523 = vmatprep.subr.mxu0 0.0
    %2524 = vmatpush1.msra.mxu0 %v225
    %2525 = vmatprep.subr.mxu0 0.0
    %2526 = vmatpush1.msra.mxu0 %v226
    %2527 = vmatprep.subr.mxu0 0.0
    %2528 = vmatpush1.msra.mxu0 %v227
    %2529 = vmatprep.subr.mxu0 0.0
    %2530 = vmatpush1.msra.mxu0 %v228
    %2531 = vmatprep.subr.mxu0 0.0
    %2532 = vmatpush1.msra.mxu0 %v229
    %2533 = vmatprep.subr.mxu0 0.0
    %2534 = vmatpush1.msra.mxu0 %v230
    %2535 = vmatprep.subr.mxu0 0.0
    %2536 = vmatpush1.msra.mxu0 %v231
    %2537 = vmatprep.subr.mxu0 0.0
    %2538 = vmatpush1.msra.mxu0 %v232
    %2539 = vmatprep.subr.mxu0 0.0
    %2540 = vmatpush1.msra.mxu0 %v233
    %2541 = vmatprep.subr.mxu0 0.0
    %2542 = vmatpush1.msra.mxu0 %v234
    %2543 = vmatprep.subr.mxu0 0.0
    %2544 = vmatpush1.msra.mxu0 %v235
    %2545 = vmatprep.subr.mxu0 0.0
    %2546 = vmatpush1.msra.mxu0 %v236
    %2547 = vmatprep.subr.mxu0 0.0
    %2548 = vmatpush1.msra.mxu0 %v237
    %2549 = vmatprep.subr.mxu0 0.0
    %2550 = vmatpush1.msra.mxu0 %v238
    %2551 = vmatprep.subr.mxu0 0.0
    %2552 = vmatpush1.msra.mxu0 %v239
    %2553 = vmatprep.subr.mxu0 0.0
    %2554 = vmatpush1.msra.mxu0 %v240
    %2555 = vmatprep.subr.mxu0 0.0
    %2556 = vmatpush1.msra.mxu0 0.0
    %2557 = vmatprep.subr.mxu0 0.0
    %2558 = vmatpush1.msra.mxu0 0.0
    %2559 = vmatprep.subr.mxu0 0.0
    %2560 = vmatpush1.msra.mxu0 0.0
    %2561 = vmatprep.subr.mxu0 0.0
    %2562 = vmatpush1.msra.mxu0 0.0
    %2563 = vmatprep.subr.mxu0 0.0
    %2564 = vmatpush1.msra.mxu0 0.0
    %2565 = vmatprep.subr.mxu0 0.0
    %2566 = vmatpush1.msra.mxu0 0.0
    %2567 = vmatprep.subr.mxu0 0.0
    %2568 = vmatpush1.msra.mxu0 0.0
    %2569 = vmatprep.subr.mxu0 0.0
    %2570 = vmatpush1.msra.mxu0 0.0
    %2571 = vmatprep.subr.mxu0 0.0
    %2572 = vmatpush1.msra.mxu0 0.0
    %2573 = vmatprep.subr.mxu0 0.0
    %2574 = vmatpush1.msra.mxu0 0.0
    %2575 = vmatprep.subr.mxu0 0.0
    %2576 = vmatpush1.msra.mxu0 0.0
    %2577 = vmatprep.subr.mxu0 0.0
    %2578 = vmatpush1.msra.mxu0 0.0
    %2579 = vmatprep.subr.mxu0 0.0
    %2580 = vmatpush1.msra.mxu0 0.0
    %2581 = vmatprep.subr.mxu0 0.0
    %2582 = vmatpush1.msra.mxu0 0.0
    %2583 = vmatprep.mubr.f32.mxu0 %v2431
    %2584 = vmatmul.mubr.f32.gmra.mrb[0].mxu0 %v2424
    %v2585 = vpop.f32.mrb[0].mxu0
    %v2586 = vadd.f32 0.0, %v2585
    %v2587 = vpop.f32.mrb[0].mxu0
    %2588 = vmatprep.mubr.f32.mxu0 %v2434
    %2589 = vmatmul.mubr.f32.gmra.mrb[0].mxu0 %v2426
    %v2590 = vpop.f32.mrb[0].mxu0
    %v2591 = vadd.f32 0.0, %v2590
    %v2592 = vpop.f32.mrb[0].mxu0
    %2593 = vmatprep.mubr.f32.mxu0 %v2437
    %2594 = vmatmul.mubr.f32.gmra.mrb[0].mxu0 %v2428
    %v2595 = vpop.f32.mrb[0].mxu0
    %v2596 = vadd.f32 0.0, %v2595
    %v2597 = vpop.f32.mrb[0].mxu0
    %2598 = vdwg.mxu0
    %v2599 = vmax.f32 %v2506, %v2586
    %v2600 = vmax.f32 %v2511, %v2591
    %v2601 = vmax.f32 %v2516, %v2596
    %2602 = vmatprep.subr.mxu0 0.0
    %2603 = vmatpush1.msra.mxu0 %v2599
    %2604 = vmatprep.subr.mxu0 0.0
    %2605 = vmatpush1.msra.mxu0 %v2600
    %2606 = vmatprep.subr.mxu0 0.0
    %2607 = vmatpush1.msra.mxu0 %v2601
    %2608 = vmatprep.subr.mxu0 0.0
    %2609 = vmatpush1.msra.mxu0 0.0
    %2610 = vmatprep.subr.mxu0 0.0
    %2611 = vmatpush1.msra.mxu0 0.0
    %2612 = vmatprep.subr.mxu0 0.0
    %2613 = vmatpush1.msra.mxu0 0.0
    %2614 = vmatprep.subr.mxu0 0.0
    %2615 = vmatpush1.msra.mxu0 0.0
    %2616 = vmatprep.subr.mxu0 0.0
    %2617 = vmatpush1.msra.mxu0 0.0
    %2618 = vmatprep.subr.mxu0 0.0
    %2619 = vmatpush1.msra.mxu0 0.0
    %2620 = vmatprep.subr.mxu0 0.0
    %2621 = vmatpush1.msra.mxu0 0.0
    %2622 = vmatprep.subr.mxu0 0.0
    %2623 = vmatpush1.msra.mxu0 0.0
    %2624 = vmatprep.subr.mxu0 0.0
    %2625 = vmatpush1.msra.mxu0 0.0
    %2626 = vmatprep.subr.mxu0 0.0
    %2627 = vmatpush1.msra.mxu0 0.0
    %2628 = vmatprep.subr.mxu0 0.0
    %2629 = vmatpush1.msra.mxu0 0.0
    %2630 = vmatprep.subr.mxu0 0.0
    %2631 = vmatpush1.msra.mxu0 0.0
    %2632 = vmatprep.subr.mxu0 0.0
    %2633 = vmatpush1.msra.mxu0 0.0
    %2634 = vmatprep.subr.mxu0 0.0
    %2635 = vmatpush1.msra.mxu0 0.0
    %2636 = vmatprep.subr.mxu0 0.0
    %2637 = vmatpush1.msra.mxu0 0.0
    %2638 = vmatprep.subr.mxu0 0.0
    %2639 = vmatpush1.msra.mxu0 0.0
    %2640 = vmatprep.subr.mxu0 0.0
    %2641 = vmatpush1.msra.mxu0 0.0
    %2642 = vmatprep.subr.mxu0 0.0
    %2643 = vmatpush1.msra.mxu0 0.0
    %2644 = vmatprep.subr.mxu0 0.0
    %2645 = vmatpush1.msra.mxu0 0.0
    %2646 = vmatprep.subr.mxu0 0.0
    %2647 = vmatpush1.msra.mxu0 0.0
    %2648 = vmatprep.subr.mxu0 0.0
    %2649 = vmatpush1.msra.mxu0 0.0
    %2650 = vmatprep.subr.mxu0 0.0
    %2651 = vmatpush1.msra.mxu0 0.0
    %2652 = vmatprep.subr.mxu0 0.0
    %2653 = vmatpush1.msra.mxu0 0.0
    %2654 = vmatprep.subr.mxu0 0.0
    %2655 = vmatpush1.msra.mxu0 0.0
    %2656 = vmatprep.subr.mxu0 0.0
    %2657 = vmatpush1.msra.mxu0 0.0
    %2658 = vmatprep.subr.mxu0 0.0
    %2659 = vmatpush1.msra.mxu0 0.0
    %2660 = vmatprep.subr.mxu0 0.0
    %2661 = vmatpush1.msra.mxu0 0.0
    %2662 = vmatprep.subr.mxu0 0.0
    %2663 = vmatpush1.msra.mxu0 0.0
    %2664 = vmatprep.subr.mxu0 0.0
    %2665 = vmatpush1.msra.mxu0 0.0
    %2666 = vmatprep.mubr.f32.mxu0 0.0
    %2667 = vmatmul.mubr.f32.gmra.mrb[0].mxu0 %v1018
    %v2668 = vpop.f32.mrb[0].mxu0
    %v2669 = vadd.f32 0.0, %v2668
    %v2670 = vpop.f32.mrb[0].mxu0
    %2671 = vmatprep.mubr.f32.mxu0 0.0
    %2672 = vmatmul.mubr.f32.gmra.mrb[0].mxu0 %v1021
    %v2673 = vpop.f32.mrb[0].mxu0
    %v2674 = vadd.f32 0.0, %v2673
    %v2675 = vpop.f32.mrb[0].mxu0
    %2676 = vdwg.mxu0
    %2677 = vmatprep.subr.mxu0 0.0
    %2678 = vmatpush1.msra.mxu0 %v2599
    %2679 = vmatprep.subr.mxu0 0.0
    %2680 = vmatpush1.msra.mxu0 %v2600
    %2681 = vmatprep.subr.mxu0 0.0
    %2682 = vmatpush1.msra.mxu0 %v2601
    %2683 = vmatprep.subr.mxu0 0.0
    %2684 = vmatpush1.msra.mxu0 0.0
    %2685 = vmatprep.subr.mxu0 0.0
    %2686 = vmatpush1.msra.mxu0 0.0
    %2687 = vmatprep.subr.mxu0 0.0
    %2688 = vmatpush1.msra.mxu0 0.0
    %2689 = vmatprep.subr.mxu0 0.0
    %2690 = vmatpush1.msra.mxu0 0.0
    %2691 = vmatprep.subr.mxu0 0.0
    %2692 = vmatpush1.msra.mxu0 0.0
    %2693 = vmatprep.subr.mxu0 0.0
    %2694 = vmatpush1.msra.mxu0 0.0
    %2695 = vmatprep.subr.mxu0 0.0
    %2696 = vmatpush1.msra.mxu0 0.0
    %2697 = vmatprep.subr.mxu0 0.0
    %2698 = vmatpush1.msra.mxu0 0.0
    %2699 = vmatprep.subr.mxu0 0.0
    %2700 = vmatpush1.msra.mxu0 0.0
    %2701 = vmatprep.subr.mxu0 0.0
    %2702 = vmatpush1.msra.mxu0 0.0
    %2703 = vmatprep.subr.mxu0 0.0
    %2704 = vmatpush1.msra.mxu0 0.0
    %2705 = vmatprep.subr.mxu0 0.0
    %2706 = vmatpush1.msra.mxu0 0.0
    %2707 = vmatprep.subr.mxu0 0.0
    %2708 = vmatpush1.msra.mxu0 0.0
    %2709 = vmatprep.subr.mxu0 0.0
    %2710 = vmatpush1.msra.mxu0 0.0
    %2711 = vmatprep.subr.mxu0 0.0
    %2712 = vmatpush1.msra.mxu0 0.0
    %2713 = vmatprep.subr.mxu0 0.0
    %2714 = vmatpush1.msra.mxu0 0.0
    %2715 = vmatprep.subr.mxu0 0.0
    %2716 = vmatpush1.msra.mxu0 0.0
    %2717 = vmatprep.subr.mxu0 0.0
    %2718 = vmatpush1.msra.mxu0 0.0
    %2719 = vmatprep.subr.mxu0 0.0
    %2720 = vmatpush1.msra.mxu0 0.0
    %2721 = vmatprep.subr.mxu0 0.0
    %2722 = vmatpush1.msra.mxu0 0.0
    %2723 = vmatprep.subr.mxu0 0.0
    %2724 = vmatpush1.msra.mxu0 0.0
    %2725 = vmatprep.subr.mxu0 0.0
    %2726 = vmatpush1.msra.mxu0 0.0
    %2727 = vmatprep.subr.mxu0 0.0
    %2728 = vmatpush1.msra.mxu0 0.0
    %2729 = vmatprep.subr.mxu0 0.0
    %2730 = vmatpush1.msra.mxu0 0.0
    %2731 = vmatprep.subr.mxu0 0.0
    %2732 = vmatpush1.msra.mxu0 0.0
    %2733 = vmatprep.subr.mxu0 0.0
    %2734 = vmatpush1.msra.mxu0 0.0
    %2735 = vmatprep.subr.mxu0 0.0
    %2736 = vmatpush1.msra.mxu0 0.0
    %2737 = vmatprep.subr.mxu0 0.0
    %2738 = vmatpush1.msra.mxu0 0.0
    %2739 = vmatprep.subr.mxu0 0.0
    %2740 = vmatpush1.msra.mxu0 0.0
    %2741 = vmatprep.mubr.f32.mxu0 0.0
    %2742 = vmatmul.mubr.f32.gmra.mrb[0].mxu0 %v1099
    %v2743 = vpop.f32.mrb[0].mxu0
    %v2744 = vadd.f32 0.0, %v2743
    %v2745 = vpop.f32.mrb[0].mxu0
    %2746 = vmatprep.mubr.f32.mxu0 0.0
    %2747 = vmatmul.mubr.f32.gmra.mrb[0].mxu0 %v1102
    %v2748 = vpop.f32.mrb[0].mxu0
    %v2749 = vadd.f32 0.0, %v2748
    %v2750 = vpop.f32.mrb[0].mxu0
    %2751 = vdwg.mxu0
    %v2752 = vmax.f32 %v2669, %v2744
    %v2753 = vmax.f32 %v2674, %v2749
    %v2756 = vrot.slane %v2752, 1
    %v2757 = vrot.slane %v2753, 1
    %v2758 = vsel %vm266, %v2756, %v2757
    %v2759 = vsel %vm1205, %v2758, 0
    %2761 = vmatprep.subr.mxu0 0.0
    %2762 = vmatpush1.msra.mxu0 %v1191
    %2763 = vmatprep.subr.mxu0 0.0
    %2764 = vmatpush1.msra.mxu0 %v1192
    %2765 = vmatprep.subr.mxu0 0.0
    %2766 = vmatpush1.msra.mxu0 %v1193
    %2767 = vmatprep.subr.mxu0 0.0
    %2768 = vmatpush1.msra.mxu0 %v1194
    %2769 = vmatprep.subr.mxu0 0.0
    %2770 = vmatpush1.msra.mxu0 %v1195
    %2771 = vmatprep.subr.mxu0 0.0
    %2772 = vmatpush1.msra.mxu0 %v1196
    %2773 = vmatprep.subr.mxu0 0.0
    %2774 = vmatpush1.msra.mxu0 %v1197
    %2775 = vmatprep.subr.mxu0 0.0
    %2776 = vmatpush1.msra.mxu0 %v1198
    %2777 = vmatprep.subr.mxu0 0.0
    %2778 = vmatpush1.msra.mxu0 %v1199
    %2779 = vmatprep.subr.mxu0 0.0
    %2780 = vmatpush1.msra.mxu0 0.0
    %2781 = vmatprep.subr.mxu0 0.0
    %2782 = vmatpush1.msra.mxu0 0.0
    %2783 = vmatprep.subr.mxu0 0.0
    %2784 = vmatpush1.msra.mxu0 0.0
    %2785 = vmatprep.subr.mxu0 0.0
    %2786 = vmatpush1.msra.mxu0 0.0
    %2787 = vmatprep.subr.mxu0 0.0
    %2788 = vmatpush1.msra.mxu0 0.0
    %2789 = vmatprep.subr.mxu0 0.0
    %2790 = vmatpush1.msra.mxu0 0.0
    %2791 = vmatprep.subr.mxu0 0.0
    %2792 = vmatpush1.msra.mxu0 0.0
    %2793 = vmatprep.subr.mxu0 0.0
    %2794 = vmatpush1.msra.mxu0 0.0
    %2795 = vmatprep.subr.mxu0 0.0
    %2796 = vmatpush1.msra.mxu0 0.0
    %2797 = vmatprep.subr.mxu0 0.0
    %2798 = vmatpush1.msra.mxu0 0.0
    %2799 = vmatprep.subr.mxu0 0.0
    %2800 = vmatpush1.msra.mxu0 0.0
    %2801 = vmatprep.subr.mxu0 0.0
    %2802 = vmatpush1.msra.mxu0 0.0
    %2803 = vmatprep.subr.mxu0 0.0
    %2804 = vmatpush1.msra.mxu0 0.0
    %2805 = vmatprep.subr.mxu0 0.0
    %2806 = vmatpush1.msra.mxu0 0.0
    %2807 = vmatprep.subr.mxu0 0.0
    %2808 = vmatpush1.msra.mxu0 0.0
    %2809 = vmatprep.subr.mxu0 0.0
    %2810 = vmatpush1.msra.mxu0 0.0
    %2811 = vmatprep.subr.mxu0 0.0
    %2812 = vmatpush1.msra.mxu0 0.0
    %2813 = vmatprep.subr.mxu0 0.0
    %2814 = vmatpush1.msra.mxu0 0.0
    %2815 = vmatprep.subr.mxu0 0.0
    %2816 = vmatpush1.msra.mxu0 0.0
    %2817 = vmatprep.subr.mxu0 0.0
    %2818 = vmatpush1.msra.mxu0 0.0
    %2819 = vmatprep.subr.mxu0 0.0
    %2820 = vmatpush1.msra.mxu0 0.0
    %2821 = vmatprep.subr.mxu0 0.0
    %2822 = vmatpush1.msra.mxu0 0.0
    %2823 = vmatprep.subr.mxu0 0.0
    %2824 = vmatpush1.msra.mxu0 0.0
    %2825 = vmatprep.mubr.f32.mxu0 0.0
    %2826 = vmatmul.mubr.f32.gmra.mrb[0].mxu0 %v2759
    %v2827 = vpop.f32.mrb[0].mxu0
    %v2828 = vadd.f32 0.0, %v2827
    %v2829 = vpop.f32.mrb[0].mxu0
    %2830 = vdwg.mxu0
    %v2831 = vsel %vm1205, %v2752, 0
    %2833 = vmatprep.subr.mxu0 0.0
    %2834 = vmatpush1.msra.mxu0 %v1181
    %2835 = vmatprep.subr.mxu0 0.0
    %2836 = vmatpush1.msra.mxu0 %v1182
    %2837 = vmatprep.subr.mxu0 0.0
    %2838 = vmatpush1.msra.mxu0 %v1183
    %2839 = vmatprep.subr.mxu0 0.0
    %2840 = vmatpush1.msra.mxu0 %v1184
    %2841 = vmatprep.subr.mxu0 0.0
    %2842 = vmatpush1.msra.mxu0 %v1185
    %2843 = vmatprep.subr.mxu0 0.0
    %2844 = vmatpush1.msra.mxu0 %v1186
    %2845 = vmatprep.subr.mxu0 0.0
    %2846 = vmatpush1.msra.mxu0 %v1187
    %2847 = vmatprep.subr.mxu0 0.0
    %2848 = vmatpush1.msra.mxu0 %v1188
    %2849 = vmatprep.subr.mxu0 0.0
    %2850 = vmatpush1.msra.mxu0 %v1189
    %2851 = vmatprep.subr.mxu0 0.0
    %2852 = vmatpush1.msra.mxu0 0.0
    %2853 = vmatprep.subr.mxu0 0.0
    %2854 = vmatpush1.msra.mxu0 0.0
    %2855 = vmatprep.subr.mxu0 0.0
    %2856 = vmatpush1.msra.mxu0 0.0
    %2857 = vmatprep.subr.mxu0 0.0
    %2858 = vmatpush1.msra.mxu0 0.0
    %2859 = vmatprep.subr.mxu0 0.0
    %2860 = vmatpush1.msra.mxu0 0.0
    %2861 = vmatprep.subr.mxu0 0.0
    %2862 = vmatpush1.msra.mxu0 0.0
    %2863 = vmatprep.subr.mxu0 0.0
    %2864 = vmatpush1.msra.mxu0 0.0
    %2865 = vmatprep.subr.mxu0 0.0
    %2866 = vmatpush1.msra.mxu0 0.0
    %2867 = vmatprep.subr.mxu0 0.0
    %2868 = vmatpush1.msra.mxu0 0.0
    %2869 = vmatprep.subr.mxu0 0.0
    %2870 = vmatpush1.msra.mxu0 0.0
    %2871 = vmatprep.subr.mxu0 0.0
    %2872 = vmatpush1.msra.mxu0 0.0
    %2873 = vmatprep.subr.mxu0 0.0
    %2874 = vmatpush1.msra.mxu0 0.0
    %2875 = vmatprep.subr.mxu0 0.0
    %2876 = vmatpush1.msra.mxu0 0.0
    %2877 = vmatprep.subr.mxu0 0.0
    %2878 = vmatpush1.msra.mxu0 0.0
    %2879 = vmatprep.subr.mxu0 0.0
    %2880 = vmatpush1.msra.mxu0 0.0
    %2881 = vmatprep.subr.mxu0 0.0
    %2882 = vmatpush1.msra.mxu0 0.0
    %2883 = vmatprep.subr.mxu0 0.0
    %2884 = vmatpush1.msra.mxu0 0.0
    %2885 = vmatprep.subr.mxu0 0.0
    %2886 = vmatpush1.msra.mxu0 0.0
    %2887 = vmatprep.subr.mxu0 0.0
    %2888 = vmatpush1.msra.mxu0 0.0
    %2889 = vmatprep.subr.mxu0 0.0
    %2890 = vmatpush1.msra.mxu0 0.0
    %2891 = vmatprep.subr.mxu0 0.0
    %2892 = vmatpush1.msra.mxu0 0.0
    %2893 = vmatprep.subr.mxu0 0.0
    %2894 = vmatpush1.msra.mxu0 0.0
    %2895 = vmatprep.subr.mxu0 0.0
    %2896 = vmatpush1.msra.mxu0 0.0
    %2897 = vmatprep.mubr.f32.mxu0 0.0
    %2898 = vmatmul.mubr.f32.gmra.mrb[0].mxu0 %v2831
    %v2899 = vpop.f32.mrb[0].mxu0
    %v2900 = vadd.f32 %v2828, %v2899
    %v2901 = vpop.f32.mrb[0].mxu0
    %2902 = vdwg.mxu0
    %v2903 = vrot.slane %v2752, 2
    %v2904 = vrot.slane %v2753, 2
    %v2905 = vsel %vm475, %v2903, %v2904
    %v2906 = vsel %vm1205, %v2905, 0
    %2908 = vmatprep.subr.mxu0 0.0
    %2909 = vmatpush1.msra.mxu0 %v1351
    %2910 = vmatprep.subr.mxu0 0.0
    %2911 = vmatpush1.msra.mxu0 %v1352
    %2912 = vmatprep.subr.mxu0 0.0
    %2913 = vmatpush1.msra.mxu0 %v1353
    %2914 = vmatprep.subr.mxu0 0.0
    %2915 = vmatpush1.msra.mxu0 %v1354
    %2916 = vmatprep.subr.mxu0 0.0
    %2917 = vmatpush1.msra.mxu0 %v1355
    %2918 = vmatprep.subr.mxu0 0.0
    %2919 = vmatpush1.msra.mxu0 %v1356
    %2920 = vmatprep.subr.mxu0 0.0
    %2921 = vmatpush1.msra.mxu0 %v1357
    %2922 = vmatprep.subr.mxu0 0.0
    %2923 = vmatpush1.msra.mxu0 %v1358
    %2924 = vmatprep.subr.mxu0 0.0
    %2925 = vmatpush1.msra.mxu0 %v1359
    %2926 = vmatprep.subr.mxu0 0.0
    %2927 = vmatpush1.msra.mxu0 0.0
    %2928 = vmatprep.subr.mxu0 0.0
    %2929 = vmatpush1.msra.mxu0 0.0
    %2930 = vmatprep.subr.mxu0 0.0
    %2931 = vmatpush1.msra.mxu0 0.0
    %2932 = vmatprep.subr.mxu0 0.0
    %2933 = vmatpush1.msra.mxu0 0.0
    %2934 = vmatprep.subr.mxu0 0.0
    %2935 = vmatpush1.msra.mxu0 0.0
    %2936 = vmatprep.subr.mxu0 0.0
    %2937 = vmatpush1.msra.mxu0 0.0
    %2938 = vmatprep.subr.mxu0 0.0
    %2939 = vmatpush1.msra.mxu0 0.0
    %2940 = vmatprep.subr.mxu0 0.0
    %2941 = vmatpush1.msra.mxu0 0.0
    %2942 = vmatprep.subr.mxu0 0.0
    %2943 = vmatpush1.msra.mxu0 0.0
    %2944 = vmatprep.subr.mxu0 0.0
    %2945 = vmatpush1.msra.mxu0 0.0
    %2946 = vmatprep.subr.mxu0 0.0
    %2947 = vmatpush1.msra.mxu0 0.0
    %2948 = vmatprep.subr.mxu0 0.0
    %2949 = vmatpush1.msra.mxu0 0.0
    %2950 = vmatprep.subr.mxu0 0.0
    %2951 = vmatpush1.msra.mxu0 0.0
    %2952 = vmatprep.subr.mxu0 0.0
    %2953 = vmatpush1.msra.mxu0 0.0
    %2954 = vmatprep.subr.mxu0 0.0
    %2955 = vmatpush1.msra.mxu0 0.0
    %2956 = vmatprep.subr.mxu0 0.0
    %2957 = vmatpush1.msra.mxu0 0.0
    %2958 = vmatprep.subr.mxu0 0.0
    %2959 = vmatpush1.msra.mxu0 0.0
    %2960 = vmatprep.subr.mxu0 0.0
    %2961 = vmatpush1.msra.mxu0 0.0
    %2962 = vmatprep.subr.mxu0 0.0
    %2963 = vmatpush1.msra.mxu0 0.0
    %2964 = vmatprep.subr.mxu0 0.0
    %2965 = vmatpush1.msra.mxu0 0.0
    %2966 = vmatprep.subr.mxu0 0.0
    %2967 = vmatpush1.msra.mxu0 0.0
    %2968 = vmatprep.subr.mxu0 0.0
    %2969 = vmatpush1.msra.mxu0 0.0
    %2970 = vmatprep.subr.mxu0 0.0
    %2971 = vmatpush1.msra.mxu0 0.0
    %2972 = vmatprep.mubr.f32.mxu0 0.0
    %2973 = vmatmul.mubr.f32.gmra.mrb[0].mxu0 %v2906
    %v2974 = vpop.f32.mrb[0].mxu0
    %v2975 = vadd.f32 0.0, %v2974
    %v2976 = vpop.f32.mrb[0].mxu0
    %2977 = vdwg.mxu0
    %v2978 = vadd.f32 %v2900, %v2975
    %v2979 = vrot.slane %v2752, 3
    %v2980 = vrot.slane %v2753, 3
    %v2981 = vsel %vm593, %v2979, %v2980
    %v2982 = vsel %vm1205, %v2981, 0
    %2984 = vmatprep.subr.mxu0 0.0
    %2985 = vmatpush1.msra.mxu0 %v1437
    %2986 = vmatprep.subr.mxu0 0.0
    %2987 = vmatpush1.msra.mxu0 %v1438
    %2988 = vmatprep.subr.mxu0 0.0
    %2989 = vmatpush1.msra.mxu0 %v1439
    %2990 = vmatprep.subr.mxu0 0.0
    %2991 = vmatpush1.msra.mxu0 %v1440
    %2992 = vmatprep.subr.mxu0 0.0
    %2993 = vmatpush1.msra.mxu0 %v1441
    %2994 = vmatprep.subr.mxu0 0.0
    %2995 = vmatpush1.msra.mxu0 %v1442
    %2996 = vmatprep.subr.mxu0 0.0
    %2997 = vmatpush1.msra.mxu0 %v1443
    %2998 = vmatprep.subr.mxu0 0.0
    %2999 = vmatpush1.msra.mxu0 %v1444
    %3000 = vmatprep.subr.mxu0 0.0
    %3001 = vmatpush1.msra.mxu0 %v1445
    %3002 = vmatprep.subr.mxu0 0.0
    %3003 = vmatpush1.msra.mxu0 0.0
    %3004 = vmatprep.subr.mxu0 0.0
    %3005 = vmatpush1.msra.mxu0 0.0
    %3006 = vmatprep.subr.mxu0 0.0
    %3007 = vmatpush1.msra.mxu0 0.0
    %3008 = vmatprep.subr.mxu0 0.0
    %3009 = vmatpush1.msra.mxu0 0.0
    %3010 = vmatprep.subr.mxu0 0.0
    %3011 = vmatpush1.msra.mxu0 0.0
    %3012 = vmatprep.subr.mxu0 0.0
    %3013 = vmatpush1.msra.mxu0 0.0
    %3014 = vmatprep.subr.mxu0 0.0
    %3015 = vmatpush1.msra.mxu0 0.0
    %3016 = vmatprep.subr.mxu0 0.0
    %3017 = vmatpush1.msra.mxu0 0.0
    %3018 = vmatprep.subr.mxu0 0.0
    %3019 = vmatpush1.msra.mxu0 0.0
    %3020 = vmatprep.subr.mxu0 0.0
    %3021 = vmatpush1.msra.mxu0 0.0
    %3022 = vmatprep.subr.mxu0 0.0
    %3023 = vmatpush1.msra.mxu0 0.0
    %3024 = vmatprep.subr.mxu0 0.0
    %3025 = vmatpush1.msra.mxu0 0.0
    %3026 = vmatprep.subr.mxu0 0.0
    %3027 = vmatpush1.msra.mxu0 0.0
    %3028 = vmatprep.subr.mxu0 0.0
    %3029 = vmatpush1.msra.mxu0 0.0
    %3030 = vmatprep.subr.mxu0 0.0
    %3031 = vmatpush1.msra.mxu0 0.0
    %3032 = vmatprep.subr.mxu0 0.0
    %3033 = vmatpush1.msra.mxu0 0.0
    %3034 = vmatprep.subr.mxu0 0.0
    %3035 = vmatpush1.msra.mxu0 0.0
    %3036 = vmatprep.subr.mxu0 0.0
    %3037 = vmatpush1.msra.mxu0 0.0
    %3038 = vmatprep.subr.mxu0 0.0
    %3039 = vmatpush1.msra.mxu0 0.0
    %3040 = vmatprep.subr.mxu0 0.0
    %3041 = vmatpush1.msra.mxu0 0.0
    %3042 = vmatprep.subr.mxu0 0.0
    %3043 = vmatpush1.msra.mxu0 0.0
    %3044 = vmatprep.subr.mxu0 0.0
    %3045 = vmatpush1.msra.mxu0 0.0
    %3046 = vmatprep.subr.mxu0 0.0
    %3047 = vmatpush1.msra.mxu0 0.0
    %3048 = vmatprep.mubr.f32.mxu0 0.0
    %3049 = vmatmul.mubr.f32.gmra.mrb[0].mxu0 %v2982
    %v3050 = vpop.f32.mrb[0].mxu0
    %v3051 = vadd.f32 0.0, %v3050
    %v3052 = vpop.f32.mrb[0].mxu0
    %3053 = vdwg.mxu0
    %v3054 = vadd.f32 %v2978, %v3051
    %v3055 = vrot.slane %v2752, 4
    %v3056 = vrot.slane %v2753, 4
    %v3057 = vsel %vm281, %v3055, %v3056
    %v3058 = vsel %vm1205, %v3057, 0
    %3060 = vmatprep.subr.mxu0 0.0
    %3061 = vmatpush1.msra.mxu0 %v1523
    %3062 = vmatprep.subr.mxu0 0.0
    %3063 = vmatpush1.msra.mxu0 %v1524
    %3064 = vmatprep.subr.mxu0 0.0
    %3065 = vmatpush1.msra.mxu0 %v1525
    %3066 = vmatprep.subr.mxu0 0.0
    %3067 = vmatpush1.msra.mxu0 %v1526
    %3068 = vmatprep.subr.mxu0 0.0
    %3069 = vmatpush1.msra.mxu0 %v1527
    %3070 = vmatprep.subr.mxu0 0.0
    %3071 = vmatpush1.msra.mxu0 %v1528
    %3072 = vmatprep.subr.mxu0 0.0
    %3073 = vmatpush1.msra.mxu0 %v1529
    %3074 = vmatprep.subr.mxu0 0.0
    %3075 = vmatpush1.msra.mxu0 %v1530
    %3076 = vmatprep.subr.mxu0 0.0
    %3077 = vmatpush1.msra.mxu0 %v1531
    %3078 = vmatprep.subr.mxu0 0.0
    %3079 = vmatpush1.msra.mxu0 0.0
    %3080 = vmatprep.subr.mxu0 0.0
    %3081 = vmatpush1.msra.mxu0 0.0
    %3082 = vmatprep.subr.mxu0 0.0
    %3083 = vmatpush1.msra.mxu0 0.0
    %3084 = vmatprep.subr.mxu0 0.0
    %3085 = vmatpush1.msra.mxu0 0.0
    %3086 = vmatprep.subr.mxu0 0.0
    %3087 = vmatpush1.msra.mxu0 0.0
    %3088 = vmatprep.subr.mxu0 0.0
    %3089 = vmatpush1.msra.mxu0 0.0
    %3090 = vmatprep.subr.mxu0 0.0
    %3091 = vmatpush1.msra.mxu0 0.0
    %3092 = vmatprep.subr.mxu0 0.0
    %3093 = vmatpush1.msra.mxu0 0.0
    %3094 = vmatprep.subr.mxu0 0.0
    %3095 = vmatpush1.msra.mxu0 0.0
    %3096 = vmatprep.subr.mxu0 0.0
    %3097 = vmatpush1.msra.mxu0 0.0
    %3098 = vmatprep.subr.mxu0 0.0
    %3099 = vmatpush1.msra.mxu0 0.0
    %3100 = vmatprep.subr.mxu0 0.0
    %3101 = vmatpush1.msra.mxu0 0.0
    %3102 = vmatprep.subr.mxu0 0.0
    %3103 = vmatpush1.msra.mxu0 0.0
    %3104 = vmatprep.subr.mxu0 0.0
    %3105 = vmatpush1.msra.mxu0 0.0
    %3106 = vmatprep.subr.mxu0 0.0
    %3107 = vmatpush1.msra.mxu0 0.0
    %3108 = vmatprep.subr.mxu0 0.0
    %3109 = vmatpush1.msra.mxu0 0.0
    %3110 = vmatprep.subr.mxu0 0.0
    %3111 = vmatpush1.msra.mxu0 0.0
    %3112 = vmatprep.subr.mxu0 0.0
    %3113 = vmatpush1.msra.mxu0 0.0
    %3114 = vmatprep.subr.mxu0 0.0
    %3115 = vmatpush1.msra.mxu0 0.0
    %3116 = vmatprep.subr.mxu0 0.0
    %3117 = vmatpush1.msra.mxu0 0.0
    %3118 = vmatprep.subr.mxu0 0.0
    %3119 = vmatpush1.msra.mxu0 0.0
    %3120 = vmatprep.subr.mxu0 0.0
    %3121 = vmatpush1.msra.mxu0 0.0
    %3122 = vmatprep.subr.mxu0 0.0
    %3123 = vmatpush1.msra.mxu0 0.0
    %3124 = vmatprep.mubr.f32.mxu0 0.0
    %3125 = vmatmul.mubr.f32.gmra.mrb[0].mxu0 %v3058
    %v3126 = vpop.f32.mrb[0].mxu0
    %v3127 = vadd.f32 0.0, %v3126
    %v3128 = vpop.f32.mrb[0].mxu0
    %3129 = vdwg.mxu0
    %v3130 = vadd.f32 %v3054, %v3127
    %v3131 = vadd.f32 %v3130, %v1613
    %v3132 = vmax.f32 %v3131, 0.0
    %3133 = vmatprep.subr.mxu0 0.0
    %3134 = vmatpush1.msra.mxu0 %v168
    %3135 = vmatprep.subr.mxu0 0.0
    %3136 = vmatpush1.msra.mxu0 %v169
    %3137 = vmatprep.subr.mxu0 0.0
    %3138 = vmatpush1.msra.mxu0 %v170
    %3139 = vmatprep.subr.mxu0 0.0
    %3140 = vmatpush1.msra.mxu0 %v171
    %3141 = vmatprep.subr.mxu0 0.0
    %3142 = vmatpush1.msra.mxu0 %v172
    %3143 = vmatprep.subr.mxu0 0.0
    %3144 = vmatpush1.msra.mxu0 %v173
    %3145 = vmatprep.subr.mxu0 0.0
    %3146 = vmatpush1.msra.mxu0 %v174
    %3147 = vmatprep.subr.mxu0 0.0
    %3148 = vmatpush1.msra.mxu0 %v175
    %3149 = vmatprep.subr.mxu0 0.0
    %3150 = vmatpush1.msra.mxu0 %v176
    %3151 = vmatprep.subr.mxu0 0.0
    %3152 = vmatpush1.msra.mxu0 %v177
    %3153 = vmatprep.subr.mxu0 0.0
    %3154 = vmatpush1.msra.mxu0 %v178
    %3155 = vmatprep.subr.mxu0 0.0
    %3156 = vmatpush1.msra.mxu0 %v179
    %3157 = vmatprep.subr.mxu0 0.0
    %3158 = vmatpush1.msra.mxu0 %v180
    %3159 = vmatprep.subr.mxu0 0.0
    %3160 = vmatpush1.msra.mxu0 %v181
    %3161 = vmatprep.subr.mxu0 0.0
    %3162 = vmatpush1.msra.mxu0 %v182
    %3163 = vmatprep.subr.mxu0 0.0
    %3164 = vmatpush1.msra.mxu0 %v183
    %3165 = vmatprep.subr.mxu0 0.0
    %3166 = vmatpush1.msra.mxu0 0.0
    %3167 = vmatprep.subr.mxu0 0.0
    %3168 = vmatpush1.msra.mxu0 0.0
    %3169 = vmatprep.subr.mxu0 0.0
    %3170 = vmatpush1.msra.mxu0 0.0
    %3171 = vmatprep.subr.mxu0 0.0
    %3172 = vmatpush1.msra.mxu0 0.0
    %3173 = vmatprep.subr.mxu0 0.0
    %3174 = vmatpush1.msra.mxu0 0.0
    %3175 = vmatprep.subr.mxu0 0.0
    %3176 = vmatpush1.msra.mxu0 0.0
    %3177 = vmatprep.subr.mxu0 0.0
    %3178 = vmatpush1.msra.mxu0 0.0
    %3179 = vmatprep.subr.mxu0 0.0
    %3180 = vmatpush1.msra.mxu0 0.0
    %3181 = vmatprep.subr.mxu0 0.0
    %3182 = vmatpush1.msra.mxu0 0.0
    %3183 = vmatprep.subr.mxu0 0.0
    %3184 = vmatpush1.msra.mxu0 0.0
    %3185 = vmatprep.subr.mxu0 0.0
    %3186 = vmatpush1.msra.mxu0 0.0
    %3187 = vmatprep.subr.mxu0 0.0
    %3188 = vmatpush1.msra.mxu0 0.0
    %3189 = vmatprep.subr.mxu0 0.0
    %3190 = vmatpush1.msra.mxu0 0.0
    %3191 = vmatprep.subr.mxu0 0.0
    %3192 = vmatpush1.msra.mxu0 0.0
    %3193 = vmatprep.subr.mxu0 0.0
    %3194 = vmatpush1.msra.mxu0 0.0
    %3195 = vmatprep.subr.mxu0 0.0
    %3196 = vmatpush1.msra.mxu0 0.0
    %3197 = vmatprep.mubr.f32.mxu0 0.0
    %3198 = vmatmul.mubr.f32.gmra.mrb[0].mxu0 %v3132
    %v3199 = vpop.f32.mrb[0].mxu0
    %v3200 = vadd.f32 0.0, %v3199
    %v3201 = vpop.f32.mrb[0].mxu0
    %3202 = vdwg.mxu0
    %3203 = vmatprep.subr.mxu0 0.0
    %3204 = vmatpush1.msra.mxu0 %v223
    %3205 = vmatprep.subr.mxu0 0.0
    %3206 = vmatpush1.msra.mxu0 %v224
    %3207 = vmatprep.subr.mxu0 0.0
    %3208 = vmatpush1.msra.mxu0 %v225
    %3209 = vmatprep.subr.mxu0 0.0
    %3210 = vmatpush1.msra.mxu0 %v226
    %3211 = vmatprep.subr.mxu0 0.0
    %3212 = vmatpush1.msra.mxu0 %v227
    %3213 = vmatprep.subr.mxu0 0.0
    %3214 = vmatpush1.msra.mxu0 %v228
    %3215 = vmatprep.subr.mxu0 0.0
    %3216 = vmatpush1.msra.mxu0 %v229
    %3217 = vmatprep.subr.mxu0 0.0
    %3218 = vmatpush1.msra.mxu0 %v230
    %3219 = vmatprep.subr.mxu0 0.0
    %3220 = vmatpush1.msra.mxu0 %v231
    %3221 = vmatprep.subr.mxu0 0.0
    %3222 = vmatpush1.msra.mxu0 %v232
    %3223 = vmatprep.subr.mxu0 0.0
    %3224 = vmatpush1.msra.mxu0 %v233
    %3225 = vmatprep.subr.mxu0 0.0
    %3226 = vmatpush1.msra.mxu0 %v234
    %3227 = vmatprep.subr.mxu0 0.0
    %3228 = vmatpush1.msra.mxu0 %v235
    %3229 = vmatprep.subr.mxu0 0.0
    %3230 = vmatpush1.msra.mxu0 %v236
    %3231 = vmatprep.subr.mxu0 0.0
    %3232 = vmatpush1.msra.mxu0 %v237
    %3233 = vmatprep.subr.mxu0 0.0
    %3234 = vmatpush1.msra.mxu0 %v238
    %3235 = vmatprep.subr.mxu0 0.0
    %3236 = vmatpush1.msra.mxu0 0.0
    %3237 = vmatprep.subr.mxu0 0.0
    %3238 = vmatpush1.msra.mxu0 0.0
    %3239 = vmatprep.subr.mxu0 0.0
    %3240 = vmatpush1.msra.mxu0 0.0
    %3241 = vmatprep.subr.mxu0 0.0
    %3242 = vmatpush1.msra.mxu0 0.0
    %3243 = vmatprep.subr.mxu0 0.0
    %3244 = vmatpush1.msra.mxu0 0.0
    %3245 = vmatprep.subr.mxu0 0.0
    %3246 = vmatpush1.msra.mxu0 0.0
    %3247 = vmatprep.subr.mxu0 0.0
    %3248 = vmatpush1.msra.mxu0 0.0
    %3249 = vmatprep.subr.mxu0 0.0
    %3250 = vmatpush1.msra.mxu0 0.0
    %3251 = vmatprep.subr.mxu0 0.0
    %3252 = vmatpush1.msra.mxu0 0.0
    %3253 = vmatprep.subr.mxu0 0.0
    %3254 = vmatpush1.msra.mxu0 0.0
    %3255 = vmatprep.subr.mxu0 0.0
    %3256 = vmatpush1.msra.mxu0 0.0
    %3257 = vmatprep.subr.mxu0 0.0
    %3258 = vmatpush1.msra.mxu0 0.0
    %3259 = vmatprep.subr.mxu0 0.0
    %3260 = vmatpush1.msra.mxu0 0.0
    %3261 = vmatprep.subr.mxu0 0.0
    %3262 = vmatpush1.msra.mxu0 0.0
    %3263 = vmatprep.subr.mxu0 0.0
    %3264 = vmatpush1.msra.mxu0 0.0
    %3265 = vmatprep.subr.mxu0 0.0
    %3266 = vmatpush1.msra.mxu0 0.0
    %3267 = vmatprep.mubr.f32.mxu0 0.0
    %3268 = vmatmul.mubr.f32.gmra.mrb[0].mxu0 %v3132
    %v3269 = vpop.f32.mrb[0].mxu0
    %v3270 = vadd.f32 0.0, %v3269
    %v3271 = vpop.f32.mrb[0].mxu0
    %3272 = vdwg.mxu0
    %v3273 = vmax.f32 %v3200, %v3270
    %3274 = vmatprep.subr.mxu0 0.0
    %3275 = vmatpush1.msra.mxu0 %v3273
    %3276 = vmatprep.subr.mxu0 0.0
    %3277 = vmatpush1.msra.mxu0 0.0
    %3278 = vmatprep.subr.mxu0 0.0
    %3279 = vmatpush1.msra.mxu0 0.0
    %3280 = vmatprep.subr.mxu0 0.0
    %3281 = vmatpush1.msra.mxu0 0.0
    %3282 = vmatprep.subr.mxu0 0.0
    %3283 = vmatpush1.msra.mxu0 0.0
    %3284 = vmatprep.subr.mxu0 0.0
    %3285 = vmatpush1.msra.mxu0 0.0
    %3286 = vmatprep.subr.mxu0 0.0
    %3287 = vmatpush1.msra.mxu0 0.0
    %3288 = vmatprep.subr.mxu0 0.0
    %3289 = vmatpush1.msra.mxu0 0.0
    %3290 = vmatprep.subr.mxu0 0.0
    %3291 = vmatpush1.msra.mxu0 0.0
    %3292 = vmatprep.subr.mxu0 0.0
    %3293 = vmatpush1.msra.mxu0 0.0
    %3294 = vmatprep.subr.mxu0 0.0
    %3295 = vmatpush1.msra.mxu0 0.0
    %3296 = vmatprep.subr.mxu0 0.0
    %3297 = vmatpush1.msra.mxu0 0.0
    %3298 = vmatprep.subr.mxu0 0.0
    %3299 = vmatpush1.msra.mxu0 0.0
    %3300 = vmatprep.subr.mxu0 0.0
    %3301 = vmatpush1.msra.mxu0 0.0
    %3302 = vmatprep.subr.mxu0 0.0
    %3303 = vmatpush1.msra.mxu0 0.0
    %3304 = vmatprep.subr.mxu0 0.0
    %3305 = vmatpush1.msra.mxu0 0.0
    %3306 = vmatprep.subr.mxu0 0.0
    %3307 = vmatpush1.msra.mxu0 0.0
    %3308 = vmatprep.subr.mxu0 0.0
    %3309 = vmatpush1.msra.mxu0 0.0
    %3310 = vmatprep.subr.mxu0 0.0
    %3311 = vmatpush1.msra.mxu0 0.0
    %3312 = vmatprep.subr.mxu0 0.0
    %3313 = vmatpush1.msra.mxu0 0.0
    %3314 = vmatprep.subr.mxu0 0.0
    %3315 = vmatpush1.msra.mxu0 0.0
    %3316 = vmatprep.subr.mxu0 0.0
    %3317 = vmatpush1.msra.mxu0 0.0
    %3318 = vmatprep.subr.mxu0 0.0
    %3319 = vmatpush1.msra.mxu0 0.0
    %3320 = vmatprep.subr.mxu0 0.0
    %3321 = vmatpush1.msra.mxu0 0.0
    %3322 = vmatprep.subr.mxu0 0.0
    %3323 = vmatpush1.msra.mxu0 0.0
    %3324 = vmatprep.subr.mxu0 0.0
    %3325 = vmatpush1.msra.mxu0 0.0
    %3326 = vmatprep.subr.mxu0 0.0
    %3327 = vmatpush1.msra.mxu0 0.0
    %3328 = vmatprep.subr.mxu0 0.0
    %3329 = vmatpush1.msra.mxu0 0.0
    %3330 = vmatprep.subr.mxu0 0.0
    %3331 = vmatpush1.msra.mxu0 0.0
    %3332 = vmatprep.subr.mxu0 0.0
    %3333 = vmatpush1.msra.mxu0 0.0
    %3334 = vmatprep.subr.mxu0 0.0
    %3335 = vmatpush1.msra.mxu0 0.0
    %3336 = vmatprep.subr.mxu0 0.0
    %3337 = vmatpush1.msra.mxu0 0.0
    %3338 = vmatprep.mubr.f32.mxu0 0.0
    %3339 = vmatmul.mubr.f32.gmra.mrb[0].mxu0 %v1759
    %v3340 = vpop.f32.mrb[0].mxu0
    %v3341 = vadd.f32 0.0, %v3340
    %v3342 = vpop.f32.mrb[0].mxu0
    %3343 = vdwg.mxu0
    %3344 = vmatprep.subr.mxu0 0.0
    %3345 = vmatpush1.msra.mxu0 %v3273
    %3346 = vmatprep.subr.mxu0 0.0
    %3347 = vmatpush1.msra.mxu0 0.0
    %3348 = vmatprep.subr.mxu0 0.0
    %3349 = vmatpush1.msra.mxu0 0.0
    %3350 = vmatprep.subr.mxu0 0.0
    %3351 = vmatpush1.msra.mxu0 0.0
    %3352 = vmatprep.subr.mxu0 0.0
    %3353 = vmatpush1.msra.mxu0 0.0
    %3354 = vmatprep.subr.mxu0 0.0
    %3355 = vmatpush1.msra.mxu0 0.0
    %3356 = vmatprep.subr.mxu0 0.0
    %3357 = vmatpush1.msra.mxu0 0.0
    %3358 = vmatprep.subr.mxu0 0.0
    %3359 = vmatpush1.msra.mxu0 0.0
    %3360 = vmatprep.subr.mxu0 0.0
    %3361 = vmatpush1.msra.mxu0 0.0
    %3362 = vmatprep.subr.mxu0 0.0
    %3363 = vmatpush1.msra.mxu0 0.0
    %3364 = vmatprep.subr.mxu0 0.0
    %3365 = vmatpush1.msra.mxu0 0.0
    %3366 = vmatprep.subr.mxu0 0.0
    %3367 = vmatpush1.msra.mxu0 0.0
    %3368 = vmatprep.subr.mxu0 0.0
    %3369 = vmatpush1.msra.mxu0 0.0
    %3370 = vmatprep.subr.mxu0 0.0
    %3371 = vmatpush1.msra.mxu0 0.0
    %3372 = vmatprep.subr.mxu0 0.0
    %3373 = vmatpush1.msra.mxu0 0.0
    %3374 = vmatprep.subr.mxu0 0.0
    %3375 = vmatpush1.msra.mxu0 0.0
    %3376 = vmatprep.subr.mxu0 0.0
    %3377 = vmatpush1.msra.mxu0 0.0
    %3378 = vmatprep.subr.mxu0 0.0
    %3379 = vmatpush1.msra.mxu0 0.0
    %3380 = vmatprep.subr.mxu0 0.0
    %3381 = vmatpush1.msra.mxu0 0.0
    %3382 = vmatprep.subr.mxu0 0.0
    %3383 = vmatpush1.msra.mxu0 0.0
    %3384 = vmatprep.subr.mxu0 0.0
    %3385 = vmatpush1.msra.mxu0 0.0
    %3386 = vmatprep.subr.mxu0 0.0
    %3387 = vmatpush1.msra.mxu0 0.0
    %3388 = vmatprep.subr.mxu0 0.0
    %3389 = vmatpush1.msra.mxu0 0.0
    %3390 = vmatprep.subr.mxu0 0.0
    %3391 = vmatpush1.msra.mxu0 0.0
    %3392 = vmatprep.subr.mxu0 0.0
    %3393 = vmatpush1.msra.mxu0 0.0
    %3394 = vmatprep.subr.mxu0 0.0
    %3395 = vmatpush1.msra.mxu0 0.0
    %3396 = vmatprep.subr.mxu0 0.0
    %3397 = vmatpush1.msra.mxu0 0.0
    %3398 = vmatprep.subr.mxu0 0.0
    %3399 = vmatpush1.msra.mxu0 0.0
    %3400 = vmatprep.subr.mxu0 0.0
    %3401 = vmatpush1.msra.mxu0 0.0
    %3402 = vmatprep.subr.mxu0 0.0
    %3403 = vmatpush1.msra.mxu0 0.0
    %3404 = vmatprep.subr.mxu0 0.0
    %3405 = vmatpush1.msra.mxu0 0.0
    %3406 = vmatprep.subr.mxu0 0.0
    %3407 = vmatpush1.msra.mxu0 0.0
    %3408 = vmatprep.mubr.f32.mxu0 0.0
    %3409 = vmatmul.mubr.f32.gmra.mrb[0].mxu0 %v1831
    %v3410 = vpop.f32.mrb[0].mxu0
    %v3411 = vadd.f32 0.0, %v3410
    %v3412 = vpop.f32.mrb[0].mxu0
    %3413 = vdwg.mxu0
    %v3414 = vmax.f32 %v3341, %v3411
    %v3416 = vrot.slane %v3414, 1
    %3417 = vrot.lane.b32.xlu0 %v3416, 64
    %v3418 = vpop.permute.xlu0 %3417
    %v3420 = vrot.slane %v3414, 2
    %v3422 = vrot.slane %v3414, 3
    %3423 = vrot.lane.b32.xlu0 %v3422, 64
    %v3424 = vpop.permute.xlu0 %3423
    %v3426 = vsel %vm1915, %v3414, %v3418
    %v3427 = vsel %vm1915, %v3420, %v3424
    %v3430 = vrot.slane %v3426, 7
    %v3431 = vrot.slane %v3427, 7
    %vm3434 = vcmask 1040384
    %v3435 = vsel %vm3434, %v1916, %v3430
    %v3436 = vsel %vm3434, %v1917, %v3431
    %v3437 = vld [vmem:[%s5] sm:$0xff]
    %v3438 = vld [vmem:[%s5 + $0x8] sm:$0xff]
    %v3439 = vld [vmem:[%s5 + $0x10] sm:$0xff]
    %v3440 = vld [vmem:[%s5 + $0x18] sm:$0xff]
    %v3441 = vld [vmem:[%s5 + $0x20] sm:$0xff]
    %v3442 = vld [vmem:[%s5 + $0x28] sm:$0xff]
    %v3443 = vld [vmem:[%s5 + $0x30] sm:$0xff]
    %v3444 = vld [vmem:[%s5 + $0x38] sm:$0xff]
    %v3445 = vld [vmem:[%s5 + $0x40] sm:$0xff]
    %v3446 = vld [vmem:[%s5 + $0x48] sm:$0xff]
    %v3447 = vld [vmem:[%s5 + $0x50] sm:$0xff]
    %v3448 = vld [vmem:[%s5 + $0x58] sm:$0xff]
    %v3449 = vld [vmem:[%s5 + $0x60] sm:$0xff]
    %v3450 = vld [vmem:[%s5 + $0x68] sm:$0xff]
    %v3451 = vld [vmem:[%s5 + $0x70] sm:$0xff]
    %v3452 = vld [vmem:[%s5 + $0x78] sm:$0xff]
    %v3453 = vld [vmem:[%s5 + $0x80] sm:$0xff]
    %v3454 = vld [vmem:[%s5 + $0x88] sm:$0xff]
    %v3455 = vld [vmem:[%s5 + $0x90] sm:$0xff]
    %v3456 = vld [vmem:[%s5 + $0x98] sm:$0xff]
    %v3457 = vld [vmem:[%s5 + $0xa0] sm:$0xff]
    %v3458 = vld [vmem:[%s5 + $0xa8] sm:$0xff]
    %v3459 = vld [vmem:[%s5 + $0xb0] sm:$0xff]
    %v3460 = vld [vmem:[%s5 + $0xb8] sm:$0xff]
    %v3461 = vld [vmem:[%s5 + $0xc0] sm:$0xff]
    %v3462 = vld [vmem:[%s5 + $0xc8] sm:$0xff]
    %v3463 = vld [vmem:[%s5 + $0xd0] sm:$0xff]
    %v3464 = vld [vmem:[%s5 + $0xd8] sm:$0xff]
    %v3465 = vld [vmem:[%s5 + $0xe0] sm:$0xff]
    %v3466 = vld [vmem:[%s5 + $0xe8] sm:$0xff]
    %v3467 = vld [vmem:[%s5 + $0xf0] sm:$0xff]
    %v3468 = vld [vmem:[%s5 + $0xf8] sm:$0xff]
    %v3469 = vld [vmem:[%s6] sm:$0x1]
    %v3471 = vlaneseq
    %v3472 = vshrl.u32 %v3471, 7
    %v3473 = vsub.s32 0, %v3472
    %v3474 = vrot.slane %v3469, %v3473
    %3476 = vmatprep.subr.mxu0 0.0
    %3477 = vmatpush1.msra.mxu0 %v3437
    %3478 = vmatprep.subr.mxu0 0.0
    %3479 = vmatpush1.msra.mxu0 %v3438
    %3480 = vmatprep.subr.mxu0 0.0
    %3481 = vmatpush1.msra.mxu0 %v3439
    %3482 = vmatprep.subr.mxu0 0.0
    %3483 = vmatpush1.msra.mxu0 %v3440
    %3484 = vmatprep.subr.mxu0 0.0
    %3485 = vmatpush1.msra.mxu0 %v3441
    %3486 = vmatprep.subr.mxu0 0.0
    %3487 = vmatpush1.msra.mxu0 %v3442
    %3488 = vmatprep.subr.mxu0 0.0
    %3489 = vmatpush1.msra.mxu0 %v3443
    %3490 = vmatprep.subr.mxu0 0.0
    %3491 = vmatpush1.msra.mxu0 %v3444
    %3492 = vmatprep.subr.mxu0 0.0
    %3493 = vmatpush1.msra.mxu0 %v3445
    %3494 = vmatprep.subr.mxu0 0.0
    %3495 = vmatpush1.msra.mxu0 %v3446
    %3496 = vmatprep.subr.mxu0 0.0
    %3497 = vmatpush1.msra.mxu0 %v3447
    %3498 = vmatprep.subr.mxu0 0.0
    %3499 = vmatpush1.msra.mxu0 %v3448
    %3500 = vmatprep.subr.mxu0 0.0
    %3501 = vmatpush1.msra.mxu0 %v3449
    %3502 = vmatprep.subr.mxu0 0.0
    %3503 = vmatpush1.msra.mxu0 %v3450
    %3504 = vmatprep.subr.mxu0 0.0
    %3505 = vmatpush1.msra.mxu0 %v3451
    %3506 = vmatprep.subr.mxu0 0.0
    %3507 = vmatpush1.msra.mxu0 %v3452
    %3508 = vmatprep.subr.mxu0 0.0
    %3509 = vmatpush1.msra.mxu0 %v3453
    %3510 = vmatprep.subr.mxu0 0.0
    %3511 = vmatpush1.msra.mxu0 %v3454
    %3512 = vmatprep.subr.mxu0 0.0
    %3513 = vmatpush1.msra.mxu0 %v3455
    %3514 = vmatprep.subr.mxu0 0.0
    %3515 = vmatpush1.msra.mxu0 %v3456
    %3516 = vmatprep.subr.mxu0 0.0
    %3517 = vmatpush1.msra.mxu0 %v3457
    %3518 = vmatprep.subr.mxu0 0.0
    %3519 = vmatpush1.msra.mxu0 %v3458
    %3520 = vmatprep.subr.mxu0 0.0
    %3521 = vmatpush1.msra.mxu0 %v3459
    %3522 = vmatprep.subr.mxu0 0.0
    %3523 = vmatpush1.msra.mxu0 %v3460
    %3524 = vmatprep.subr.mxu0 0.0
    %3525 = vmatpush1.msra.mxu0 %v3461
    %3526 = vmatprep.subr.mxu0 0.0
    %3527 = vmatpush1.msra.mxu0 %v3462
    %3528 = vmatprep.subr.mxu0 0.0
    %3529 = vmatpush1.msra.mxu0 %v3463
    %3530 = vmatprep.subr.mxu0 0.0
    %3531 = vmatpush1.msra.mxu0 %v3464
    %3532 = vmatprep.subr.mxu0 0.0
    %3533 = vmatpush1.msra.mxu0 %v3465
    %3534 = vmatprep.subr.mxu0 0.0
    %3535 = vmatpush1.msra.mxu0 %v3466
    %3536 = vmatprep.subr.mxu0 0.0
    %3537 = vmatpush1.msra.mxu0 %v3467
    %3538 = vmatprep.subr.mxu0 0.0
    %3539 = vmatpush1.msra.mxu0 %v3468
    %3540 = vmatprep.mubr.f32.mxu0 %v3436
    %3541 = vmatmul.mubr.f32.gmra.mrb[0].mxu0 %v3435
    %v3542 = vpop.f32.mrb[0].mxu0
    %v3543 = vadd.f32 %v3474, %v3542
    %v3544 = vpop.f32.mrb[0].mxu0
    %3545 = vdwg.mxu0
    %v3546 = vmax.f32 %v3543, 0.0
    %v3547 = vld [vmem:[#allocation7] sm:$0xff]
    %v3548 = vld [vmem:[#allocation7 + $0x8] sm:$0xff]
    %v3549 = vld [vmem:[#allocation7 + $0x10] sm:$0xff]
    %v3550 = vld [vmem:[#allocation7 + $0x18] sm:$0xff]
    %v3551 = vld [vmem:[#allocation7 + $0x20] sm:$0xff]
    %v3552 = vld [vmem:[#allocation7 + $0x28] sm:$0xff]
    %v3553 = vld [vmem:[#allocation7 + $0x30] sm:$0xff]
    %v3554 = vld [vmem:[#allocation7 + $0x38] sm:$0xff]
    %v3555 = vld [vmem:[#allocation7 + $0x40] sm:$0xff]
    %v3556 = vld [vmem:[#allocation7 + $0x48] sm:$0xff]
    %v3557 = vld [vmem:[#allocation7 + $0x50] sm:$0xff]
    %v3558 = vld [vmem:[#allocation7 + $0x58] sm:$0xff]
    %v3559 = vld [vmem:[#allocation7 + $0x60] sm:$0xff]
    %v3560 = vld [vmem:[#allocation7 + $0x68] sm:$0xff]
    %v3561 = vld [vmem:[#allocation7 + $0x70] sm:$0xff]
    %v3562 = vld [vmem:[#allocation7 + $0x78] sm:$0xff]
    %v3563 = vld [vmem:[%s8] sm:$0x1]
    %v3565 = vlaneseq
    %v3566 = vshrl.u32 %v3565, 7
    %v3567 = vsub.s32 0, %v3566
    %v3568 = vrot.slane %v3563, %v3567
    %3570 = vmatprep.subr.mxu0 0.0
    %3571 = vmatpush1.msra.mxu0 %v3547
    %3572 = vmatprep.subr.mxu0 0.0
    %3573 = vmatpush1.msra.mxu0 %v3548
    %3574 = vmatprep.subr.mxu0 0.0
    %3575 = vmatpush1.msra.mxu0 %v3549
    %3576 = vmatprep.subr.mxu0 0.0
    %3577 = vmatpush1.msra.mxu0 %v3550
    %3578 = vmatprep.subr.mxu0 0.0
    %3579 = vmatpush1.msra.mxu0 %v3551
    %3580 = vmatprep.subr.mxu0 0.0
    %3581 = vmatpush1.msra.mxu0 %v3552
    %3582 = vmatprep.subr.mxu0 0.0
    %3583 = vmatpush1.msra.mxu0 %v3553
    %3584 = vmatprep.subr.mxu0 0.0
    %3585 = vmatpush1.msra.mxu0 %v3554
    %3586 = vmatprep.subr.mxu0 0.0
    %3587 = vmatpush1.msra.mxu0 %v3555
    %3588 = vmatprep.subr.mxu0 0.0
    %3589 = vmatpush1.msra.mxu0 %v3556
    %3590 = vmatprep.subr.mxu0 0.0
    %3591 = vmatpush1.msra.mxu0 %v3557
    %3592 = vmatprep.subr.mxu0 0.0
    %3593 = vmatpush1.msra.mxu0 %v3558
    %3594 = vmatprep.subr.mxu0 0.0
    %3595 = vmatpush1.msra.mxu0 %v3559
    %3596 = vmatprep.subr.mxu0 0.0
    %3597 = vmatpush1.msra.mxu0 %v3560
    %3598 = vmatprep.subr.mxu0 0.0
    %3599 = vmatpush1.msra.mxu0 %v3561
    %3600 = vmatprep.subr.mxu0 0.0
    %3601 = vmatpush1.msra.mxu0 %v3562
    %3602 = vmatprep.subr.mxu0 0.0
    %3603 = vmatpush1.msra.mxu0 0.0
    %3604 = vmatprep.subr.mxu0 0.0
    %3605 = vmatpush1.msra.mxu0 0.0
    %3606 = vmatprep.subr.mxu0 0.0
    %3607 = vmatpush1.msra.mxu0 0.0
    %3608 = vmatprep.subr.mxu0 0.0
    %3609 = vmatpush1.msra.mxu0 0.0
    %3610 = vmatprep.subr.mxu0 0.0
    %3611 = vmatpush1.msra.mxu0 0.0
    %3612 = vmatprep.subr.mxu0 0.0
    %3613 = vmatpush1.msra.mxu0 0.0
    %3614 = vmatprep.subr.mxu0 0.0
    %3615 = vmatpush1.msra.mxu0 0.0
    %3616 = vmatprep.subr.mxu0 0.0
    %3617 = vmatpush1.msra.mxu0 0.0
    %3618 = vmatprep.subr.mxu0 0.0
    %3619 = vmatpush1.msra.mxu0 0.0
    %3620 = vmatprep.subr.mxu0 0.0
    %3621 = vmatpush1.msra.mxu0 0.0
    %3622 = vmatprep.subr.mxu0 0.0
    %3623 = vmatpush1.msra.mxu0 0.0
    %3624 = vmatprep.subr.mxu0 0.0
    %3625 = vmatpush1.msra.mxu0 0.0
    %3626 = vmatprep.subr.mxu0 0.0
    %3627 = vmatpush1.msra.mxu0 0.0
    %3628 = vmatprep.subr.mxu0 0.0
    %3629 = vmatpush1.msra.mxu0 0.0
    %3630 = vmatprep.subr.mxu0 0.0
    %3631 = vmatpush1.msra.mxu0 0.0
    %3632 = vmatprep.subr.mxu0 0.0
    %3633 = vmatpush1.msra.mxu0 0.0
    %3634 = vmatprep.mubr.f32.mxu0 0.0
    %3635 = vmatmul.mubr.f32.gmra.mrb[0].mxu0 %v3546
    %v3636 = vpop.f32.mrb[0].mxu0
    %v3637 = vadd.f32 %v3568, %v3636
    %v3638 = vpop.f32.mrb[0].mxu0
    %3639 = vdwg.mxu0
    %v3640 = vmax.f32 %v3637, 0.0
    %v3641 = vld [vmem:[#allocation8] sm:$0xff]
    %v3642 = vld [vmem:[#allocation8 + $0x8] sm:$0xff]
    %v3643 = vld [vmem:[#allocation8 + $0x10] sm:$0xff]
    %v3644 = vld [vmem:[#allocation8 + $0x18] sm:$0xff]
    %v3645 = vld [vmem:[#allocation8 + $0x20] sm:$0xff]
    %v3646 = vld [vmem:[#allocation8 + $0x28] sm:$0xff]
    %v3647 = vld [vmem:[#allocation8 + $0x30] sm:$0xff]
    %v3648 = vld [vmem:[#allocation8 + $0x38] sm:$0xff]
    %v3649 = vld [vmem:[#allocation8 + $0x40] sm:$0xff]
    %v3650 = vld [vmem:[#allocation8 + $0x48] sm:$0xff]
    %v3651 = vld [vmem:[#allocation8 + $0x50] sm:$0xff]
    %v3652 = vld [vmem:[#allocation8 + $0x58] sm:$0xff]
    %v3653 = vld [vmem:[#allocation8 + $0x60] sm:$0xff]
    %v3654 = vld [vmem:[#allocation8 + $0x68] sm:$0xff]
    %v3655 = vld [vmem:[#allocation8 + $0x70] sm:$0xff]
    %v3656 = vld [vmem:[#allocation8 + $0x78] sm:$0xff]
    %v3657 = vld [vmem:[%s10] sm:$0x1]
    %v3659 = vlaneseq
    %v3660 = vshrl.u32 %v3659, 7
    %v3661 = vsub.s32 0, %v3660
    %v3662 = vrot.slane %v3657, %v3661
    %3664 = vmatprep.subr.mxu0 0.0
    %3665 = vmatpush1.msra.mxu0 %v3641
    %3666 = vmatprep.subr.mxu0 0.0
    %3667 = vmatpush1.msra.mxu0 %v3642
    %3668 = vmatprep.subr.mxu0 0.0
    %3669 = vmatpush1.msra.mxu0 %v3643
    %3670 = vmatprep.subr.mxu0 0.0
    %3671 = vmatpush1.msra.mxu0 %v3644
    %3672 = vmatprep.subr.mxu0 0.0
    %3673 = vmatpush1.msra.mxu0 %v3645
    %3674 = vmatprep.subr.mxu0 0.0
    %3675 = vmatpush1.msra.mxu0 %v3646
    %3676 = vmatprep.subr.mxu0 0.0
    %3677 = vmatpush1.msra.mxu0 %v3647
    %3678 = vmatprep.subr.mxu0 0.0
    %3679 = vmatpush1.msra.mxu0 %v3648
    %3680 = vmatprep.subr.mxu0 0.0
    %3681 = vmatpush1.msra.mxu0 %v3649
    %3682 = vmatprep.subr.mxu0 0.0
    %3683 = vmatpush1.msra.mxu0 %v3650
    %3684 = vmatprep.subr.mxu0 0.0
    %3685 = vmatpush1.msra.mxu0 %v3651
    %3686 = vmatprep.subr.mxu0 0.0
    %3687 = vmatpush1.msra.mxu0 %v3652
    %3688 = vmatprep.subr.mxu0 0.0
    %3689 = vmatpush1.msra.mxu0 %v3653
    %3690 = vmatprep.subr.mxu0 0.0
    %3691 = vmatpush1.msra.mxu0 %v3654
    %3692 = vmatprep.subr.mxu0 0.0
    %3693 = vmatpush1.msra.mxu0 %v3655
    %3694 = vmatprep.subr.mxu0 0.0
    %3695 = vmatpush1.msra.mxu0 %v3656
    %3696 = vmatprep.subr.mxu0 0.0
    %3697 = vmatpush1.msra.mxu0 0.0
    %3698 = vmatprep.subr.mxu0 0.0
    %3699 = vmatpush1.msra.mxu0 0.0
    %3700 = vmatprep.subr.mxu0 0.0
    %3701 = vmatpush1.msra.mxu0 0.0
    %3702 = vmatprep.subr.mxu0 0.0
    %3703 = vmatpush1.msra.mxu0 0.0
    %3704 = vmatprep.subr.mxu0 0.0
    %3705 = vmatpush1.msra.mxu0 0.0
    %3706 = vmatprep.subr.mxu0 0.0
    %3707 = vmatpush1.msra.mxu0 0.0
    %3708 = vmatprep.subr.mxu0 0.0
    %3709 = vmatpush1.msra.mxu0 0.0
    %3710 = vmatprep.subr.mxu0 0.0
    %3711 = vmatpush1.msra.mxu0 0.0
    %3712 = vmatprep.subr.mxu0 0.0
    %3713 = vmatpush1.msra.mxu0 0.0
    %3714 = vmatprep.subr.mxu0 0.0
    %3715 = vmatpush1.msra.mxu0 0.0
    %3716 = vmatprep.subr.mxu0 0.0
    %3717 = vmatpush1.msra.mxu0 0.0
    %3718 = vmatprep.subr.mxu0 0.0
    %3719 = vmatpush1.msra.mxu0 0.0
    %3720 = vmatprep.subr.mxu0 0.0
    %3721 = vmatpush1.msra.mxu0 0.0
    %3722 = vmatprep.subr.mxu0 0.0
    %3723 = vmatpush1.msra.mxu0 0.0
    %3724 = vmatprep.subr.mxu0 0.0
    %3725 = vmatpush1.msra.mxu0 0.0
    %3726 = vmatprep.subr.mxu0 0.0
    %3727 = vmatpush1.msra.mxu0 0.0
    %3728 = vmatprep.mubr.f32.mxu0 0.0
    %3729 = vmatmul.mubr.f32.gmra.mrb[0].mxu0 %v3640
    %v3730 = vpop.f32.mrb[0].mxu0
    %v3731 = vadd.f32 %v3662, %v3730
    %v3732 = vpop.f32.mrb[0].mxu0
    %3733 = vdwg.mxu0
    %3734 = vst [vmem:[#allocation10] sm:$0x3] %v3731
    // Predicated region
    $region62: #{net_forward.1} parent=1 // pred_check
      _
    $region63: #{net_forward.1} parent=1 // pred_check_branch
      %3736 = sbr.rel (0) target = $region65
    $region64: #{net_forward.1} parent=1 // pred_region
      %s3738 = ssub.s32 32, 32
      %3739 = vsyncadd [#allocation4], %s3738
      %s3741 = sshll.u32 [#allocation10], 4
      %s3742 = int_to_ptr.vmem [resolvable:$true] %s3741
      %3744 = dma.vmem_to_hbm [thread:$0]  %s3742, 32, %s11, [#allocation4]
    $region65: #{net_forward.1} parent=1 // pred_fallthru
      _
    // Predicated region
    $region66: #{net_forward.1} parent=1 // pred_check
      _
    $region67: #{net_forward.1} parent=1 // pred_check_branch
      %3746 = sbr.rel (0) target = $region69
    $region68: #{net_forward.1} parent=1 // pred_region
      %3747 = dma.done [#allocation4], 32
    $region69: #{net_forward.1} parent=1 // pred_fallthru
      _
    %3748 = vsyncpa [#allocation3], 1
    %3749 = vsyncpa [#allocation6], 1
    %3750 = vsyncpa [#allocation9], 1
    %3751 = vsyncpa [#allocation4], 1

</llo_original>
